<compile_context>
chip_gen: v7x
topology: tpu7x:2x2x1
jax: 0.10.0
libtpu: 0.0.40
codegen_flags: <defaults>
</compile_context>

<pallas_src>
import functools
import math

import jax
import jax.numpy as jnp
from jax.experimental import pallas as pl
from jax.experimental.pallas import tpu as pltpu


_VMEM_LIMIT_BYTES = 48 * 1024 * 1024
_NEG_BIG = jnp.float32(-1e30)


def _cparams(dims):
    return pltpu.CompilerParams(dimension_semantics=dims,
                                vmem_limit_bytes=_VMEM_LIMIT_BYTES)


def _pick_row_tile(m, cap=512):
    if m <= cap:
        return m
    t = cap
    while t >= 8 and m % t != 0:
        t //= 2
    return t if (t >= 8 and m % t == 0) else m


def _pick_col_tile(n, cap=512):
    if n <= cap:
        return n
    t = cap
    while t >= 128 and n % t != 0:
        t //= 2
    return t if n % t == 0 else n


def _pick_ff_tile(E, FF, tm, budget=8 * 1024 * 1024):
    # Single step (tf == FF) whenever the bf16 weight pair + f32 hidden chunk fit;
    # otherwise largest power-of-two chunk that fits the budget.
    tf = FF
    while tf > 128 and (8 * E * tf + 4 * tm * tf > budget or FF % tf != 0):
        tf //= 2
    if FF % tf != 0:
        tf = FF
    return tf


# ----------------------------------------------------------------------------
# Fused self-attention block: QKV proj -> MHA -> out proj -> residual -> LN
# ----------------------------------------------------------------------------
def _self_attn_kernel(*refs, H, Dh, scale, eps, has_pad):
    x_ref, w_in_ref, b_in_ref, w_out_ref, b_out_ref, mask_ref = refs[:6]
    idx = 6
    pad_ref = None
    if has_pad:
        pad_ref = refs[idx]
        idx += 1
    g_ref, beta_ref, o_ref = refs[idx], refs[idx + 1], refs[idx + 2]

    E = H * Dh
    x = x_ref[0]                                                    # (T, E) bf16
    qkv = jnp.dot(x, w_in_ref[...],
                  preferred_element_type=jnp.float32) + b_in_ref[...]   # (T, 3E) f32
    qkv_b = qkv.astype(jnp.bfloat16)

    mask = mask_ref[0]                                              # (T, T) f32
    if has_pad:
        mask = mask + pad_ref[0]                                    # (1, T) broadcast

    heads = []
    for h in range(H):                                              # static unroll
        qh = qkv_b[:, h * Dh:(h + 1) * Dh]                          # (T, Dh)
        kh = qkv_b[:, E + h * Dh:E + (h + 1) * Dh]                  # (T, Dh)
        vh = qkv_b[:, 2 * E + h * Dh:2 * E + (h + 1) * Dh]          # (T, Dh)
        s = jax.lax.dot_general(qh, kh, (((1,), (1,)), ((), ())),
                                preferred_element_type=jnp.float32) * scale
        s = s + mask
        m = jnp.max(s, axis=-1, keepdims=True)
        p = jnp.exp(s - m)
        l = jnp.sum(p, axis=-1, keepdims=True)
        p = p * pl.reciprocal(l, approx=True)
        heads.append(jnp.dot(p.astype(jnp.bfloat16), vh,
                             preferred_element_type=jnp.float32))   # (T, Dh) f32
    o = jnp.concatenate(heads, axis=-1)                             # (T, E) f32

    attn = jnp.dot(o.astype(jnp.bfloat16), w_out_ref[...],
                   preferred_element_type=jnp.float32) + b_out_ref[...]
    y = x.astype(jnp.float32) + attn                                # residual
    mu = jnp.mean(y, axis=-1, keepdims=True)
    var = jnp.mean(jnp.square(y - mu), axis=-1, keepdims=True)
    o_ref[0] = (((y - mu) * jax.lax.rsqrt(var + eps)) * g_ref[...]
                + beta_ref[...]).astype(o_ref.dtype)


def pallas_self_attn_block(x, w_in, b_in, w_out, b_out, attn_mask, pad_add,
                           gamma, beta, *, num_heads, eps=1e-5):
    B, T, E = x.shape
    H = num_heads
    Dh = E // H
    scale = 1.0 / math.sqrt(Dh)
    has_pad = pad_add is not None
    kern = functools.partial(_self_attn_kernel, H=H, Dh=Dh, scale=scale,
                             eps=eps, has_pad=has_pad)
    in_specs = [
        pl.BlockSpec((1, T, E), lambda b: (b, 0, 0)),
        pl.BlockSpec((E, 3 * E), lambda b: (0, 0)),
        pl.BlockSpec((1, 3 * E), lambda b: (0, 0)),
        pl.BlockSpec((E, E), lambda b: (0, 0)),
        pl.BlockSpec((1, E), lambda b: (0, 0)),
        pl.BlockSpec((1, T, T), lambda b: (0, 0, 0)),
    ]
    args = [x, w_in, b_in, w_out, b_out, attn_mask]
    if has_pad:
        in_specs.append(pl.BlockSpec((1, 1, T), lambda b: (b, 0, 0)))
        args.append(pad_add)
    in_specs += [pl.BlockSpec((1, E), lambda b: (0, 0)),
                 pl.BlockSpec((1, E), lambda b: (0, 0))]
    args += [gamma, beta]
    return pl.pallas_call(
        kern,
        out_shape=jax.ShapeDtypeStruct((B, T, E), jnp.bfloat16),
        grid=(B,),
        in_specs=in_specs,
        out_specs=pl.BlockSpec((1, T, E), lambda b: (b, 0, 0)),
        compiler_params=_cparams(("parallel",)),
    )(*args)


# ----------------------------------------------------------------------------
# Fused cross-attention block: Q/KV proj -> MHA -> out proj -> residual -> LN
# ----------------------------------------------------------------------------
def _cross_attn_kernel(x_ref, mem_ref, wq_ref, bq_ref, wkv_ref, bkv_ref,
                       w_out_ref, b_out_ref, g_ref, beta_ref, o_ref,
                       *, H, Dh, scale, eps):
    E = H * Dh
    x = x_ref[0]                                                    # (T, E) bf16
    mem = mem_ref[0]                                                # (S, E) bf16
    q = (jnp.dot(x, wq_ref[...], preferred_element_type=jnp.float32)
         + bq_ref[...]).astype(jnp.bfloat16)                        # (T, E)
    kv = (jnp.dot(mem, wkv_ref[...], preferred_element_type=jnp.float32)
          + bkv_ref[...]).astype(jnp.bfloat16)                      # (S, 2E)

    heads = []
    for h in range(H):                                              # static unroll
        qh = q[:, h * Dh:(h + 1) * Dh]                              # (T, Dh)
        kh = kv[:, h * Dh:(h + 1) * Dh]                             # (S, Dh)
        vh = kv[:, E + h * Dh:E + (h + 1) * Dh]                     # (S, Dh)
        s = jax.lax.dot_general(qh, kh, (((1,), (1,)), ((), ())),
                                preferred_element_type=jnp.float32) * scale
        m = jnp.max(s, axis=-1, keepdims=True)
        p = jnp.exp(s - m)
        l = jnp.sum(p, axis=-1, keepdims=True)
        p = p * pl.reciprocal(l, approx=True)
        heads.append(jnp.dot(p.astype(jnp.bfloat16), vh,
                             preferred_element_type=jnp.float32))
    o = jnp.concatenate(heads, axis=-1)                             # (T, E) f32

    attn = jnp.dot(o.astype(jnp.bfloat16), w_out_ref[...],
                   preferred_element_type=jnp.float32) + b_out_ref[...]
    y = x.astype(jnp.float32) + attn
    mu = jnp.mean(y, axis=-1, keepdims=True)
    var = jnp.mean(jnp.square(y - mu), axis=-1, keepdims=True)
    o_ref[0] = (((y - mu) * jax.lax.rsqrt(var + eps)) * g_ref[...]
                + beta_ref[...]).astype(o_ref.dtype)


def pallas_cross_attn_block(x, memory, wq, bq, wkv, bkv, w_out, b_out,
                            gamma, beta, *, num_heads, eps=1e-5):
    B, T, E = x.shape
    S = memory.shape[1]
    H = num_heads
    Dh = E // H
    scale = 1.0 / math.sqrt(Dh)
    kern = functools.partial(_cross_attn_kernel, H=H, Dh=Dh, scale=scale, eps=eps)
    return pl.pallas_call(
        kern,
        out_shape=jax.ShapeDtypeStruct((B, T, E), jnp.bfloat16),
        grid=(B,),
        in_specs=[
            pl.BlockSpec((1, T, E), lambda b: (b, 0, 0)),
            pl.BlockSpec((1, S, E), lambda b: (b, 0, 0)),
            pl.BlockSpec((E, E), lambda b: (0, 0)),
            pl.BlockSpec((1, E), lambda b: (0, 0)),
            pl.BlockSpec((E, 2 * E), lambda b: (0, 0)),
            pl.BlockSpec((1, 2 * E), lambda b: (0, 0)),
            pl.BlockSpec((E, E), lambda b: (0, 0)),
            pl.BlockSpec((1, E), lambda b: (0, 0)),
            pl.BlockSpec((1, E), lambda b: (0, 0)),
            pl.BlockSpec((1, E), lambda b: (0, 0)),
        ],
        out_specs=pl.BlockSpec((1, T, E), lambda b: (b, 0, 0)),
        compiler_params=_cparams(("parallel",)),
    )(x, memory, wq, bq, wkv, bkv, w_out, b_out, gamma, beta)


# ----------------------------------------------------------------------------
# Fused feed-forward block: FF1 + ReLU + FF2 + residual + LayerNorm
# ----------------------------------------------------------------------------
def _ffn_kernel(x_ref, w1_ref, b1_ref, w2_ref, b2_ref, g_ref, beta_ref,
                o_ref, acc_ref, *, eps):
    j = pl.program_id(1)

    @pl.when(j == 0)
    def _():
        acc_ref[...] = jnp.zeros_like(acc_ref)

    h = jnp.dot(x_ref[...], w1_ref[...],
                preferred_element_type=jnp.float32) + b1_ref[...]
    h = jnp.maximum(h, 0.0)
    acc_ref[...] += jnp.dot(h.astype(jnp.bfloat16), w2_ref[...],
                            preferred_element_type=jnp.float32)

    @pl.when(j == pl.num_programs(1) - 1)
    def _():
        y = x_ref[...].astype(jnp.float32) + acc_ref[...] + b2_ref[...]
        mu = jnp.mean(y, axis=-1, keepdims=True)
        var = jnp.mean(jnp.square(y - mu), axis=-1, keepdims=True)
        o_ref[...] = (((y - mu) * jax.lax.rsqrt(var + eps)) * g_ref[...]
                      + beta_ref[...]).astype(o_ref.dtype)


def pallas_ffn_block(x, w1_t, b1, w2_t, b2, gamma, beta, eps=1e-5):
    M, E = x.shape
    FF = w1_t.shape[1]
    tm = _pick_row_tile(M)
    tf = _pick_ff_tile(E, FF, tm)
    kern = functools.partial(_ffn_kernel, eps=eps)
    return pl.pallas_call(
        kern,
        out_shape=jax.ShapeDtypeStruct((M, E), jnp.bfloat16),
        grid=(M // tm, FF // tf),
        in_specs=[
            pl.BlockSpec((tm, E), lambda i, j: (i, 0)),
            pl.BlockSpec((E, tf), lambda i, j: (0, j)),
            pl.BlockSpec((1, tf), lambda i, j: (0, j)),
            pl.BlockSpec((tf, E), lambda i, j: (j, 0)),
            pl.BlockSpec((1, E), lambda i, j: (0, 0)),
            pl.BlockSpec((1, E), lambda i, j: (0, 0)),
            pl.BlockSpec((1, E), lambda i, j: (0, 0)),
        ],
        out_specs=pl.BlockSpec((tm, E), lambda i, j: (i, 0)),
        scratch_shapes=[pltpu.VMEM((tm, E), jnp.float32)],
        compiler_params=_cparams(("parallel", "arbitrary")),
    )(x, w1_t, b1, w2_t, b2, gamma, beta)


# ----------------------------------------------------------------------------
# Tiled linear (vocab projection); x in bf16, weights pre-transposed bf16
# ----------------------------------------------------------------------------
def _linear_kernel(x_ref, w_ref, b_ref, o_ref):
    y = jnp.dot(x_ref[...], w_ref[...],
                preferred_element_type=jnp.float32) + b_ref[...]
    o_ref[...] = y.astype(o_ref.dtype)


def pallas_linear(x, w_t, b):
    M, K = x.shape
    N = w_t.shape[1]
    tm = _pick_row_tile(M)
    tn = _pick_col_tile(N)
    return pl.pallas_call(
        _linear_kernel,
        out_shape=jax.ShapeDtypeStruct((M, N), jnp.float32),
        grid=(M // tm, N // tn),
        in_specs=[
            pl.BlockSpec((tm, K), lambda i, j: (i, 0)),
            pl.BlockSpec((K, tn), lambda i, j: (0, j)),
            pl.BlockSpec((1, tn), lambda i, j: (0, j)),
        ],
        out_specs=pl.BlockSpec((tm, tn), lambda i, j: (i, j)),
        compiler_params=_cparams(("parallel", "parallel")),
    )(x, w_t, b)


# ----------------------------------------------------------------------------
# Model glue (gathers / reshapes in plain JAX, compute in Pallas)
# ----------------------------------------------------------------------------
def decoder_layer_forward(x, memory, p, num_heads, attn_mask, pad_add):
    # PyTorch TransformerDecoderLayer, norm_first=False (post-norm), eval mode.
    B, T, E = x.shape
    x = pallas_self_attn_block(x, p["sa_in_wt"], p["sa_in_b"],
                               p["sa_out_wt"], p["sa_out_b"],
                               attn_mask, pad_add, p["n1_w"], p["n1_b"],
                               num_heads=num_heads)
    x = pallas_cross_attn_block(x, memory, p["ca_q_wt"], p["ca_q_b"],
                                p["ca_kv_wt"], p["ca_kv_b"],
                                p["ca_out_wt"], p["ca_out_b"],
                                p["n2_w"], p["n2_b"], num_heads=num_heads)
    x2d = pallas_ffn_block(x.reshape(B * T, E), p["ff1_wt"], p["ff1_b"],
                           p["ff2_wt"], p["ff2_b"], p["n3_w"], p["n3_b"])
    return x2d.reshape(B, T, E)


def transformer_decoder_forward(params, tgt, memory, tgt_mask,
                                tgt_padding_mask=None, *, num_heads):
    # tgt: (T, B) int tokens, memory: (S, B, E), tgt_mask: (T, T) additive float
    T, B = tgt.shape
    V, E = params["word_emb"].shape

    positions = jnp.arange(T)
    # internal layout is batch-first (B, T, E), activations carried in bf16
    x = params["word_emb"][tgt.T] + params["pos_emb"][positions][None, :, :]
    # TODO(synk): nn.Dropout omitted (eval-mode identity); no RNG dropout in-kernel.
    x = x.astype(jnp.bfloat16)

    memory_bt = jnp.transpose(memory, (1, 0, 2)).astype(jnp.bfloat16)   # (B, S, E)

    # Clamp -inf to a large finite negative so fully-masked rows stay finite.
    attn_mask = jnp.maximum(tgt_mask.astype(jnp.float32), _NEG_BIG).reshape(1, T, T)
    if tgt_padding_mask is None:
        pad_add = None
    else:
        pad_add = jnp.where(tgt_padding_mask, _NEG_BIG,
                            jnp.float32(0.0)).reshape(B, 1, T)

    for lp in params["layers"]:
        x = decoder_layer_forward(x, memory_bt, lp, num_heads, attn_mask, pad_add)

    logits = pallas_linear(x.reshape(B * T, E), params["fc_wt"], params["fc_b"])
    logits = logits[:, :V].reshape(B, T, V)                        # drop lane padding
    return jnp.transpose(logits, (1, 0, 2))                        # (T, B, V)


# ----------------------------------------------------------------------------
# Deterministic parameter init (kernel-ready layout: (K, N) bf16 matmul weights)
# ----------------------------------------------------------------------------
def _round_up(x, m):
    return ((x + m - 1) // m) * m


def init_params(key, embed_size, vocab_size, num_layers, dim_feedforward, max_len):
    E, V, FF = embed_size, vocab_size, dim_feedforward
    Vp = _round_up(V, 128)   # lane-dense vocab projection; sliced back to V after

    def nrm(k, shape, scale=0.02):
        return scale * jax.random.normal(k, shape, dtype=jnp.float32)

    keys = jax.random.split(key, 3 + num_layers)

    fc_w = jnp.pad(nrm(keys[2], (E, V)), ((0, 0), (0, Vp - V)))

    params = {
        "word_emb": nrm(keys[0], (V, E)),
        "pos_emb": nrm(keys[1], (max_len, E)),
        "fc_wt": fc_w.astype(jnp.bfloat16),
        "fc_b": jnp.zeros((1, Vp), jnp.float32),
        "layers": [],
    }
    for l in range(num_layers):
        lk = jax.random.split(keys[3 + l], 7)
        params["layers"].append(dict(
            # matmul weights stored pre-transposed (in_features, out_features), bf16
            sa_in_wt=nrm(lk[0], (E, 3 * E)).astype(jnp.bfloat16),
            sa_in_b=jnp.zeros((1, 3 * E), jnp.float32),
            sa_out_wt=nrm(lk[1], (E, E)).astype(jnp.bfloat16),
            sa_out_b=jnp.zeros((1, E), jnp.float32),
            ca_q_wt=nrm(lk[2], (E, E)).astype(jnp.bfloat16),
            ca_q_b=jnp.zeros((1, E), jnp.float32),
            ca_kv_wt=nrm(lk[3], (E, 2 * E)).astype(jnp.bfloat16),
            ca_kv_b=jnp.zeros((1, 2 * E), jnp.float32),
            ca_out_wt=nrm(lk[4], (E, E)).astype(jnp.bfloat16),
            ca_out_b=jnp.zeros((1, E), jnp.float32),
            ff1_wt=nrm(lk[5], (E, FF)).astype(jnp.bfloat16),
            ff1_b=jnp.zeros((1, FF), jnp.float32),
            ff2_wt=nrm(lk[6], (FF, E)).astype(jnp.bfloat16),
            ff2_b=jnp.zeros((1, E), jnp.float32),
            n1_w=jnp.ones((1, E), jnp.float32), n1_b=jnp.zeros((1, E), jnp.float32),
            n2_w=jnp.ones((1, E), jnp.float32), n2_b=jnp.zeros((1, E), jnp.float32),
            n3_w=jnp.ones((1, E), jnp.float32), n3_b=jnp.zeros((1, E), jnp.float32),
        ))
    return params


def generate_square_subsequent_mask(sz):
    upper = jnp.triu(jnp.ones((sz, sz), dtype=bool), k=1)
    return jnp.where(upper, -jnp.inf, 0.0).astype(jnp.float32)


# ----------------------------------------------------------------------------
if __name__ == "__main__":
    EMBED = 32
    VOCAB = 50
    HEADS = 4
    LAYERS = 2
    FF = 2048        # nn.TransformerDecoderLayer default dim_feedforward
    MAX_LEN = 100
    T, B, S_MEM = 8, 2, 8

    key = jax.random.PRNGKey(0)
    kp, kt, km = jax.random.split(key, 3)

    params = init_params(kp, EMBED, VOCAB, LAYERS, FF, MAX_LEN)

    tgt = jax.random.randint(kt, (T, B), 0, VOCAB, dtype=jnp.int32)
    memory = jax.random.normal(km, (S_MEM, B, EMBED), dtype=jnp.float32)
    tgt_mask = generate_square_subsequent_mask(T)
    tgt_padding_mask = jnp.zeros((B, T), dtype=bool)   # no padding

    fwd = jax.jit(functools.partial(transformer_decoder_forward, num_heads=HEADS))
    out = fwd(params, tgt, memory, tgt_mask, tgt_padding_mask)
    out = jax.block_until_ready(out)

    assert out.shape == (T, B, VOCAB), out.shape
    assert bool(jnp.all(jnp.isfinite(out)))
    print("KERNEL_OK")
</pallas_src>

<mosaic_0001>
module attributes {stable_mosaic.version = 11 : i64} {
  func.func @_ffn_kernel(%arg0: i32, %arg1: i32, %arg2: memref<16x32xbf16, #tpu.memory_space<vmem>>, %arg3: memref<32x2048xbf16, #tpu.memory_space<vmem>>, %arg4: memref<1x2048xf32, #tpu.memory_space<vmem>>, %arg5: memref<2048x32xbf16, #tpu.memory_space<vmem>>, %arg6: memref<1x32xf32, #tpu.memory_space<vmem>>, %arg7: memref<1x32xf32, #tpu.memory_space<vmem>>, %arg8: memref<1x32xf32, #tpu.memory_space<vmem>>, %arg9: memref<16x32xbf16, #tpu.memory_space<vmem>>, %arg10: memref<16x32xf32, #tpu.memory_space<vmem>>) attributes {dimension_semantics = [#tpu.dimension_semantics<parallel>, #tpu.dimension_semantics<arbitrary>], iteration_bounds = array<i64: 1, 1>, scalar_prefetch = 0 : i64, scratch_operands = 1 : i64, tpu.core_type = #tpu.core_type<tc>, window_params = [{transform_indices = @transform_0, window_bounds = array<i64: 16, 32>}, {transform_indices = @transform_1, window_bounds = array<i64: 32, 2048>}, {transform_indices = @transform_2, window_bounds = array<i64: 1, 2048>}, {transform_indices = @transform_3, window_bounds = array<i64: 2048, 32>}, {pipeline_mode = #tpu.pipeline_mode<synchronous>, transform_indices = @transform_4, window_bounds = array<i64: 1, 32>}, {pipeline_mode = #tpu.pipeline_mode<synchronous>, transform_indices = @transform_5, window_bounds = array<i64: 1, 32>}, {pipeline_mode = #tpu.pipeline_mode<synchronous>, transform_indices = @transform_6, window_bounds = array<i64: 1, 32>}, {transform_indices = @transform_7, window_bounds = array<i64: 16, 32>}]} {
    %c0_i32 = arith.constant 0 : i32
    %0 = arith.cmpi eq, %arg1, %c0_i32 : i32
    %1 = arith.extui %0 : i1 to i32
    %c0_i32_0 = arith.constant 0 : i32
    %2 = arith.cmpi ne, %1, %c0_i32_0 : i32
    scf.if %2 {
      %cst_16 = arith.constant 0.000000e+00 : f32
      %20 = vector.broadcast %cst_16 : f32 to vector<16x32xf32>
      %c0_17 = arith.constant 0 : index
      %c0_18 = arith.constant 0 : index
      %21 = vector.load %arg10[%c0_17, %c0_18] : memref<16x32xf32, #tpu.memory_space<vmem>>, vector<16x32xf32>
      tpu.vector_store %arg10[%c0_17, %c0_18], %20 {strides = array<i32>} : memref<16x32xf32, #tpu.memory_space<vmem>>, vector<16x32xf32>,
    } else {
    }
    %c0 = arith.constant 0 : index
    %c0_1 = arith.constant 0 : index
    %3 = vector.load %arg2[%c0, %c0_1] : memref<16x32xbf16, #tpu.memory_space<vmem>>, vector<16x32xbf16>
    %c0_2 = arith.constant 0 : index
    %c0_3 = arith.constant 0 : index
    %4 = vector.load %arg3[%c0_2, %c0_3] : memref<32x2048xbf16, #tpu.memory_space<vmem>>, vector<32x2048xbf16>
    %cst = arith.constant dense<0.000000e+00> : vector<16x2048xf32>
    %5 = tpu.matmul %3, %4, %cst {dimension_numbers = #tpu.dot_dimension_numbers<[1], [0], [0], [1], [0, 0, 1, 1], [], []>} : vector<16x32xbf16>, vector<32x2048xbf16>, vector<16x2048xf32> -> vector<16x2048xf32>
    %c0_4 = arith.constant 0 : index
    %c0_5 = arith.constant 0 : index
    %6 = vector.load %arg4[%c0_4, %c0_5] : memref<1x2048xf32, #tpu.memory_space<vmem>>, vector<1x2048xf32>
    %7 = vector.broadcast %6 : vector<1x2048xf32> to vector<16x2048xf32>
    %8 = arith.addf %5, %7 : vector<16x2048xf32>
    %cst_6 = arith.constant 0.000000e+00 : f32
    %9 = vector.broadcast %cst_6 : f32 to vector<16x2048xf32>
    %10 = arith.maximumf %8, %9 : vector<16x2048xf32>
    %c0_7 = arith.constant 0 : index
    %c0_8 = arith.constant 0 : index
    %11 = vector.load %arg10[%c0_7, %c0_8] : memref<16x32xf32, #tpu.memory_space<vmem>>, vector<16x32xf32>
    %12 = arith.truncf %10 : vector<16x2048xf32> to vector<16x2048xbf16>
    %c0_9 = arith.constant 0 : index
    %c0_10 = arith.constant 0 : index
    %13 = vector.load %arg5[%c0_9, %c0_10] : memref<2048x32xbf16, #tpu.memory_space<vmem>>, vector<2048x32xbf16>
    %cst_11 = arith.constant dense<0.000000e+00> : vector<16x32xf32>
    %14 = tpu.matmul %12, %13, %cst_11 {dimension_numbers = #tpu.dot_dimension_numbers<[1], [0], [0], [1], [0, 0, 1, 1], [], []>} : vector<16x2048xbf16>, vector<2048x32xbf16>, vector<16x32xf32> -> vector<16x32xf32>
    %15 = arith.addf %11, %14 : vector<16x32xf32>
    %c0_12 = arith.constant 0 : index
    %c0_13 = arith.constant 0 : index
    %16 = vector.load %arg10[%c0_12, %c0_13] : memref<16x32xf32, #tpu.memory_space<vmem>>, vector<16x32xf32>
    tpu.vector_store %arg10[%c0_12, %c0_13], %15 {strides = array<i32>} : memref<16x32xf32, #tpu.memory_space<vmem>>, vector<16x32xf32>,
    %c0_i32_14 = arith.constant 0 : i32
    %17 = arith.cmpi eq, %arg1, %c0_i32_14 : i32
    %18 = arith.extui %17 : i1 to i32
    %c0_i32_15 = arith.constant 0 : i32
    %19 = arith.cmpi ne, %18, %c0_i32_15 : i32
    scf.if %19 {
      %c0_16 = arith.constant 0 : index
      %c0_17 = arith.constant 0 : index
      %20 = vector.load %arg2[%c0_16, %c0_17] : memref<16x32xbf16, #tpu.memory_space<vmem>>, vector<16x32xbf16>
      %21 = arith.extf %20 : vector<16x32xbf16> to vector<16x32xf32>
      %c0_18 = arith.constant 0 : index
      %c0_19 = arith.constant 0 : index
      %22 = vector.load %arg10[%c0_18, %c0_19] : memref<16x32xf32, #tpu.memory_space<vmem>>, vector<16x32xf32>
      %23 = arith.addf %21, %22 : vector<16x32xf32>
      %c0_20 = arith.constant 0 : index
      %c0_21 = arith.constant 0 : index
      %24 = vector.load %arg6[%c0_20, %c0_21] : memref<1x32xf32, #tpu.memory_space<vmem>>, vector<1x32xf32>
      %25 = vector.broadcast %24 : vector<1x32xf32> to vector<16x32xf32>
      %26 = arith.addf %23, %25 : vector<16x32xf32>
      %cst_22 = arith.constant dense<0.000000e+00> : vector<16xf32>
      %27 = vector.multi_reduction <add>, %26, %cst_22 [1] : vector<16x32xf32> to vector<16xf32>
      %28 = vector.shape_cast %27 : vector<16xf32> to vector<16x1xf32>
      %cst_23 = arith.constant 3.200000e+01 : f32
      %29 = vector.broadcast %cst_23 : f32 to vector<16x1xf32>
      %30 = arith.divf %28, %29 : vector<16x1xf32>
      %31 = vector.broadcast %30 : vector<16x1xf32> to vector<16x32xf32>
      %32 = arith.subf %26, %31 : vector<16x32xf32>
      %33 = arith.mulf %32, %32 : vector<16x32xf32>
      %cst_24 = arith.constant dense<0.000000e+00> : vector<16xf32>
      %34 = vector.multi_reduction <add>, %33, %cst_24 [1] : vector<16x32xf32> to vector<16xf32>
      %35 = vector.shape_cast %34 : vector<16xf32> to vector<16x1xf32>
      %cst_25 = arith.constant 3.200000e+01 : f32
      %36 = vector.broadcast %cst_25 : f32 to vector<16x1xf32>
      %37 = arith.divf %35, %36 : vector<16x1xf32>
      %38 = vector.broadcast %30 : vector<16x1xf32> to vector<16x32xf32>
      %39 = arith.subf %26, %38 : vector<16x32xf32>
      %cst_26 = arith.constant 9.99999974E-6 : f32
      %40 = vector.broadcast %cst_26 : f32 to vector<16x1xf32>
      %41 = arith.addf %37, %40 : vector<16x1xf32>
      %42 = math.rsqrt %41 : vector<16x1xf32>
      %43 = vector.broadcast %42 : vector<16x1xf32> to vector<16x32xf32>
      %44 = arith.mulf %39, %43 : vector<16x32xf32>
      %c0_27 = arith.constant 0 : index
      %c0_28 = arith.constant 0 : index
      %45 = vector.load %arg7[%c0_27, %c0_28] : memref<1x32xf32, #tpu.memory_space<vmem>>, vector<1x32xf32>
      %46 = vector.broadcast %45 : vector<1x32xf32> to vector<16x32xf32>
      %47 = arith.mulf %44, %46 : vector<16x32xf32>
      %c0_29 = arith.constant 0 : index
      %c0_30 = arith.constant 0 : index
      %48 = vector.load %arg8[%c0_29, %c0_30] : memref<1x32xf32, #tpu.memory_space<vmem>>, vector<1x32xf32>
      %49 = vector.broadcast %48 : vector<1x32xf32> to vector<16x32xf32>
      %50 = arith.addf %47, %49 : vector<16x32xf32>
      %51 = arith.truncf %50 : vector<16x32xf32> to vector<16x32xbf16>
      %c0_31 = arith.constant 0 : index
      %c0_32 = arith.constant 0 : index
      %52 = vector.load %arg9[%c0_31, %c0_32] : memref<16x32xbf16, #tpu.memory_space<vmem>>, vector<16x32xbf16>
      tpu.vector_store %arg9[%c0_31, %c0_32], %51 {strides = array<i32>} : memref<16x32xbf16, #tpu.memory_space<vmem>>, vector<16x32xbf16>,
    } else {
    }
    return
  }
  func.func @transform_0(%arg0: i32, %arg1: i32) -> (i32, i32) {
    %c0_i32 = arith.constant 0 : i32
    %c0_i32_0 = arith.constant 0 : i32
    return %arg0, %c0_i32 : i32, i32
  }
  func.func @transform_1(%arg0: i32, %arg1: i32) -> (i32, i32) {
    %c0_i32 = arith.constant 0 : i32
    %c0_i32_0 = arith.constant 0 : i32
    return %c0_i32, %arg1 : i32, i32
  }
  func.func @transform_2(%arg0: i32, %arg1: i32) -> (i32, i32) {
    %c0_i32 = arith.constant 0 : i32
    %c0_i32_0 = arith.constant 0 : i32
    return %c0_i32, %arg1 : i32, i32
  }
  func.func @transform_3(%arg0: i32, %arg1: i32) -> (i32, i32) {
    %c0_i32 = arith.constant 0 : i32
    %c0_i32_0 = arith.constant 0 : i32
    return %arg1, %c0_i32 : i32, i32
  }
  func.func @transform_4(%arg0: i32, %arg1: i32) -> (i32, i32) {
    %c0_i32 = arith.constant 0 : i32
    %c0_i32_0 = arith.constant 0 : i32
    %c0_i32_1 = arith.constant 0 : i32
    return %c0_i32, %c0_i32_0 : i32, i32
  }
  func.func @transform_5(%arg0: i32, %arg1: i32) -> (i32, i32) {
    %c0_i32 = arith.constant 0 : i32
    %c0_i32_0 = arith.constant 0 : i32
    %c0_i32_1 = arith.constant 0 : i32
    return %c0_i32, %c0_i32_0 : i32, i32
  }
  func.func @transform_6(%arg0: i32, %arg1: i32) -> (i32, i32) {
    %c0_i32 = arith.constant 0 : i32
    %c0_i32_0 = arith.constant 0 : i32
    %c0_i32_1 = arith.constant 0 : i32
    return %c0_i32, %c0_i32_0 : i32, i32
  }
  func.func @transform_7(%arg0: i32, %arg1: i32) -> (i32, i32) {
    %c0_i32 = arith.constant 0 : i32
    %c0_i32_0 = arith.constant 0 : i32
    return %arg0, %c0_i32 : i32, i32
  }
}

module attributes {stable_mosaic.version = 11 : i64} {
  func.func @_self_attn_kernel(%arg0: i32, %arg1: memref<1x8x32xbf16, #tpu.memory_space<vmem>>, %arg2: memref<32x96xbf16, #tpu.memory_space<vmem>>, %arg3: memref<1x96xf32, #tpu.memory_space<vmem>>, %arg4: memref<32x32xbf16, #tpu.memory_space<vmem>>, %arg5: memref<1x32xf32, #tpu.memory_space<vmem>>, %arg6: memref<1x8x8xf32, #tpu.memory_space<vmem>>, %arg7: memref<1x1x8xf32, #tpu.memory_space<vmem>>, %arg8: memref<1x32xf32, #tpu.memory_space<vmem>>, %arg9: memref<1x32xf32, #tpu.memory_space<vmem>>, %arg10: memref<1x8x32xbf16, #tpu.memory_space<vmem>>) attributes {dimension_semantics = [#tpu.dimension_semantics<parallel>], iteration_bounds = array<i64: 2>, scalar_prefetch = 0 : i64, scratch_operands = 0 : i64, tpu.core_type = #tpu.core_type<tc>, window_params = [{transform_indices = @transform_0, window_bounds = array<i64: 1, 8, 32>}, {pipeline_mode = #tpu.pipeline_mode<synchronous>, transform_indices = @transform_1, window_bounds = array<i64: 32, 96>}, {pipeline_mode = #tpu.pipeline_mode<synchronous>, transform_indices = @transform_2, window_bounds = array<i64: 1, 96>}, {pipeline_mode = #tpu.pipeline_mode<synchronous>, transform_indices = @transform_3, window_bounds = array<i64: 32, 32>}, {pipeline_mode = #tpu.pipeline_mode<synchronous>, transform_indices = @transform_4, window_bounds = array<i64: 1, 32>}, {pipeline_mode = #tpu.pipeline_mode<synchronous>, transform_indices = @transform_5, window_bounds = array<i64: 1, 8, 8>}, {transform_indices = @transform_6, window_bounds = array<i64: 1, 1, 8>}, {pipeline_mode = #tpu.pipeline_mode<synchronous>, transform_indices = @transform_7, window_bounds = array<i64: 1, 32>}, {pipeline_mode = #tpu.pipeline_mode<synchronous>, transform_indices = @transform_8, window_bounds = array<i64: 1, 32>}, {transform_indices = @transform_9, window_bounds = array<i64: 1, 8, 32>}]} {
    %c0 = arith.constant 0 : index
    %c0_0 = arith.constant 0 : index
    %c0_1 = arith.constant 0 : index
    %0 = vector.load %arg1[%c0, %c0_0, %c0_1] : memref<1x8x32xbf16, #tpu.memory_space<vmem>>, vector<1x8x32xbf16>
    %1 = vector.shape_cast %0 : vector<1x8x32xbf16> to vector<8x32xbf16>
    %c0_2 = arith.constant 0 : index
    %c0_3 = arith.constant 0 : index
    %2 = vector.load %arg2[%c0_2, %c0_3] : memref<32x96xbf16, #tpu.memory_space<vmem>>, vector<32x96xbf16>
    %cst = arith.constant dense<0.000000e+00> : vector<8x96xf32>
    %3 = tpu.matmul %1, %2, %cst {dimension_numbers = #tpu.dot_dimension_numbers<[1], [0], [0], [1], [0, 0, 1, 1], [], []>} : vector<8x32xbf16>, vector<32x96xbf16>, vector<8x96xf32> -> vector<8x96xf32>
    %c0_4 = arith.constant 0 : index
    %c0_5 = arith.constant 0 : index
    %4 = vector.load %arg3[%c0_4, %c0_5] : memref<1x96xf32, #tpu.memory_space<vmem>>, vector<1x96xf32>
    %5 = vector.broadcast %4 : vector<1x96xf32> to vector<8x96xf32>
    %6 = arith.addf %3, %5 : vector<8x96xf32>
    %7 = arith.truncf %6 : vector<8x96xf32> to vector<8x96xbf16>
    %c0_6 = arith.constant 0 : index
    %c0_7 = arith.constant 0 : index
    %c0_8 = arith.constant 0 : index
    %8 = vector.load %arg6[%c0_6, %c0_7, %c0_8] : memref<1x8x8xf32, #tpu.memory_space<vmem>>, vector<1x8x8xf32>
    %9 = vector.shape_cast %8 : vector<1x8x8xf32> to vector<8x8xf32>
    %c0_9 = arith.constant 0 : index
    %c0_10 = arith.constant 0 : index
    %c0_11 = arith.constant 0 : index
    %10 = vector.load %arg7[%c0_9, %c0_10, %c0_11] : memref<1x1x8xf32, #tpu.memory_space<vmem>>, vector<1x1x8xf32>
    %11 = vector.shape_cast %10 : vector<1x1x8xf32> to vector<1x8xf32>
    %12 = vector.broadcast %11 : vector<1x8xf32> to vector<8x8xf32>
    %13 = arith.addf %9, %12 : vector<8x8xf32>
    %14 = vector.extract_strided_slice %7 {offsets = [0, 0], sizes = [8, 8], strides = [1, 1]} : vector<8x96xbf16> to vector<8x8xbf16>
    %15 = vector.extract_strided_slice %7 {offsets = [0, 32], sizes = [8, 8], strides = [1, 1]} : vector<8x96xbf16> to vector<8x8xbf16>
    %16 = vector.extract_strided_slice %7 {offsets = [0, 64], sizes = [8, 8], strides = [1, 1]} : vector<8x96xbf16> to vector<8x8xbf16>
    %cst_12 = arith.constant dense<0.000000e+00> : vector<8x8xf32>
    %17 = tpu.matmul %14, %15, %cst_12 {dimension_numbers = #tpu.dot_dimension_numbers<[1], [1], [0], [0], [0, 0, 1, 0], [], []>} : vector<8x8xbf16>, vector<8x8xbf16>, vector<8x8xf32> -> vector<8x8xf32>
    %cst_13 = arith.constant 0.353553385 : f32
    %18 = vector.broadcast %cst_13 : f32 to vector<8x8xf32>
    %19 = arith.mulf %17, %18 : vector<8x8xf32>
    %20 = arith.addf %19, %13 : vector<8x8xf32>
    %cst_14 = arith.constant dense<0xFF800000> : vector<8xf32>
    %21 = vector.multi_reduction <maximumf>, %20, %cst_14 [1] : vector<8x8xf32> to vector<8xf32>
    %22 = vector.shape_cast %21 : vector<8xf32> to vector<8x1xf32>
    %23 = vector.broadcast %22 : vector<8x1xf32> to vector<8x8xf32>
    %24 = arith.subf %20, %23 : vector<8x8xf32>
    %25 = math.exp %24 : vector<8x8xf32>
    %cst_15 = arith.constant dense<0.000000e+00> : vector<8xf32>
    %26 = vector.multi_reduction <add>, %25, %cst_15 [1] : vector<8x8xf32> to vector<8xf32>
    %27 = vector.shape_cast %26 : vector<8xf32> to vector<8x1xf32>
    %28 = tpu.reciprocal %27 {approx = true} : vector<8x1xf32> -> vector<8x1xf32>
    %29 = vector.broadcast %28 : vector<8x1xf32> to vector<8x8xf32>
    %30 = arith.mulf %25, %29 : vector<8x8xf32>
    %31 = arith.truncf %30 : vector<8x8xf32> to vector<8x8xbf16>
    %cst_16 = arith.constant dense<0.000000e+00> : vector<8x8xf32>
    %32 = tpu.matmul %31, %16, %cst_16 {dimension_numbers = #tpu.dot_dimension_numbers<[1], [0], [0], [1], [0, 0, 1, 1], [], []>} : vector<8x8xbf16>, vector<8x8xbf16>, vector<8x8xf32> -> vector<8x8xf32>
    %33 = vector.extract_strided_slice %7 {offsets = [0, 8], sizes = [8, 8], strides = [1, 1]} : vector<8x96xbf16> to vector<8x8xbf16>
    %34 = vector.extract_strided_slice %7 {offsets = [0, 40], sizes = [8, 8], strides = [1, 1]} : vector<8x96xbf16> to vector<8x8xbf16>
    %35 = vector.extract_strided_slice %7 {offsets = [0, 72], sizes = [8, 8], strides = [1, 1]} : vector<8x96xbf16> to vector<8x8xbf16>
    %cst_17 = arith.constant dense<0.000000e+00> : vector<8x8xf32>
    %36 = tpu.matmul %33, %34, %cst_17 {dimension_numbers = #tpu.dot_dimension_numbers<[1], [1], [0], [0], [0, 0, 1, 0], [], []>} : vector<8x8xbf16>, vector<8x8xbf16>, vector<8x8xf32> -> vector<8x8xf32>
    %cst_18 = arith.constant 0.353553385 : f32
    %37 = vector.broadcast %cst_18 : f32 to vector<8x8xf32>
    %38 = arith.mulf %36, %37 : vector<8x8xf32>
    %39 = arith.addf %38, %13 : vector<8x8xf32>
    %cst_19 = arith.constant dense<0xFF800000> : vector<8xf32>
    %40 = vector.multi_reduction <maximumf>, %39, %cst_19 [1] : vector<8x8xf32> to vector<8xf32>
    %41 = vector.shape_cast %40 : vector<8xf32> to vector<8x1xf32>
    %42 = vector.broadcast %41 : vector<8x1xf32> to vector<8x8xf32>
    %43 = arith.subf %39, %42 : vector<8x8xf32>
    %44 = math.exp %43 : vector<8x8xf32>
    %cst_20 = arith.constant dense<0.000000e+00> : vector<8xf32>
    %45 = vector.multi_reduction <add>, %44, %cst_20 [1] : vector<8x8xf32> to vector<8xf32>
    %46 = vector.shape_cast %45 : vector<8xf32> to vector<8x1xf32>
    %47 = tpu.reciprocal %46 {approx = true} : vector<8x1xf32> -> vector<8x1xf32>
    %48 = vector.broadcast %47 : vector<8x1xf32> to vector<8x8xf32>
    %49 = arith.mulf %44, %48 : vector<8x8xf32>
    %50 = arith.truncf %49 : vector<8x8xf32> to vector<8x8xbf16>
    %cst_21 = arith.constant dense<0.000000e+00> : vector<8x8xf32>
    %51 = tpu.matmul %50, %35, %cst_21 {dimension_numbers = #tpu.dot_dimension_numbers<[1], [0], [0], [1], [0, 0, 1, 1], [], []>} : vector<8x8xbf16>, vector<8x8xbf16>, vector<8x8xf32> -> vector<8x8xf32>
    %52 = vector.extract_strided_slice %7 {offsets = [0, 16], sizes = [8, 8], strides = [1, 1]} : vector<8x96xbf16> to vector<8x8xbf16>
    %53 = vector.extract_strided_slice %7 {offsets = [0, 48], sizes = [8, 8], strides = [1, 1]} : vector<8x96xbf16> to vector<8x8xbf16>
    %54 = vector.extract_strided_slice %7 {offsets = [0, 80], sizes = [8, 8], strides = [1, 1]} : vector<8x96xbf16> to vector<8x8xbf16>
    %cst_22 = arith.constant dense<0.000000e+00> : vector<8x8xf32>
    %55 = tpu.matmul %52, %53, %cst_22 {dimension_numbers = #tpu.dot_dimension_numbers<[1], [1], [0], [0], [0, 0, 1, 0], [], []>} : vector<8x8xbf16>, vector<8x8xbf16>, vector<8x8xf32> -> vector<8x8xf32>
    %cst_23 = arith.constant 0.353553385 : f32
    %56 = vector.broadcast %cst_23 : f32 to vector<8x8xf32>
    %57 = arith.mulf %55, %56 : vector<8x8xf32>
    %58 = arith.addf %57, %13 : vector<8x8xf32>
    %cst_24 = arith.constant dense<0xFF800000> : vector<8xf32>
    %59 = vector.multi_reduction <maximumf>, %58, %cst_24 [1] : vector<8x8xf32> to vector<8xf32>
    %60 = vector.shape_cast %59 : vector<8xf32> to vector<8x1xf32>
    %61 = vector.broadcast %60 : vector<8x1xf32> to vector<8x8xf32>
    %62 = arith.subf %58, %61 : vector<8x8xf32>
    %63 = math.exp %62 : vector<8x8xf32>
    %cst_25 = arith.constant dense<0.000000e+00> : vector<8xf32>
    %64 = vector.multi_reduction <add>, %63, %cst_25 [1] : vector<8x8xf32> to vector<8xf32>
    %65 = vector.shape_cast %64 : vector<8xf32> to vector<8x1xf32>
    %66 = tpu.reciprocal %65 {approx = true} : vector<8x1xf32> -> vector<8x1xf32>
    %67 = vector.broadcast %66 : vector<8x1xf32> to vector<8x8xf32>
    %68 = arith.mulf %63, %67 : vector<8x8xf32>
    %69 = arith.truncf %68 : vector<8x8xf32> to vector<8x8xbf16>
    %cst_26 = arith.constant dense<0.000000e+00> : vector<8x8xf32>
    %70 = tpu.matmul %69, %54, %cst_26 {dimension_numbers = #tpu.dot_dimension_numbers<[1], [0], [0], [1], [0, 0, 1, 1], [], []>} : vector<8x8xbf16>, vector<8x8xbf16>, vector<8x8xf32> -> vector<8x8xf32>
    %71 = vector.extract_strided_slice %7 {offsets = [0, 24], sizes = [8, 8], strides = [1, 1]} : vector<8x96xbf16> to vector<8x8xbf16>
    %72 = vector.extract_strided_slice %7 {offsets = [0, 56], sizes = [8, 8], strides = [1, 1]} : vector<8x96xbf16> to vector<8x8xbf16>
    %73 = vector.extract_strided_slice %7 {offsets = [0, 88], sizes = [8, 8], strides = [1, 1]} : vector<8x96xbf16> to vector<8x8xbf16>
    %cst_27 = arith.constant dense<0.000000e+00> : vector<8x8xf32>
    %74 = tpu.matmul %71, %72, %cst_27 {dimension_numbers = #tpu.dot_dimension_numbers<[1], [1], [0], [0], [0, 0, 1, 0], [], []>} : vector<8x8xbf16>, vector<8x8xbf16>, vector<8x8xf32> -> vector<8x8xf32>
    %cst_28 = arith.constant 0.353553385 : f32
    %75 = vector.broadcast %cst_28 : f32 to vector<8x8xf32>
    %76 = arith.mulf %74, %75 : vector<8x8xf32>
    %77 = arith.addf %76, %13 : vector<8x8xf32>
    %cst_29 = arith.constant dense<0xFF800000> : vector<8xf32>
    %78 = vector.multi_reduction <maximumf>, %77, %cst_29 [1] : vector<8x8xf32> to vector<8xf32>
    %79 = vector.shape_cast %78 : vector<8xf32> to vector<8x1xf32>
    %80 = vector.broadcast %79 : vector<8x1xf32> to vector<8x8xf32>
    %81 = arith.subf %77, %80 : vector<8x8xf32>
    %82 = math.exp %81 : vector<8x8xf32>
    %cst_30 = arith.constant dense<0.000000e+00> : vector<8xf32>
    %83 = vector.multi_reduction <add>, %82, %cst_30 [1] : vector<8x8xf32> to vector<8xf32>
    %84 = vector.shape_cast %83 : vector<8xf32> to vector<8x1xf32>
    %85 = tpu.reciprocal %84 {approx = true} : vector<8x1xf32> -> vector<8x1xf32>
    %86 = vector.broadcast %85 : vector<8x1xf32> to vector<8x8xf32>
    %87 = arith.mulf %82, %86 : vector<8x8xf32>
    %88 = arith.truncf %87 : vector<8x8xf32> to vector<8x8xbf16>
    %cst_31 = arith.constant dense<0.000000e+00> : vector<8x8xf32>
    %89 = tpu.matmul %88, %73, %cst_31 {dimension_numbers = #tpu.dot_dimension_numbers<[1], [0], [0], [1], [0, 0, 1, 1], [], []>} : vector<8x8xbf16>, vector<8x8xbf16>, vector<8x8xf32> -> vector<8x8xf32>
    %90 = tpu.concatenate %32, %51, %70, %89 in 1 : vector<8x8xf32>, vector<8x8xf32>, vector<8x8xf32>, vector<8x8xf32> -> vector<8x32xf32>
    %91 = arith.truncf %90 : vector<8x32xf32> to vector<8x32xbf16>
    %c0_32 = arith.constant 0 : index
    %c0_33 = arith.constant 0 : index
    %92 = vector.load %arg4[%c0_32, %c0_33] : memref<32x32xbf16, #tpu.memory_space<vmem>>, vector<32x32xbf16>
    %cst_34 = arith.constant dense<0.000000e+00> : vector<8x32xf32>
    %93 = tpu.matmul %91, %92, %cst_34 {dimension_numbers = #tpu.dot_dimension_numbers<[1], [0], [0], [1], [0, 0, 1, 1], [], []>} : vector<8x32xbf16>, vector<32x32xbf16>, vector<8x32xf32> -> vector<8x32xf32>
    %c0_35 = arith.constant 0 : index
    %c0_36 = arith.constant 0 : index
    %94 = vector.load %arg5[%c0_35, %c0_36] : memref<1x32xf32, #tpu.memory_space<vmem>>, vector<1x32xf32>
    %95 = vector.broadcast %94 : vector<1x32xf32> to vector<8x32xf32>
    %96 = arith.addf %93, %95 : vector<8x32xf32>
    %97 = arith.extf %1 : vector<8x32xbf16> to vector<8x32xf32>
    %98 = arith.addf %97, %96 : vector<8x32xf32>
    %cst_37 = arith.constant dense<0.000000e+00> : vector<8xf32>
    %99 = vector.multi_reduction <add>, %98, %cst_37 [1] : vector<8x32xf32> to vector<8xf32>
    %100 = vector.shape_cast %99 : vector<8xf32> to vector<8x1xf32>
    %cst_38 = arith.constant 3.200000e+01 : f32
    %101 = vector.broadcast %cst_38 : f32 to vector<8x1xf32>
    %102 = arith.divf %100, %101 : vector<8x1xf32>
    %103 = vector.broadcast %102 : vector<8x1xf32> to vector<8x32xf32>
    %104 = arith.subf %98, %103 : vector<8x32xf32>
    %105 = arith.mulf %104, %104 : vector<8x32xf32>
    %cst_39 = arith.constant dense<0.000000e+00> : vector<8xf32>
    %106 = vector.multi_reduction <add>, %105, %cst_39 [1] : vector<8x32xf32> to vector<8xf32>
    %107 = vector.shape_cast %106 : vector<8xf32> to vector<8x1xf32>
    %cst_40 = arith.constant 3.200000e+01 : f32
    %108 = vector.broadcast %cst_40 : f32 to vector<8x1xf32>
    %109 = arith.divf %107, %108 : vector<8x1xf32>
    %110 = vector.broadcast %102 : vector<8x1xf32> to vector<8x32xf32>
    %111 = arith.subf %98, %110 : vector<8x32xf32>
    %cst_41 = arith.constant 9.99999974E-6 : f32
    %112 = vector.broadcast %cst_41 : f32 to vector<8x1xf32>
    %113 = arith.addf %109, %112 : vector<8x1xf32>
    %114 = math.rsqrt %113 : vector<8x1xf32>
    %115 = vector.broadcast %114 : vector<8x1xf32> to vector<8x32xf32>
    %116 = arith.mulf %111, %115 : vector<8x32xf32>
    %c0_42 = arith.constant 0 : index
    %c0_43 = arith.constant 0 : index
    %117 = vector.load %arg8[%c0_42, %c0_43] : memref<1x32xf32, #tpu.memory_space<vmem>>, vector<1x32xf32>
    %118 = vector.broadcast %117 : vector<1x32xf32> to vector<8x32xf32>
    %119 = arith.mulf %116, %118 : vector<8x32xf32>
    %c0_44 = arith.constant 0 : index
    %c0_45 = arith.constant 0 : index
    %120 = vector.load %arg9[%c0_44, %c0_45] : memref<1x32xf32, #tpu.memory_space<vmem>>, vector<1x32xf32>
    %121 = vector.broadcast %120 : vector<1x32xf32> to vector<8x32xf32>
    %122 = arith.addf %119, %121 : vector<8x32xf32>
    %123 = arith.truncf %122 : vector<8x32xf32> to vector<8x32xbf16>
    %c0_46 = arith.constant 0 : index
    %c0_47 = arith.constant 0 : index
    %c0_48 = arith.constant 0 : index
    %124 = vector.load %arg10[%c0_46, %c0_47, %c0_48] : memref<1x8x32xbf16, #tpu.memory_space<vmem>>, vector<1x8x32xbf16>
    %125 = vector.shape_cast %124 : vector<1x8x32xbf16> to vector<8x32xbf16>
    %126 = vector.shape_cast %123 : vector<8x32xbf16> to vector<1x8x32xbf16>
    tpu.vector_store %arg10[%c0_46, %c0_47, %c0_48], %126 {strides = array<i32>} : memref<1x8x32xbf16, #tpu.memory_space<vmem>>, vector<1x8x32xbf16>,
    return
  }
  func.func @transform_0(%arg0: i32) -> (i32, i32, i32) {
    %c0_i32 = arith.constant 0 : i32
    %c0_i32_0 = arith.constant 0 : i32
    %c0_i32_1 = arith.constant 0 : i32
    return %arg0, %c0_i32, %c0_i32_0 : i32, i32, i32
  }
  func.func @transform_1(%arg0: i32) -> (i32, i32) {
    %c0_i32 = arith.constant 0 : i32
    %c0_i32_0 = arith.constant 0 : i32
    %c0_i32_1 = arith.constant 0 : i32
    return %c0_i32, %c0_i32_0 : i32, i32
  }
  func.func @transform_2(%arg0: i32) -> (i32, i32) {
    %c0_i32 = arith.constant 0 : i32
    %c0_i32_0 = arith.constant 0 : i32
    %c0_i32_1 = arith.constant 0 : i32
    return %c0_i32, %c0_i32_0 : i32, i32
  }
  func.func @transform_3(%arg0: i32) -> (i32, i32) {
    %c0_i32 = arith.constant 0 : i32
    %c0_i32_0 = arith.constant 0 : i32
    %c0_i32_1 = arith.constant 0 : i32
    return %c0_i32, %c0_i32_0 : i32, i32
  }
  func.func @transform_4(%arg0: i32) -> (i32, i32) {
    %c0_i32 = arith.constant 0 : i32
    %c0_i32_0 = arith.constant 0 : i32
    %c0_i32_1 = arith.constant 0 : i32
    return %c0_i32, %c0_i32_0 : i32, i32
  }
  func.func @transform_5(%arg0: i32) -> (i32, i32, i32) {
    %c0_i32 = arith.constant 0 : i32
    %c0_i32_0 = arith.constant 0 : i32
    %c0_i32_1 = arith.constant 0 : i32
    %c0_i32_2 = arith.constant 0 : i32
    return %c0_i32, %c0_i32_0, %c0_i32_1 : i32, i32, i32
  }
  func.func @transform_6(%arg0: i32) -> (i32, i32, i32) {
    %c0_i32 = arith.constant 0 : i32
    %c0_i32_0 = arith.constant 0 : i32
    %c0_i32_1 = arith.constant 0 : i32
    return %arg0, %c0_i32, %c0_i32_0 : i32, i32, i32
  }
  func.func @transform_7(%arg0: i32) -> (i32, i32) {
    %c0_i32 = arith.constant 0 : i32
    %c0_i32_0 = arith.constant 0 : i32
    %c0_i32_1 = arith.constant 0 : i32
    return %c0_i32, %c0_i32_0 : i32, i32
  }
  func.func @transform_8(%arg0: i32) -> (i32, i32) {
    %c0_i32 = arith.constant 0 : i32
    %c0_i32_0 = arith.constant 0 : i32
    %c0_i32_1 = arith.constant 0 : i32
    return %c0_i32, %c0_i32_0 : i32, i32
  }
  func.func @transform_9(%arg0: i32) -> (i32, i32, i32) {
    %c0_i32 = arith.constant 0 : i32
    %c0_i32_0 = arith.constant 0 : i32
    %c0_i32_1 = arith.constant 0 : i32
    return %arg0, %c0_i32, %c0_i32_0 : i32, i32, i32
  }
}

module attributes {stable_mosaic.version = 11 : i64} {
  func.func @_cross_attn_kernel(%arg0: i32, %arg1: memref<1x8x32xbf16, #tpu.memory_space<vmem>>, %arg2: memref<1x8x32xbf16, #tpu.memory_space<vmem>>, %arg3: memref<32x32xbf16, #tpu.memory_space<vmem>>, %arg4: memref<1x32xf32, #tpu.memory_space<vmem>>, %arg5: memref<32x64xbf16, #tpu.memory_space<vmem>>, %arg6: memref<1x64xf32, #tpu.memory_space<vmem>>, %arg7: memref<32x32xbf16, #tpu.memory_space<vmem>>, %arg8: memref<1x32xf32, #tpu.memory_space<vmem>>, %arg9: memref<1x32xf32, #tpu.memory_space<vmem>>, %arg10: memref<1x32xf32, #tpu.memory_space<vmem>>, %arg11: memref<1x8x32xbf16, #tpu.memory_space<vmem>>) attributes {dimension_semantics = [#tpu.dimension_semantics<parallel>], iteration_bounds = array<i64: 2>, scalar_prefetch = 0 : i64, scratch_operands = 0 : i64, tpu.core_type = #tpu.core_type<tc>, window_params = [{transform_indices = @transform_0, window_bounds = array<i64: 1, 8, 32>}, {transform_indices = @transform_1, window_bounds = array<i64: 1, 8, 32>}, {pipeline_mode = #tpu.pipeline_mode<synchronous>, transform_indices = @transform_2, window_bounds = array<i64: 32, 32>}, {pipeline_mode = #tpu.pipeline_mode<synchronous>, transform_indices = @transform_3, window_bounds = array<i64: 1, 32>}, {pipeline_mode = #tpu.pipeline_mode<synchronous>, transform_indices = @transform_4, window_bounds = array<i64: 32, 64>}, {pipeline_mode = #tpu.pipeline_mode<synchronous>, transform_indices = @transform_5, window_bounds = array<i64: 1, 64>}, {pipeline_mode = #tpu.pipeline_mode<synchronous>, transform_indices = @transform_6, window_bounds = array<i64: 32, 32>}, {pipeline_mode = #tpu.pipeline_mode<synchronous>, transform_indices = @transform_7, window_bounds = array<i64: 1, 32>}, {pipeline_mode = #tpu.pipeline_mode<synchronous>, transform_indices = @transform_8, window_bounds = array<i64: 1, 32>}, {pipeline_mode = #tpu.pipeline_mode<synchronous>, transform_indices = @transform_9, window_bounds = array<i64: 1, 32>}, {transform_indices = @transform_10, window_bounds = array<i64: 1, 8, 32>}]} {
    %c0 = arith.constant 0 : index
    %c0_0 = arith.constant 0 : index
    %c0_1 = arith.constant 0 : index
    %0 = vector.load %arg1[%c0, %c0_0, %c0_1] : memref<1x8x32xbf16, #tpu.memory_space<vmem>>, vector<1x8x32xbf16>
    %1 = vector.shape_cast %0 : vector<1x8x32xbf16> to vector<8x32xbf16>
    %c0_2 = arith.constant 0 : index
    %c0_3 = arith.constant 0 : index
    %c0_4 = arith.constant 0 : index
    %2 = vector.load %arg2[%c0_2, %c0_3, %c0_4] : memref<1x8x32xbf16, #tpu.memory_space<vmem>>, vector<1x8x32xbf16>
    %3 = vector.shape_cast %2 : vector<1x8x32xbf16> to vector<8x32xbf16>
    %c0_5 = arith.constant 0 : index
    %c0_6 = arith.constant 0 : index
    %4 = vector.load %arg3[%c0_5, %c0_6] : memref<32x32xbf16, #tpu.memory_space<vmem>>, vector<32x32xbf16>
    %cst = arith.constant dense<0.000000e+00> : vector<8x32xf32>
    %5 = tpu.matmul %1, %4, %cst {dimension_numbers = #tpu.dot_dimension_numbers<[1], [0], [0], [1], [0, 0, 1, 1], [], []>} : vector<8x32xbf16>, vector<32x32xbf16>, vector<8x32xf32> -> vector<8x32xf32>
    %c0_7 = arith.constant 0 : index
    %c0_8 = arith.constant 0 : index
    %6 = vector.load %arg4[%c0_7, %c0_8] : memref<1x32xf32, #tpu.memory_space<vmem>>, vector<1x32xf32>
    %7 = vector.broadcast %6 : vector<1x32xf32> to vector<8x32xf32>
    %8 = arith.addf %5, %7 : vector<8x32xf32>
    %9 = arith.truncf %8 : vector<8x32xf32> to vector<8x32xbf16>
    %c0_9 = arith.constant 0 : index
    %c0_10 = arith.constant 0 : index
    %10 = vector.load %arg5[%c0_9, %c0_10] : memref<32x64xbf16, #tpu.memory_space<vmem>>, vector<32x64xbf16>
    %cst_11 = arith.constant dense<0.000000e+00> : vector<8x64xf32>
    %11 = tpu.matmul %3, %10, %cst_11 {dimension_numbers = #tpu.dot_dimension_numbers<[1], [0], [0], [1], [0, 0, 1, 1], [], []>} : vector<8x32xbf16>, vector<32x64xbf16>, vector<8x64xf32> -> vector<8x64xf32>
    %c0_12 = arith.constant 0 : index
    %c0_13 = arith.constant 0 : index
    %12 = vector.load %arg6[%c0_12, %c0_13] : memref<1x64xf32, #tpu.memory_space<vmem>>, vector<1x64xf32>
    %13 = vector.broadcast %12 : vector<1x64xf32> to vector<8x64xf32>
    %14 = arith.addf %11, %13 : vector<8x64xf32>
    %15 = arith.truncf %14 : vector<8x64xf32> to vector<8x64xbf16>
    %16 = vector.extract_strided_slice %9 {offsets = [0, 0], sizes = [8, 8], strides = [1, 1]} : vector<8x32xbf16> to vector<8x8xbf16>
    %17 = vector.extract_strided_slice %15 {offsets = [0, 0], sizes = [8, 8], strides = [1, 1]} : vector<8x64xbf16> to vector<8x8xbf16>
    %18 = vector.extract_strided_slice %15 {offsets = [0, 32], sizes = [8, 8], strides = [1, 1]} : vector<8x64xbf16> to vector<8x8xbf16>
    %cst_14 = arith.constant dense<0.000000e+00> : vector<8x8xf32>
    %19 = tpu.matmul %16, %17, %cst_14 {dimension_numbers = #tpu.dot_dimension_numbers<[1], [1], [0], [0], [0, 0, 1, 0], [], []>} : vector<8x8xbf16>, vector<8x8xbf16>, vector<8x8xf32> -> vector<8x8xf32>
    %cst_15 = arith.constant 0.353553385 : f32
    %20 = vector.broadcast %cst_15 : f32 to vector<8x8xf32>
    %21 = arith.mulf %19, %20 : vector<8x8xf32>
    %cst_16 = arith.constant dense<0xFF800000> : vector<8xf32>
    %22 = vector.multi_reduction <maximumf>, %21, %cst_16 [1] : vector<8x8xf32> to vector<8xf32>
    %23 = vector.shape_cast %22 : vector<8xf32> to vector<8x1xf32>
    %24 = vector.broadcast %23 : vector<8x1xf32> to vector<8x8xf32>
    %25 = arith.subf %21, %24 : vector<8x8xf32>
    %26 = math.exp %25 : vector<8x8xf32>
    %cst_17 = arith.constant dense<0.000000e+00> : vector<8xf32>
    %27 = vector.multi_reduction <add>, %26, %cst_17 [1] : vector<8x8xf32> to vector<8xf32>
    %28 = vector.shape_cast %27 : vector<8xf32> to vector<8x1xf32>
    %29 = tpu.reciprocal %28 {approx = true} : vector<8x1xf32> -> vector<8x1xf32>
    %30 = vector.broadcast %29 : vector<8x1xf32> to vector<8x8xf32>
    %31 = arith.mulf %26, %30 : vector<8x8xf32>
    %32 = arith.truncf %31 : vector<8x8xf32> to vector<8x8xbf16>
    %cst_18 = arith.constant dense<0.000000e+00> : vector<8x8xf32>
    %33 = tpu.matmul %32, %18, %cst_18 {dimension_numbers = #tpu.dot_dimension_numbers<[1], [0], [0], [1], [0, 0, 1, 1], [], []>} : vector<8x8xbf16>, vector<8x8xbf16>, vector<8x8xf32> -> vector<8x8xf32>
    %34 = vector.extract_strided_slice %9 {offsets = [0, 8], sizes = [8, 8], strides = [1, 1]} : vector<8x32xbf16> to vector<8x8xbf16>
    %35 = vector.extract_strided_slice %15 {offsets = [0, 8], sizes = [8, 8], strides = [1, 1]} : vector<8x64xbf16> to vector<8x8xbf16>
    %36 = vector.extract_strided_slice %15 {offsets = [0, 40], sizes = [8, 8], strides = [1, 1]} : vector<8x64xbf16> to vector<8x8xbf16>
    %cst_19 = arith.constant dense<0.000000e+00> : vector<8x8xf32>
    %37 = tpu.matmul %34, %35, %cst_19 {dimension_numbers = #tpu.dot_dimension_numbers<[1], [1], [0], [0], [0, 0, 1, 0], [], []>} : vector<8x8xbf16>, vector<8x8xbf16>, vector<8x8xf32> -> vector<8x8xf32>
    %cst_20 = arith.constant 0.353553385 : f32
    %38 = vector.broadcast %cst_20 : f32 to vector<8x8xf32>
    %39 = arith.mulf %37, %38 : vector<8x8xf32>
    %cst_21 = arith.constant dense<0xFF800000> : vector<8xf32>
    %40 = vector.multi_reduction <maximumf>, %39, %cst_21 [1] : vector<8x8xf32> to vector<8xf32>
    %41 = vector.shape_cast %40 : vector<8xf32> to vector<8x1xf32>
    %42 = vector.broadcast %41 : vector<8x1xf32> to vector<8x8xf32>
    %43 = arith.subf %39, %42 : vector<8x8xf32>
    %44 = math.exp %43 : vector<8x8xf32>
    %cst_22 = arith.constant dense<0.000000e+00> : vector<8xf32>
    %45 = vector.multi_reduction <add>, %44, %cst_22 [1] : vector<8x8xf32> to vector<8xf32>
    %46 = vector.shape_cast %45 : vector<8xf32> to vector<8x1xf32>
    %47 = tpu.reciprocal %46 {approx = true} : vector<8x1xf32> -> vector<8x1xf32>
    %48 = vector.broadcast %47 : vector<8x1xf32> to vector<8x8xf32>
    %49 = arith.mulf %44, %48 : vector<8x8xf32>
    %50 = arith.truncf %49 : vector<8x8xf32> to vector<8x8xbf16>
    %cst_23 = arith.constant dense<0.000000e+00> : vector<8x8xf32>
    %51 = tpu.matmul %50, %36, %cst_23 {dimension_numbers = #tpu.dot_dimension_numbers<[1], [0], [0], [1], [0, 0, 1, 1], [], []>} : vector<8x8xbf16>, vector<8x8xbf16>, vector<8x8xf32> -> vector<8x8xf32>
    %52 = vector.extract_strided_slice %9 {offsets = [0, 16], sizes = [8, 8], strides = [1, 1]} : vector<8x32xbf16> to vector<8x8xbf16>
    %53 = vector.extract_strided_slice %15 {offsets = [0, 16], sizes = [8, 8], strides = [1, 1]} : vector<8x64xbf16> to vector<8x8xbf16>
    %54 = vector.extract_strided_slice %15 {offsets = [0, 48], sizes = [8, 8], strides = [1, 1]} : vector<8x64xbf16> to vector<8x8xbf16>
    %cst_24 = arith.constant dense<0.000000e+00> : vector<8x8xf32>
    %55 = tpu.matmul %52, %53, %cst_24 {dimension_numbers = #tpu.dot_dimension_numbers<[1], [1], [0], [0], [0, 0, 1, 0], [], []>} : vector<8x8xbf16>, vector<8x8xbf16>, vector<8x8xf32> -> vector<8x8xf32>
    %cst_25 = arith.constant 0.353553385 : f32
    %56 = vector.broadcast %cst_25 : f32 to vector<8x8xf32>
    %57 = arith.mulf %55, %56 : vector<8x8xf32>
    %cst_26 = arith.constant dense<0xFF800000> : vector<8xf32>
    %58 = vector.multi_reduction <maximumf>, %57, %cst_26 [1] : vector<8x8xf32> to vector<8xf32>
    %59 = vector.shape_cast %58 : vector<8xf32> to vector<8x1xf32>
    %60 = vector.broadcast %59 : vector<8x1xf32> to vector<8x8xf32>
    %61 = arith.subf %57, %60 : vector<8x8xf32>
    %62 = math.exp %61 : vector<8x8xf32>
    %cst_27 = arith.constant dense<0.000000e+00> : vector<8xf32>
    %63 = vector.multi_reduction <add>, %62, %cst_27 [1] : vector<8x8xf32> to vector<8xf32>
    %64 = vector.shape_cast %63 : vector<8xf32> to vector<8x1xf32>
    %65 = tpu.reciprocal %64 {approx = true} : vector<8x1xf32> -> vector<8x1xf32>
    %66 = vector.broadcast %65 : vector<8x1xf32> to vector<8x8xf32>
    %67 = arith.mulf %62, %66 : vector<8x8xf32>
    %68 = arith.truncf %67 : vector<8x8xf32> to vector<8x8xbf16>
    %cst_28 = arith.constant dense<0.000000e+00> : vector<8x8xf32>
    %69 = tpu.matmul %68, %54, %cst_28 {dimension_numbers = #tpu.dot_dimension_numbers<[1], [0], [0], [1], [0, 0, 1, 1], [], []>} : vector<8x8xbf16>, vector<8x8xbf16>, vector<8x8xf32> -> vector<8x8xf32>
    %70 = vector.extract_strided_slice %9 {offsets = [0, 24], sizes = [8, 8], strides = [1, 1]} : vector<8x32xbf16> to vector<8x8xbf16>
    %71 = vector.extract_strided_slice %15 {offsets = [0, 24], sizes = [8, 8], strides = [1, 1]} : vector<8x64xbf16> to vector<8x8xbf16>
    %72 = vector.extract_strided_slice %15 {offsets = [0, 56], sizes = [8, 8], strides = [1, 1]} : vector<8x64xbf16> to vector<8x8xbf16>
    %cst_29 = arith.constant dense<0.000000e+00> : vector<8x8xf32>
    %73 = tpu.matmul %70, %71, %cst_29 {dimension_numbers = #tpu.dot_dimension_numbers<[1], [1], [0], [0], [0, 0, 1, 0], [], []>} : vector<8x8xbf16>, vector<8x8xbf16>, vector<8x8xf32> -> vector<8x8xf32>
    %cst_30 = arith.constant 0.353553385 : f32
    %74 = vector.broadcast %cst_30 : f32 to vector<8x8xf32>
    %75 = arith.mulf %73, %74 : vector<8x8xf32>
    %cst_31 = arith.constant dense<0xFF800000> : vector<8xf32>
    %76 = vector.multi_reduction <maximumf>, %75, %cst_31 [1] : vector<8x8xf32> to vector<8xf32>
    %77 = vector.shape_cast %76 : vector<8xf32> to vector<8x1xf32>
    %78 = vector.broadcast %77 : vector<8x1xf32> to vector<8x8xf32>
    %79 = arith.subf %75, %78 : vector<8x8xf32>
    %80 = math.exp %79 : vector<8x8xf32>
    %cst_32 = arith.constant dense<0.000000e+00> : vector<8xf32>
    %81 = vector.multi_reduction <add>, %80, %cst_32 [1] : vector<8x8xf32> to vector<8xf32>
    %82 = vector.shape_cast %81 : vector<8xf32> to vector<8x1xf32>
    %83 = tpu.reciprocal %82 {approx = true} : vector<8x1xf32> -> vector<8x1xf32>
    %84 = vector.broadcast %83 : vector<8x1xf32> to vector<8x8xf32>
    %85 = arith.mulf %80, %84 : vector<8x8xf32>
    %86 = arith.truncf %85 : vector<8x8xf32> to vector<8x8xbf16>
    %cst_33 = arith.constant dense<0.000000e+00> : vector<8x8xf32>
    %87 = tpu.matmul %86, %72, %cst_33 {dimension_numbers = #tpu.dot_dimension_numbers<[1], [0], [0], [1], [0, 0, 1, 1], [], []>} : vector<8x8xbf16>, vector<8x8xbf16>, vector<8x8xf32> -> vector<8x8xf32>
    %88 = tpu.concatenate %33, %51, %69, %87 in 1 : vector<8x8xf32>, vector<8x8xf32>, vector<8x8xf32>, vector<8x8xf32> -> vector<8x32xf32>
    %89 = arith.truncf %88 : vector<8x32xf32> to vector<8x32xbf16>
    %c0_34 = arith.constant 0 : index
    %c0_35 = arith.constant 0 : index
    %90 = vector.load %arg7[%c0_34, %c0_35] : memref<32x32xbf16, #tpu.memory_space<vmem>>, vector<32x32xbf16>
    %cst_36 = arith.constant dense<0.000000e+00> : vector<8x32xf32>
    %91 = tpu.matmul %89, %90, %cst_36 {dimension_numbers = #tpu.dot_dimension_numbers<[1], [0], [0], [1], [0, 0, 1, 1], [], []>} : vector<8x32xbf16>, vector<32x32xbf16>, vector<8x32xf32> -> vector<8x32xf32>
    %c0_37 = arith.constant 0 : index
    %c0_38 = arith.constant 0 : index
    %92 = vector.load %arg8[%c0_37, %c0_38] : memref<1x32xf32, #tpu.memory_space<vmem>>, vector<1x32xf32>
    %93 = vector.broadcast %92 : vector<1x32xf32> to vector<8x32xf32>
    %94 = arith.addf %91, %93 : vector<8x32xf32>
    %95 = arith.extf %1 : vector<8x32xbf16> to vector<8x32xf32>
    %96 = arith.addf %95, %94 : vector<8x32xf32>
    %cst_39 = arith.constant dense<0.000000e+00> : vector<8xf32>
    %97 = vector.multi_reduction <add>, %96, %cst_39 [1] : vector<8x32xf32> to vector<8xf32>
    %98 = vector.shape_cast %97 : vector<8xf32> to vector<8x1xf32>
    %cst_40 = arith.constant 3.200000e+01 : f32
    %99 = vector.broadcast %cst_40 : f32 to vector<8x1xf32>
    %100 = arith.divf %98, %99 : vector<8x1xf32>
    %101 = vector.broadcast %100 : vector<8x1xf32> to vector<8x32xf32>
    %102 = arith.subf %96, %101 : vector<8x32xf32>
    %103 = arith.mulf %102, %102 : vector<8x32xf32>
    %cst_41 = arith.constant dense<0.000000e+00> : vector<8xf32>
    %104 = vector.multi_reduction <add>, %103, %cst_41 [1] : vector<8x32xf32> to vector<8xf32>
    %105 = vector.shape_cast %104 : vector<8xf32> to vector<8x1xf32>
    %cst_42 = arith.constant 3.200000e+01 : f32
    %106 = vector.broadcast %cst_42 : f32 to vector<8x1xf32>
    %107 = arith.divf %105, %106 : vector<8x1xf32>
    %108 = vector.broadcast %100 : vector<8x1xf32> to vector<8x32xf32>
    %109 = arith.subf %96, %108 : vector<8x32xf32>
    %cst_43 = arith.constant 9.99999974E-6 : f32
    %110 = vector.broadcast %cst_43 : f32 to vector<8x1xf32>
    %111 = arith.addf %107, %110 : vector<8x1xf32>
    %112 = math.rsqrt %111 : vector<8x1xf32>
    %113 = vector.broadcast %112 : vector<8x1xf32> to vector<8x32xf32>
    %114 = arith.mulf %109, %113 : vector<8x32xf32>
    %c0_44 = arith.constant 0 : index
    %c0_45 = arith.constant 0 : index
    %115 = vector.load %arg9[%c0_44, %c0_45] : memref<1x32xf32, #tpu.memory_space<vmem>>, vector<1x32xf32>
    %116 = vector.broadcast %115 : vector<1x32xf32> to vector<8x32xf32>
    %117 = arith.mulf %114, %116 : vector<8x32xf32>
    %c0_46 = arith.constant 0 : index
    %c0_47 = arith.constant 0 : index
    %118 = vector.load %arg10[%c0_46, %c0_47] : memref<1x32xf32, #tpu.memory_space<vmem>>, vector<1x32xf32>
    %119 = vector.broadcast %118 : vector<1x32xf32> to vector<8x32xf32>
    %120 = arith.addf %117, %119 : vector<8x32xf32>
    %121 = arith.truncf %120 : vector<8x32xf32> to vector<8x32xbf16>
    %c0_48 = arith.constant 0 : index
    %c0_49 = arith.constant 0 : index
    %c0_50 = arith.constant 0 : index
    %122 = vector.load %arg11[%c0_48, %c0_49, %c0_50] : memref<1x8x32xbf16, #tpu.memory_space<vmem>>, vector<1x8x32xbf16>
    %123 = vector.shape_cast %122 : vector<1x8x32xbf16> to vector<8x32xbf16>
    %124 = vector.shape_cast %121 : vector<8x32xbf16> to vector<1x8x32xbf16>
    tpu.vector_store %arg11[%c0_48, %c0_49, %c0_50], %124 {strides = array<i32>} : memref<1x8x32xbf16, #tpu.memory_space<vmem>>, vector<1x8x32xbf16>,
    return
  }
  func.func @transform_0(%arg0: i32) -> (i32, i32, i32) {
    %c0_i32 = arith.constant 0 : i32
    %c0_i32_0 = arith.constant 0 : i32
    %c0_i32_1 = arith.constant 0 : i32
    return %arg0, %c0_i32, %c0_i32_0 : i32, i32, i32
  }
  func.func @transform_1(%arg0: i32) -> (i32, i32, i32) {
    %c0_i32 = arith.constant 0 : i32
    %c0_i32_0 = arith.constant 0 : i32
    %c0_i32_1 = arith.constant 0 : i32
    return %arg0, %c0_i32, %c0_i32_0 : i32, i32, i32
  }
  func.func @transform_2(%arg0: i32) -> (i32, i32) {
    %c0_i32 = arith.constant 0 : i32
    %c0_i32_0 = arith.constant 0 : i32
    %c0_i32_1 = arith.constant 0 : i32
    return %c0_i32, %c0_i32_0 : i32, i32
  }
  func.func @transform_3(%arg0: i32) -> (i32, i32) {
    %c0_i32 = arith.constant 0 : i32
    %c0_i32_0 = arith.constant 0 : i32
    %c0_i32_1 = arith.constant 0 : i32
    return %c0_i32, %c0_i32_0 : i32, i32
  }
  func.func @transform_4(%arg0: i32) -> (i32, i32) {
    %c0_i32 = arith.constant 0 : i32
    %c0_i32_0 = arith.constant 0 : i32
    %c0_i32_1 = arith.constant 0 : i32
    return %c0_i32, %c0_i32_0 : i32, i32
  }
  func.func @transform_5(%arg0: i32) -> (i32, i32) {
    %c0_i32 = arith.constant 0 : i32
    %c0_i32_0 = arith.constant 0 : i32
    %c0_i32_1 = arith.constant 0 : i32
    return %c0_i32, %c0_i32_0 : i32, i32
  }
  func.func @transform_6(%arg0: i32) -> (i32, i32) {
    %c0_i32 = arith.constant 0 : i32
    %c0_i32_0 = arith.constant 0 : i32
    %c0_i32_1 = arith.constant 0 : i32
    return %c0_i32, %c0_i32_0 : i32, i32
  }
  func.func @transform_7(%arg0: i32) -> (i32, i32) {
    %c0_i32 = arith.constant 0 : i32
    %c0_i32_0 = arith.constant 0 : i32
    %c0_i32_1 = arith.constant 0 : i32
    return %c0_i32, %c0_i32_0 : i32, i32
  }
  func.func @transform_8(%arg0: i32) -> (i32, i32) {
    %c0_i32 = arith.constant 0 : i32
    %c0_i32_0 = arith.constant 0 : i32
    %c0_i32_1 = arith.constant 0 : i32
    return %c0_i32, %c0_i32_0 : i32, i32
  }
  func.func @transform_9(%arg0: i32) -> (i32, i32) {
    %c0_i32 = arith.constant 0 : i32
    %c0_i32_0 = arith.constant 0 : i32
    %c0_i32_1 = arith.constant 0 : i32
    return %c0_i32, %c0_i32_0 : i32, i32
  }
  func.func @transform_10(%arg0: i32) -> (i32, i32, i32) {
    %c0_i32 = arith.constant 0 : i32
    %c0_i32_0 = arith.constant 0 : i32
    %c0_i32_1 = arith.constant 0 : i32
    return %arg0, %c0_i32, %c0_i32_0 : i32, i32, i32
  }
}

module attributes {stable_mosaic.version = 11 : i64} {
  func.func @_linear_kernel(%arg0: i32, %arg1: i32, %arg2: memref<16x32xbf16, #tpu.memory_space<vmem>>, %arg3: memref<32x128xbf16, #tpu.memory_space<vmem>>, %arg4: memref<1x128xf32, #tpu.memory_space<vmem>>, %arg5: memref<16x128xf32, #tpu.memory_space<vmem>>) attributes {dimension_semantics = [#tpu.dimension_semantics<parallel>, #tpu.dimension_semantics<parallel>], iteration_bounds = array<i64: 1, 1>, scalar_prefetch = 0 : i64, scratch_operands = 0 : i64, tpu.core_type = #tpu.core_type<tc>, window_params = [{transform_indices = @transform_0, window_bounds = array<i64: 16, 32>}, {transform_indices = @transform_1, window_bounds = array<i64: 32, 128>}, {transform_indices = @transform_2, window_bounds = array<i64: 1, 128>}, {transform_indices = @transform_3, window_bounds = array<i64: 16, 128>}]} {
    %c0 = arith.constant 0 : index
    %c0_0 = arith.constant 0 : index
    %0 = vector.load %arg2[%c0, %c0_0] : memref<16x32xbf16, #tpu.memory_space<vmem>>, vector<16x32xbf16>
    %c0_1 = arith.constant 0 : index
    %c0_2 = arith.constant 0 : index
    %1 = vector.load %arg3[%c0_1, %c0_2] : memref<32x128xbf16, #tpu.memory_space<vmem>>, vector<32x128xbf16>
    %cst = arith.constant dense<0.000000e+00> : vector<16x128xf32>
    %2 = tpu.matmul %0, %1, %cst {dimension_numbers = #tpu.dot_dimension_numbers<[1], [0], [0], [1], [0, 0, 1, 1], [], []>} : vector<16x32xbf16>, vector<32x128xbf16>, vector<16x128xf32> -> vector<16x128xf32>
    %c0_3 = arith.constant 0 : index
    %c0_4 = arith.constant 0 : index
    %3 = vector.load %arg4[%c0_3, %c0_4] : memref<1x128xf32, #tpu.memory_space<vmem>>, vector<1x128xf32>
    %4 = vector.broadcast %3 : vector<1x128xf32> to vector<16x128xf32>
    %5 = arith.addf %2, %4 : vector<16x128xf32>
    %c0_5 = arith.constant 0 : index
    %c0_6 = arith.constant 0 : index
    %6 = vector.load %arg5[%c0_5, %c0_6] : memref<16x128xf32, #tpu.memory_space<vmem>>, vector<16x128xf32>
    tpu.vector_store %arg5[%c0_5, %c0_6], %5 {strides = array<i32>} : memref<16x128xf32, #tpu.memory_space<vmem>>, vector<16x128xf32>,
    return
  }
  func.func @transform_0(%arg0: i32, %arg1: i32) -> (i32, i32) {
    %c0_i32 = arith.constant 0 : i32
    %c0_i32_0 = arith.constant 0 : i32
    return %arg0, %c0_i32 : i32, i32
  }
  func.func @transform_1(%arg0: i32, %arg1: i32) -> (i32, i32) {
    %c0_i32 = arith.constant 0 : i32
    %c0_i32_0 = arith.constant 0 : i32
    return %c0_i32, %arg1 : i32, i32
  }
  func.func @transform_2(%arg0: i32, %arg1: i32) -> (i32, i32) {
    %c0_i32 = arith.constant 0 : i32
    %c0_i32_0 = arith.constant 0 : i32
    return %c0_i32, %arg1 : i32, i32
  }
  func.func @transform_3(%arg0: i32, %arg1: i32) -> (i32, i32) {
    %c0_i32 = arith.constant 0 : i32
    return %arg0, %arg1 : i32, i32
  }
}

</mosaic_0001>

<llo_original>
// kernel: transformer_decoder_forward.13
$region0: #{transformer_decoder_forward.13}
  #allocation0 [shape = 'u32[]', space=smem, size = 0x4, offset = 0x4, fixed_abs, tag = 'smem constant byte address 0x4 - core index']
  #allocation1 [shape = 'u32[144,128]{1,0:T(1,128)}', space=vmem, size = 0x12000, scoped, tag = 'internal scratch']
  %s0 = inlined_call_operand.vmem [shape: bf16[16,32], index: 0, kind: input, shape index: {}]
  %s1 = inlined_call_operand.vmem [shape: bf16[32,128], index: 1, kind: input, shape index: {}]
  %s2 = inlined_call_operand.vmem [shape: f32[1,128], index: 2, kind: input, shape index: {}]
  %s3 = inlined_call_operand.vmem [shape: f32[16,128], index: 3, kind: output, shape index: {}]
  %s4 = sld [smem:[#allocation0]]
  $region22: #{transformer_decoder_forward.13} parent=0
    _
  %s6 = ssub.s32 1, %s4
  %s7 = scalar_select 0, %s6, %s4
  // Predicated region
  $region2: #{transformer_decoder_forward.13} parent=0 // pred_check
    _
  $region3: #{transformer_decoder_forward.13} parent=0 // pred_check_branch
    %9 = sbr.rel (0) target = $region5
  $region4: #{transformer_decoder_forward.13} parent=0 // pred_region
    _
  $region5: #{transformer_decoder_forward.13} parent=0 // pred_fallthru
    _
  // Predicated region
  $region6: #{transformer_decoder_forward.13} parent=0 // pred_check
    _
  $region7: #{transformer_decoder_forward.13} parent=0 // pred_check_branch
    %11 = sbr.rel (0) target = $region9
  $region8: #{transformer_decoder_forward.13} parent=0 // pred_region
    _
  $region9: #{transformer_decoder_forward.13} parent=0 // pred_fallthru
    _
  // Predicated region
  $region10: #{transformer_decoder_forward.13} parent=0 // pred_check
    _
  $region11: #{transformer_decoder_forward.13} parent=0 // pred_check_branch
    %13 = sbr.rel (0) target = $region13
  $region12: #{transformer_decoder_forward.13} parent=0 // pred_region
    _
  $region13: #{transformer_decoder_forward.13} parent=0 // pred_fallthru
    _
  %v15 = vld [vmem:[%s0] sm:$0xf]
  %v16 = vld [vmem:[%s0 + $0x4] sm:$0xf]
  %v17 = vld [vmem:[%s1] sm:$0xf]
  %v18 = vld [vmem:[%s1 + $0x4] sm:$0xf]
  %v19 = vld [vmem:[%s1 + $0x8] sm:$0xf]
  %v20 = vld [vmem:[%s1 + $0xc] sm:$0xf]
  %v21 = vld [vmem:[%s2] sm:$0x1]
  %v23 = vlaneseq
  %v24 = vshrl.u32 %v23, 7
  %v25 = vsub.s32 0, %v24
  %v26 = vrot.slane %v21, %v25
  %v30 = vunpack.c.l.b16 %v15
  %v31 = vunpack.c.l.b16 %v16
  %v32 = vpack.c.b16 %v31, %v30
  %v37 = vunpack.c.l.b16 %v17
  %v38 = vunpack.c.l.b16 %v18
  %v39 = vunpack.c.l.b16 %v19
  %v40 = vunpack.c.l.b16 %v20
  %v41 = vpack.c.b16 %v38, %v37
  %v42 = vpack.c.b16 %v40, %v39
  %vm45 = vcmask 261120
  %v47 = vsel %vm45, %v32, 0
  %49 = vmatprep.subr.bf16.mxu0 0
  %50 = vmatpush1.bf16.msra.mxu0 %v41
  %51 = vmatprep.subr.bf16.mxu0 0
  %52 = vmatpush1.bf16.msra.mxu0 %v42
  %53 = vmatprep.subr.bf16.mxu0 0
  %54 = vmatpush1.bf16.msra.mxu0 0
  %55 = vmatprep.subr.bf16.mxu0 0
  %56 = vmatpush1.bf16.msra.mxu0 0
  %57 = vmatprep.subr.bf16.mxu0 0
  %58 = vmatpush1.bf16.msra.mxu0 0
  %59 = vmatprep.subr.bf16.mxu0 0
  %60 = vmatpush1.bf16.msra.mxu0 0
  %61 = vmatprep.subr.bf16.mxu0 0
  %62 = vmatpush1.bf16.msra.mxu0 0
  %63 = vmatprep.subr.bf16.mxu0 0
  %64 = vmatpush1.bf16.msra.mxu0 0
  %65 = vmatprep.subr.bf16.mxu0 0
  %66 = vmatpush1.bf16.msra.mxu0 0
  %67 = vmatprep.subr.bf16.mxu0 0
  %68 = vmatpush1.bf16.msra.mxu0 0
  %69 = vmatprep.subr.bf16.mxu0 0
  %70 = vmatpush1.bf16.msra.mxu0 0
  %71 = vmatprep.subr.bf16.mxu0 0
  %72 = vmatpush1.bf16.msra.mxu0 0
  %73 = vmatprep.subr.bf16.mxu0 0
  %74 = vmatpush1.bf16.msra.mxu0 0
  %75 = vmatprep.subr.bf16.mxu0 0
  %76 = vmatpush1.bf16.msra.mxu0 0
  %77 = vmatprep.subr.bf16.mxu0 0
  %78 = vmatpush1.bf16.msra.mxu0 0
  %79 = vmatprep.subr.bf16.mxu0 0
  %80 = vmatpush1.bf16.msra.mxu0 0
  %81 = vmatprep.mubr.bf16.mxu0 0
  %82 = vmatmul.mubr.bf16.gmra.mrb[0].mxu0 %v47
  %v83 = vpop.f32.mrb[0].mxu0
  %v84 = vadd.f32 %v26, %v83
  %v85 = vpop.f32.mrb[0].mxu0
  %v86 = vpop.f32.mrb[0].mxu0
  %v87 = vadd.f32 %v26, %v86
  %v88 = vpop.f32.mrb[0].mxu0
  %89 = vdwg.mxu0
  %90 = vst [vmem:[%s3] sm:$0xff] %v84
  %91 = vst [vmem:[%s3 + $0x8] sm:$0xff] %v87
  // Predicated region
  $region14: #{transformer_decoder_forward.13} parent=0 // pred_check
    _
  $region15: #{transformer_decoder_forward.13} parent=0 // pred_check_branch
    %93 = sbr.rel (0) target = $region17
  $region16: #{transformer_decoder_forward.13} parent=0 // pred_region
    _
  $region17: #{transformer_decoder_forward.13} parent=0 // pred_fallthru
    _
  // Predicated region
  $region18: #{transformer_decoder_forward.13} parent=0 // pred_check
    _
  $region19: #{transformer_decoder_forward.13} parent=0 // pred_check_branch
    %95 = sbr.rel (0) target = $region21
  $region20: #{transformer_decoder_forward.13} parent=0 // pred_region
    _
  $region21: #{transformer_decoder_forward.13} parent=0 // pred_fallthru
    _

// kernel: transformer_decoder_forward.7
$region0: #{transformer_decoder_forward.7}
  #allocation0 [shape = 'u32[]', space=smem, size = 0x4, offset = 0x4, fixed_abs, tag = 'smem constant byte address 0x4 - core index']
  #allocation1 [shape = 'u32[144,128]{1,0:T(1,128)}', space=vmem, size = 0x12000, scoped, tag = 'internal scratch']
  %s0 = inlined_call_operand.vmem [shape: bf16[2,8,32], index: 0, kind: input, shape index: {}]
  %s1 = inlined_call_operand.vmem [shape: bf16[32,96], index: 1, kind: input, shape index: {}]
  %s2 = inlined_call_operand.vmem [shape: f32[1,96], index: 2, kind: input, shape index: {}]
  %s3 = inlined_call_operand.vmem [shape: bf16[32,32], index: 3, kind: input, shape index: {}]
  %s4 = inlined_call_operand.vmem [shape: f32[1,32], index: 4, kind: input, shape index: {}]
  %s5 = inlined_call_operand.vmem [shape: f32[1,8,8], index: 5, kind: input, shape index: {}]
  %s6 = inlined_call_operand.vmem [shape: f32[2,1,8], index: 6, kind: input, shape index: {}]
  %s7 = inlined_call_operand.vmem [shape: f32[1,32], index: 7, kind: input, shape index: {}]
  %s8 = inlined_call_operand.vmem [shape: f32[1,32], index: 8, kind: input, shape index: {}]
  %s9 = inlined_call_operand.vmem [shape: bf16[2,8,32], index: 9, kind: output, shape index: {}]
  %s10 = sld [smem:[#allocation0]]
  $region69: #{transformer_decoder_forward.7} parent=0
    _
  %s12 = ssub.s32 1, %s10
  %s13 = scalar_select 0, %s12, %s10
  loop: start=0, step=1, limit=4
  $region2: #{transformer_decoder_forward.7} parent=0 // loop_pre_header
    _
  $region3: #{transformer_decoder_forward.7} parent=0 // loop_header
    %s15 = sphi 0, %s19
    %p16 = scmp.ge.s32.totalorder %s15, 4
    %s25 = sphi 0, %s27
    %s28 = sphi 0, %s25
    %s29 = sphi 0, %s28
    %s45 = sphi 0, %s29
    %s49 = sphi 0, %s49
    %s51 = sphi 0, %s49
    %s52 = sphi 0, %s51
    %s66 = sphi 0, %s52
    %s70 = sphi 0, %s70
    %s72 = sphi 0, %s70
    %s73 = sphi 0, %s72
    %s87 = sphi 0, %s73
    %s91 = sphi 0, %s91
    %s93 = sphi 0, %s91
    %s94 = sphi 0, %s93
    %s108 = sphi 0, %s94
    %s112 = sphi 0, %s112
    %s114 = sphi 0, %s112
    %s115 = sphi 0, %s114
    %s129 = sphi 0, %s115
    %s133 = sphi 0, %s133
    %s135 = sphi 0, %s133
    %s136 = sphi 0, %s135
    %s150 = sphi 0, %s136
    %s156 = sphi 0, %s158
    %s159 = sphi 0, %s156
    %s160 = sphi 0, %s159
    %s176 = sphi 0, %s160
    %s180 = sphi 0, %s180
    %s182 = sphi 0, %s180
    %s183 = sphi 0, %s182
    %s197 = sphi 0, %s183
    %s201 = sphi 0, %s201
    %s203 = sphi 0, %s201
    %s204 = sphi 0, %s203
    %s218 = sphi 0, %s204
    %s224 = sphi 0, %s226
    %s227 = sphi 0, %s224
    %s228 = sphi 0, %s227
    %s244 = sphi 0, %s228
  $region4: #{transformer_decoder_forward.7} parent=0 // loop_header_branch
    %18 = sbr.rel (%p16) target = $region8
  $region5: #{transformer_decoder_forward.7} parent=0 // loop_body
    %s20 = ssub.s32 %s15, 1
    %s21 = ssub.s32 %s15, 2
    %s22 = sadd.s32 %s15, 1
    %s23 = ssub.s32 %s15, %s22
    %p24 = scmp.eq.s32.totalorder %s23, 0
    %s26 = sadd.s32 %s25, 1
    %s27 = scalar_select %p24, %s25, %s26
    %p30 = pneg %p24
    %p31 = scmp.eq.s32.totalorder %s15, 1
    %p32 = por %p30, %p31
    %p33 = scmp.ne.s32.totalorder %s25, %s28
    %p34 = scmp.eq.s32.totalorder %s15, 0
    %p35 = por %p33, %p34
    %p36 = scmp.ne.s32.totalorder %s25, %s28
    %p37 = scmp.eq.s32.totalorder %s20, 1
    %p38 = por %p36, %p37
    %p39 = scmp.ne.s32.totalorder %s28, %s29
    %p40 = scmp.eq.s32.totalorder %s20, 0
    %p41 = por %p39, %p40
    %p42 = scmp.ne.s32.totalorder %s28, %s29
    %p43 = scmp.eq.s32.totalorder %s21, 1
    %p44 = por %p42, %p43
    %p46 = scmp.ne.s32.totalorder %s29, %s45
    %p47 = scmp.eq.s32.totalorder %s21, 0
    %p48 = por %p46, %p47
    %s50 = sadd.s32 %s49, 1
    %p53 = scmp.eq.s32.totalorder %s15, 1
    %p54 = scmp.ne.s32.totalorder %s49, %s51
    %p55 = scmp.eq.s32.totalorder %s15, 0
    %p56 = por %p54, %p55
    %p57 = scmp.ne.s32.totalorder %s49, %s51
    %p58 = scmp.eq.s32.totalorder %s20, 1
    %p59 = por %p57, %p58
    %p60 = scmp.ne.s32.totalorder %s51, %s52
    %p61 = scmp.eq.s32.totalorder %s20, 0
    %p62 = por %p60, %p61
    %p63 = scmp.ne.s32.totalorder %s51, %s52
    %p64 = scmp.eq.s32.totalorder %s21, 1
    %p65 = por %p63, %p64
    %p67 = scmp.ne.s32.totalorder %s52, %s66
    %p68 = scmp.eq.s32.totalorder %s21, 0
    %p69 = por %p67, %p68
    %s71 = sadd.s32 %s70, 1
    %p74 = scmp.eq.s32.totalorder %s15, 1
    %p75 = scmp.ne.s32.totalorder %s70, %s72
    %p76 = scmp.eq.s32.totalorder %s15, 0
    %p77 = por %p75, %p76
    %p78 = scmp.ne.s32.totalorder %s70, %s72
    %p79 = scmp.eq.s32.totalorder %s20, 1
    %p80 = por %p78, %p79
    %p81 = scmp.ne.s32.totalorder %s72, %s73
    %p82 = scmp.eq.s32.totalorder %s20, 0
    %p83 = por %p81, %p82
    %p84 = scmp.ne.s32.totalorder %s72, %s73
    %p85 = scmp.eq.s32.totalorder %s21, 1
    %p86 = por %p84, %p85
    %p88 = scmp.ne.s32.totalorder %s73, %s87
    %p89 = scmp.eq.s32.totalorder %s21, 0
    %p90 = por %p88, %p89
    %s92 = sadd.s32 %s91, 1
    %p95 = scmp.eq.s32.totalorder %s15, 1
    %p96 = scmp.ne.s32.totalorder %s91, %s93
    %p97 = scmp.eq.s32.totalorder %s15, 0
    %p98 = por %p96, %p97
    %p99 = scmp.ne.s32.totalorder %s91, %s93
    %p100 = scmp.eq.s32.totalorder %s20, 1
    %p101 = por %p99, %p100
    %p102 = scmp.ne.s32.totalorder %s93, %s94
    %p103 = scmp.eq.s32.totalorder %s20, 0
    %p104 = por %p102, %p103
    %p105 = scmp.ne.s32.totalorder %s93, %s94
    %p106 = scmp.eq.s32.totalorder %s21, 1
    %p107 = por %p105, %p106
    %p109 = scmp.ne.s32.totalorder %s94, %s108
    %p110 = scmp.eq.s32.totalorder %s21, 0
    %p111 = por %p109, %p110
    %s113 = sadd.s32 %s112, 1
    %p116 = scmp.eq.s32.totalorder %s15, 1
    %p117 = scmp.ne.s32.totalorder %s112, %s114
    %p118 = scmp.eq.s32.totalorder %s15, 0
    %p119 = por %p117, %p118
    %p120 = scmp.ne.s32.totalorder %s112, %s114
    %p121 = scmp.eq.s32.totalorder %s20, 1
    %p122 = por %p120, %p121
    %p123 = scmp.ne.s32.totalorder %s114, %s115
    %p124 = scmp.eq.s32.totalorder %s20, 0
    %p125 = por %p123, %p124
    %p126 = scmp.ne.s32.totalorder %s114, %s115
    %p127 = scmp.eq.s32.totalorder %s21, 1
    %p128 = por %p126, %p127
    %p130 = scmp.ne.s32.totalorder %s115, %s129
    %p131 = scmp.eq.s32.totalorder %s21, 0
    %p132 = por %p130, %p131
    %s134 = sadd.s32 %s133, 1
    %p137 = scmp.eq.s32.totalorder %s15, 1
    %p138 = scmp.ne.s32.totalorder %s133, %s135
    %p139 = scmp.eq.s32.totalorder %s15, 0
    %p140 = por %p138, %p139
    %p141 = scmp.ne.s32.totalorder %s133, %s135
    %p142 = scmp.eq.s32.totalorder %s20, 1
    %p143 = por %p141, %p142
    %p144 = scmp.ne.s32.totalorder %s135, %s136
    %p145 = scmp.eq.s32.totalorder %s20, 0
    %p146 = por %p144, %p145
    %p147 = scmp.ne.s32.totalorder %s135, %s136
    %p148 = scmp.eq.s32.totalorder %s21, 1
    %p149 = por %p147, %p148
    %p151 = scmp.ne.s32.totalorder %s136, %s150
    %p152 = scmp.eq.s32.totalorder %s21, 0
    %p153 = por %p151, %p152
    %s154 = ssub.s32 %s15, %s22
    %p155 = scmp.eq.s32.totalorder %s154, 0
    %s157 = sadd.s32 %s156, 1
    %s158 = scalar_select %p155, %s156, %s157
    %p161 = pneg %p155
    %p162 = scmp.eq.s32.totalorder %s15, 1
    %p163 = por %p161, %p162
    %p164 = scmp.ne.s32.totalorder %s156, %s159
    %p165 = scmp.eq.s32.totalorder %s15, 0
    %p166 = por %p164, %p165
    %p167 = scmp.ne.s32.totalorder %s156, %s159
    %p168 = scmp.eq.s32.totalorder %s20, 1
    %p169 = por %p167, %p168
    %p170 = scmp.ne.s32.totalorder %s159, %s160
    %p171 = scmp.eq.s32.totalorder %s20, 0
    %p172 = por %p170, %p171
    %p173 = scmp.ne.s32.totalorder %s159, %s160
    %p174 = scmp.eq.s32.totalorder %s21, 1
    %p175 = por %p173, %p174
    %p177 = scmp.ne.s32.totalorder %s160, %s176
    %p178 = scmp.eq.s32.totalorder %s21, 0
    %p179 = por %p177, %p178
    %s181 = sadd.s32 %s180, 1
    %p184 = scmp.eq.s32.totalorder %s15, 1
    %p185 = scmp.ne.s32.totalorder %s180, %s182
    %p186 = scmp.eq.s32.totalorder %s15, 0
    %p187 = por %p185, %p186
    %p188 = scmp.ne.s32.totalorder %s180, %s182
    %p189 = scmp.eq.s32.totalorder %s20, 1
    %p190 = por %p188, %p189
    %p191 = scmp.ne.s32.totalorder %s182, %s183
    %p192 = scmp.eq.s32.totalorder %s20, 0
    %p193 = por %p191, %p192
    %p194 = scmp.ne.s32.totalorder %s182, %s183
    %p195 = scmp.eq.s32.totalorder %s21, 1
    %p196 = por %p194, %p195
    %p198 = scmp.ne.s32.totalorder %s183, %s197
    %p199 = scmp.eq.s32.totalorder %s21, 0
    %p200 = por %p198, %p199
    %s202 = sadd.s32 %s201, 1
    %p205 = scmp.eq.s32.totalorder %s15, 1
    %p206 = scmp.ne.s32.totalorder %s201, %s203
    %p207 = scmp.eq.s32.totalorder %s15, 0
    %p208 = por %p206, %p207
    %p209 = scmp.ne.s32.totalorder %s201, %s203
    %p210 = scmp.eq.s32.totalorder %s20, 1
    %p211 = por %p209, %p210
    %p212 = scmp.ne.s32.totalorder %s203, %s204
    %p213 = scmp.eq.s32.totalorder %s20, 0
    %p214 = por %p212, %p213
    %p215 = scmp.ne.s32.totalorder %s203, %s204
    %p216 = scmp.eq.s32.totalorder %s21, 1
    %p217 = por %p215, %p216
    %p219 = scmp.ne.s32.totalorder %s204, %s218
    %p220 = scmp.eq.s32.totalorder %s21, 0
    %p221 = por %p219, %p220
    %s222 = ssub.s32 %s15, %s22
    %p223 = scmp.eq.s32.totalorder %s222, 0
    %s225 = sadd.s32 %s224, 1
    %s226 = scalar_select %p223, %s224, %s225
    %p229 = pneg %p223
    %p230 = scmp.eq.s32.totalorder %s15, 1
    %p231 = por %p229, %p230
    %p232 = scmp.ne.s32.totalorder %s224, %s227
    %p233 = scmp.eq.s32.totalorder %s15, 0
    %p234 = por %p232, %p233
    %p235 = scmp.ne.s32.totalorder %s224, %s227
    %p236 = scmp.eq.s32.totalorder %s20, 1
    %p237 = por %p235, %p236
    %p238 = scmp.ne.s32.totalorder %s227, %s228
    %p239 = scmp.eq.s32.totalorder %s20, 0
    %p240 = por %p238, %p239
    %p241 = scmp.ne.s32.totalorder %s227, %s228
    %p242 = scmp.eq.s32.totalorder %s21, 1
    %p243 = por %p241, %p242
    %p245 = scmp.ne.s32.totalorder %s228, %s244
    %p246 = scmp.eq.s32.totalorder %s21, 0
    %p247 = por %p245, %p246
    %p248 = scmp.le.s32.totalorder 1, %s15
    %p249 = scmp.lt.s32.totalorder %s15, 3
    %p250 = pnand %p248, %p249
    %p251 = pneg %p250
    // Predicated region
    $region9: #{transformer_decoder_forward.7} parent=5 // pred_check
      _
    $region10: #{transformer_decoder_forward.7} parent=5 // pred_check_branch
      %253 = sbr.rel (%p250) target = $region12
    $region11: #{transformer_decoder_forward.7} parent=5 // pred_region
      %s254 = ssub.s32 %s15, 1
      // Predicated region
      $region13: #{transformer_decoder_forward.7} parent=11 // pred_check
        %p255 = pneg %p62
      $region14: #{transformer_decoder_forward.7} parent=11 // pred_check_branch
        %257 = sbr.rel (%p255) target = $region16
      $region15: #{transformer_decoder_forward.7} parent=11 // pred_region
        _
      $region16: #{transformer_decoder_forward.7} parent=11 // pred_fallthru
        _
      // Predicated region
      $region17: #{transformer_decoder_forward.7} parent=11 // pred_check
        %p258 = pneg %p83
      $region18: #{transformer_decoder_forward.7} parent=11 // pred_check_branch
        %260 = sbr.rel (%p258) target = $region20
      $region19: #{transformer_decoder_forward.7} parent=11 // pred_region
        _
      $region20: #{transformer_decoder_forward.7} parent=11 // pred_fallthru
        _
      // Predicated region
      $region21: #{transformer_decoder_forward.7} parent=11 // pred_check
        %p261 = pneg %p104
      $region22: #{transformer_decoder_forward.7} parent=11 // pred_check_branch
        %263 = sbr.rel (%p261) target = $region24
      $region23: #{transformer_decoder_forward.7} parent=11 // pred_region
        _
      $region24: #{transformer_decoder_forward.7} parent=11 // pred_fallthru
        _
      // Predicated region
      $region25: #{transformer_decoder_forward.7} parent=11 // pred_check
        %p264 = pneg %p125
      $region26: #{transformer_decoder_forward.7} parent=11 // pred_check_branch
        %266 = sbr.rel (%p264) target = $region28
      $region27: #{transformer_decoder_forward.7} parent=11 // pred_region
        _
      $region28: #{transformer_decoder_forward.7} parent=11 // pred_fallthru
        _
      // Predicated region
      $region29: #{transformer_decoder_forward.7} parent=11 // pred_check
        %p267 = pneg %p146
      $region30: #{transformer_decoder_forward.7} parent=11 // pred_check_branch
        %269 = sbr.rel (%p267) target = $region32
      $region31: #{transformer_decoder_forward.7} parent=11 // pred_region
        _
      $region32: #{transformer_decoder_forward.7} parent=11 // pred_fallthru
        _
      // Predicated region
      $region33: #{transformer_decoder_forward.7} parent=11 // pred_check
        %p270 = pneg %p193
      $region34: #{transformer_decoder_forward.7} parent=11 // pred_check_branch
        %272 = sbr.rel (%p270) target = $region36
      $region35: #{transformer_decoder_forward.7} parent=11 // pred_region
        _
      $region36: #{transformer_decoder_forward.7} parent=11 // pred_fallthru
        _
      // Predicated region
      $region37: #{transformer_decoder_forward.7} parent=11 // pred_check
        %p273 = pneg %p214
      $region38: #{transformer_decoder_forward.7} parent=11 // pred_check_branch
        %275 = sbr.rel (%p273) target = $region40
      $region39: #{transformer_decoder_forward.7} parent=11 // pred_region
        _
      $region40: #{transformer_decoder_forward.7} parent=11 // pred_fallthru
        _
    $region12: #{transformer_decoder_forward.7} parent=5 // pred_fallthru
      _
    %p276 = scmp.lt.s32.totalorder %s15, 2
    // Predicated region
    $region41: #{transformer_decoder_forward.7} parent=5 // pred_check
      %p277 = pneg %p276
    $region42: #{transformer_decoder_forward.7} parent=5 // pred_check_branch
      %279 = sbr.rel (%p277) target = $region44
    $region43: #{transformer_decoder_forward.7} parent=5 // pred_region
      // Predicated region
      $region45: #{transformer_decoder_forward.7} parent=43 // pred_check
        %p280 = pneg %p35
      $region46: #{transformer_decoder_forward.7} parent=43 // pred_check_branch
        %282 = sbr.rel (%p280) target = $region48
      $region47: #{transformer_decoder_forward.7} parent=43 // pred_region
        %p283 = scmp.lt.s32.totalorder %s15, 1
        %s284 = scalar_select %p283, %s15, 1
        %s285 = smul.addr %s284, 4
        %s286 = scalar_lea.vmem %s0, %s285
      $region48: #{transformer_decoder_forward.7} parent=43 // pred_fallthru
        _
      // Predicated region
      $region49: #{transformer_decoder_forward.7} parent=43 // pred_check
        %p287 = pneg %p166
      $region50: #{transformer_decoder_forward.7} parent=43 // pred_check_branch
        %289 = sbr.rel (%p287) target = $region52
      $region51: #{transformer_decoder_forward.7} parent=43 // pred_region
        %p290 = scmp.lt.s32.totalorder %s15, 1
        %s291 = scalar_select %p290, %s15, 1
        %s292 = scalar_lea.vmem %s6, %s291
      $region52: #{transformer_decoder_forward.7} parent=43 // pred_fallthru
        _
    $region44: #{transformer_decoder_forward.7} parent=5 // pred_fallthru
      _
    %p293 = scmp.le.s32.totalorder 1, %s15
    %p294 = scmp.lt.s32.totalorder %s15, 3
    %p295 = pnand %p293, %p294
    %p296 = pneg %p295
    // Predicated region
    $region53: #{transformer_decoder_forward.7} parent=5 // pred_check
      _
    $region54: #{transformer_decoder_forward.7} parent=5 // pred_check_branch
      %298 = sbr.rel (%p295) target = $region56
    $region55: #{transformer_decoder_forward.7} parent=5 // pred_region
      %s299 = ssub.s32 %s15, 1
      %p300 = scmp.lt.s32.totalorder %s20, 1
      %s301 = scalar_select %p300, %s20, 1
      %s302 = smul.addr %s301, 4
      %s303 = scalar_lea.vmem %s0, %s302
      %p304 = pneg %p41
      %p305 = pneg %p38
      %p306 = pneg %p62
      %p307 = pneg %p59
      %p308 = pneg %p83
      %p309 = pneg %p80
      %p310 = pneg %p104
      %p311 = pneg %p101
      %p312 = pneg %p125
      %p313 = pneg %p122
      %p314 = pneg %p146
      %p315 = pneg %p143
      %p316 = scmp.lt.s32.totalorder %s20, 1
      %s317 = scalar_select %p316, %s20, 1
      %s318 = scalar_lea.vmem %s6, %s317
      %p319 = pneg %p172
      %p320 = pneg %p169
      %p321 = pneg %p193
      %p322 = pneg %p190
      %p323 = pneg %p214
      %p324 = pneg %p211
      %p325 = pneg %p240
      %p326 = pneg %p237
      %p327 = scmp.lt.s32.totalorder %s20, 1
      %s328 = scalar_select %p327, %s20, 1
      %s329 = smul.addr %s328, 4
      %s330 = scalar_lea.vmem %s9, %s329
      %p331 = scmp.lt.s32.totalorder %s20, 1
      %s332 = scalar_select %p331, %s20, 1
      %s333 = smul.addr %s332, 4
      %s334 = scalar_lea.vmem %s0, %s333
      %p335 = scmp.lt.s32.totalorder %s20, 1
      %s336 = scalar_select %p335, %s20, 1
      %s337 = scalar_lea.vmem %s6, %s336
      %p338 = scmp.lt.s32.totalorder %s20, 1
      %s339 = scalar_select %p338, %s20, 1
      %s340 = smul.addr %s339, 4
      %s341 = scalar_lea.vmem %s9, %s340
      %v343 = vld [vmem:[%s334] sm:$0xf]
      %v344 = vld [vmem:[%s1] sm:$0xf]
      %v345 = vld [vmem:[%s1 + $0x4] sm:$0xf]
      %v346 = vld [vmem:[%s1 + $0x8] sm:$0xf]
      %v347 = vld [vmem:[%s1 + $0xc] sm:$0xf]
      %v348 = vld [vmem:[%s2] sm:$0x1]
      %v350 = vlaneseq
      %v351 = vshrl.u32 %v350, 7
      %v352 = vsub.s32 0, %v351
      %v353 = vrot.slane %v348, %v352
      %v359 = vunpack.c.l.b16 %v344
      %v360 = vunpack.c.l.b16 %v345
      %v361 = vunpack.c.l.b16 %v346
      %v362 = vunpack.c.l.b16 %v347
      %v363 = vpack.c.b16 %v360, %v359
      %v364 = vpack.c.b16 %v362, %v361
      %vm367 = vcmask 261120
      %v369 = vsel %vm367, %v343, 0
      %371 = vmatprep.subr.bf16.mxu0 0
      %372 = vmatpush1.bf16.msra.mxu0 %v363
      %373 = vmatprep.subr.bf16.mxu0 0
      %374 = vmatpush1.bf16.msra.mxu0 %v364
      %375 = vmatprep.subr.bf16.mxu0 0
      %376 = vmatpush1.bf16.msra.mxu0 0
      %377 = vmatprep.subr.bf16.mxu0 0
      %378 = vmatpush1.bf16.msra.mxu0 0
      %379 = vmatprep.subr.bf16.mxu0 0
      %380 = vmatpush1.bf16.msra.mxu0 0
      %381 = vmatprep.subr.bf16.mxu0 0
      %382 = vmatpush1.bf16.msra.mxu0 0
      %383 = vmatprep.subr.bf16.mxu0 0
      %384 = vmatpush1.bf16.msra.mxu0 0
      %385 = vmatprep.subr.bf16.mxu0 0
      %386 = vmatpush1.bf16.msra.mxu0 0
      %387 = vmatprep.subr.bf16.mxu0 0
      %388 = vmatpush1.bf16.msra.mxu0 0
      %389 = vmatprep.subr.bf16.mxu0 0
      %390 = vmatpush1.bf16.msra.mxu0 0
      %391 = vmatprep.subr.bf16.mxu0 0
      %392 = vmatpush1.bf16.msra.mxu0 0
      %393 = vmatprep.subr.bf16.mxu0 0
      %394 = vmatpush1.bf16.msra.mxu0 0
      %395 = vmatprep.subr.bf16.mxu0 0
      %396 = vmatpush1.bf16.msra.mxu0 0
      %397 = vmatprep.subr.bf16.mxu0 0
      %398 = vmatpush1.bf16.msra.mxu0 0
      %399 = vmatprep.subr.bf16.mxu0 0
      %400 = vmatpush1.bf16.msra.mxu0 0
      %401 = vmatprep.subr.bf16.mxu0 0
      %402 = vmatpush1.bf16.msra.mxu0 0
      %403 = vmatprep.mubr.bf16.mxu0 0
      %404 = vmatmul.mubr.bf16.gmra.mrb[0].mxu0 %v369
      %v405 = vpop.f32.mrb[0].mxu0
      %v406 = vadd.f32 %v353, %v405
      %v407 = vpop.f32.mrb[0].mxu0
      %v408 = vpop.f32.mrb[0].mxu0
      %v409 = vpop.f32.mrb[0].mxu0
      %410 = vdwg.mxu0
      %v411 = vpack.c.bf16 %v406, %v406
      %v412 = vld [vmem:[%s5] sm:$0xff]
      %v413 = vld [vmem:[%s337] sm:$0x1]
      %v415 = vlaneseq
      %v416 = vshrl.u32 %v415, 7
      %v417 = vsub.s32 0, %v416
      %v418 = vrot.slane %v413, %v417
      %v420 = vadd.f32 %v412, %v418
      %422 = vrot.lane.b32.xlu0 %v411, 96
      %v423 = vpop.permute.xlu0 %422
      %vm424 = vcmask 64512
      %v426 = vsel %vm424, %v411, 0
      %v429 = vsel %vm424, %v423, 0
      %431 = vmatprep.subr.bf16.mxu0 0
      %432 = vmatpush1.bf16.xpose.msra.mxu0 %v429
      %433 = vmatprep.subr.bf16.mxu0 0
      %434 = vmatpush1.bf16.xpose.msra.mxu0 0
      %435 = vmatprep.subr.bf16.mxu0 0
      %436 = vmatpush1.bf16.xpose.msra.mxu0 0
      %437 = vmatprep.subr.bf16.mxu0 0
      %438 = vmatpush1.bf16.xpose.msra.mxu0 0
      %439 = vmatprep.subr.bf16.mxu0 0
      %440 = vmatpush1.bf16.xpose.msra.mxu0 0
      %441 = vmatprep.subr.bf16.mxu0 0
      %442 = vmatpush1.bf16.xpose.msra.mxu0 0
      %443 = vmatprep.subr.bf16.mxu0 0
      %444 = vmatpush1.bf16.xpose.msra.mxu0 0
      %445 = vmatprep.subr.bf16.mxu0 0
      %446 = vmatpush1.bf16.xpose.msra.mxu0 0
      %447 = vmatprep.subr.bf16.mxu0 0
      %448 = vmatpush1.bf16.xpose.msra.mxu0 0
      %449 = vmatprep.subr.bf16.mxu0 0
      %450 = vmatpush1.bf16.xpose.msra.mxu0 0
      %451 = vmatprep.subr.bf16.mxu0 0
      %452 = vmatpush1.bf16.xpose.msra.mxu0 0
      %453 = vmatprep.subr.bf16.mxu0 0
      %454 = vmatpush1.bf16.xpose.msra.mxu0 0
      %455 = vmatprep.subr.bf16.mxu0 0
      %456 = vmatpush1.bf16.xpose.msra.mxu0 0
      %457 = vmatprep.subr.bf16.mxu0 0
      %458 = vmatpush1.bf16.xpose.msra.mxu0 0
      %459 = vmatprep.subr.bf16.mxu0 0
      %460 = vmatpush1.bf16.xpose.msra.mxu0 0
      %461 = vmatprep.subr.bf16.mxu0 0
      %462 = vmatpush1.bf16.xpose.msra.mxu0 0
      %463 = vmatprep.mubr.bf16.mxu0 0
      %464 = vmatmul.mubr.bf16.gmra.mrb[0].mxu0 %v426
      %v465 = vpop.f32.mrb[0].mxu0
      %v466 = vadd.f32 0.0, %v465
      %v467 = vpop.f32.mrb[0].mxu0
      %v468 = vpop.f32.mrb[0].mxu0
      %v469 = vpop.f32.mrb[0].mxu0
      %470 = vdwg.mxu0
      %v471 = vmul.f32 %v466, 0.35355338
      %v472 = vadd.f32 %v471, %v420
      %v473 = vsel %vm424, %v472, -inf
      %474 = vmax.xlane.f32.xlu0 %v473
      %v475 = vpop.xlane.xlu0 %474
      %v476 = vsub.f32 %v472, %v475
      %v477 = vmul.f32 %v476, 1.442695
      %v478 = vpow.pop %v477
      %v479 = vsel %vm424, %v478, 0.0
      %480 = vadd.xlane.f32.xlu0 %v479
      %v481 = vpop.xlane.xlu0 %480
      %v482 = vrcp.pop %v481
      %v483 = vmul.f32 %v478, %v482
      %v484 = vpack.c.bf16 %v483, %v483
      %485 = vrot.lane.b32.xlu0 %v411, 64
      %v486 = vpop.permute.xlu0 %485
      %v488 = vsel %vm424, %v484, 0
      %vm490 = vcmask 1043456
      %v492 = vsel %vm490, %v486, 0
      %494 = vmatprep.subr.bf16.mxu0 0
      %495 = vmatpush1.bf16.msra.mxu0 %v492
      %496 = vmatprep.subr.bf16.mxu0 0
      %497 = vmatpush1.bf16.msra.mxu0 0
      %498 = vmatprep.subr.bf16.mxu0 0
      %499 = vmatpush1.bf16.msra.mxu0 0
      %500 = vmatprep.subr.bf16.mxu0 0
      %501 = vmatpush1.bf16.msra.mxu0 0
      %502 = vmatprep.subr.bf16.mxu0 0
      %503 = vmatpush1.bf16.msra.mxu0 0
      %504 = vmatprep.subr.bf16.mxu0 0
      %505 = vmatpush1.bf16.msra.mxu0 0
      %506 = vmatprep.subr.bf16.mxu0 0
      %507 = vmatpush1.bf16.msra.mxu0 0
      %508 = vmatprep.subr.bf16.mxu0 0
      %509 = vmatpush1.bf16.msra.mxu0 0
      %510 = vmatprep.subr.bf16.mxu0 0
      %511 = vmatpush1.bf16.msra.mxu0 0
      %512 = vmatprep.subr.bf16.mxu0 0
      %513 = vmatpush1.bf16.msra.mxu0 0
      %514 = vmatprep.subr.bf16.mxu0 0
      %515 = vmatpush1.bf16.msra.mxu0 0
      %516 = vmatprep.subr.bf16.mxu0 0
      %517 = vmatpush1.bf16.msra.mxu0 0
      %518 = vmatprep.subr.bf16.mxu0 0
      %519 = vmatpush1.bf16.msra.mxu0 0
      %520 = vmatprep.subr.bf16.mxu0 0
      %521 = vmatpush1.bf16.msra.mxu0 0
      %522 = vmatprep.subr.bf16.mxu0 0
      %523 = vmatpush1.bf16.msra.mxu0 0
      %524 = vmatprep.subr.bf16.mxu0 0
      %525 = vmatpush1.bf16.msra.mxu0 0
      %526 = vmatprep.mubr.bf16.mxu0 0
      %527 = vmatmul.mubr.bf16.gmra.mrb[0].mxu0 %v488
      %v528 = vpop.f32.mrb[0].mxu0
      %v529 = vadd.f32 0.0, %v528
      %v530 = vpop.f32.mrb[0].mxu0
      %v531 = vpop.f32.mrb[0].mxu0
      %v532 = vpop.f32.mrb[0].mxu0
      %533 = vdwg.mxu0
      %534 = vrot.lane.b32.xlu0 %v411, 120
      %v535 = vpop.permute.xlu0 %534
      %536 = vrot.lane.b32.xlu0 %v411, 88
      %v537 = vpop.permute.xlu0 %536
      %v539 = vsel %vm424, %v535, 0
      %v542 = vsel %vm424, %v537, 0
      %544 = vmatprep.subr.bf16.mxu0 0
      %545 = vmatpush1.bf16.xpose.msra.mxu0 %v542
      %546 = vmatprep.subr.bf16.mxu0 0
      %547 = vmatpush1.bf16.xpose.msra.mxu0 0
      %548 = vmatprep.subr.bf16.mxu0 0
      %549 = vmatpush1.bf16.xpose.msra.mxu0 0
      %550 = vmatprep.subr.bf16.mxu0 0
      %551 = vmatpush1.bf16.xpose.msra.mxu0 0
      %552 = vmatprep.subr.bf16.mxu0 0
      %553 = vmatpush1.bf16.xpose.msra.mxu0 0
      %554 = vmatprep.subr.bf16.mxu0 0
      %555 = vmatpush1.bf16.xpose.msra.mxu0 0
      %556 = vmatprep.subr.bf16.mxu0 0
      %557 = vmatpush1.bf16.xpose.msra.mxu0 0
      %558 = vmatprep.subr.bf16.mxu0 0
      %559 = vmatpush1.bf16.xpose.msra.mxu0 0
      %560 = vmatprep.subr.bf16.mxu0 0
      %561 = vmatpush1.bf16.xpose.msra.mxu0 0
      %562 = vmatprep.subr.bf16.mxu0 0
      %563 = vmatpush1.bf16.xpose.msra.mxu0 0
      %564 = vmatprep.subr.bf16.mxu0 0
      %565 = vmatpush1.bf16.xpose.msra.mxu0 0
      %566 = vmatprep.subr.bf16.mxu0 0
      %567 = vmatpush1.bf16.xpose.msra.mxu0 0
      %568 = vmatprep.subr.bf16.mxu0 0
      %569 = vmatpush1.bf16.xpose.msra.mxu0 0
      %570 = vmatprep.subr.bf16.mxu0 0
      %571 = vmatpush1.bf16.xpose.msra.mxu0 0
      %572 = vmatprep.subr.bf16.mxu0 0
      %573 = vmatpush1.bf16.xpose.msra.mxu0 0
      %574 = vmatprep.subr.bf16.mxu0 0
      %575 = vmatpush1.bf16.xpose.msra.mxu0 0
      %576 = vmatprep.mubr.bf16.mxu0 0
      %577 = vmatmul.mubr.bf16.gmra.mrb[0].mxu0 %v539
      %v578 = vpop.f32.mrb[0].mxu0
      %v579 = vadd.f32 0.0, %v578
      %v580 = vpop.f32.mrb[0].mxu0
      %v581 = vpop.f32.mrb[0].mxu0
      %v582 = vpop.f32.mrb[0].mxu0
      %583 = vdwg.mxu0
      %v584 = vmul.f32 %v579, 0.35355338
      %v585 = vadd.f32 %v584, %v420
      %v586 = vsel %vm424, %v585, -inf
      %587 = vmax.xlane.f32.xlu0 %v586
      %v588 = vpop.xlane.xlu0 %587
      %v589 = vsub.f32 %v585, %v588
      %v590 = vmul.f32 %v589, 1.442695
      %v591 = vpow.pop %v590
      %v592 = vsel %vm424, %v591, 0.0
      %593 = vadd.xlane.f32.xlu0 %v592
      %v594 = vpop.xlane.xlu0 %593
      %v595 = vrcp.pop %v594
      %v596 = vmul.f32 %v591, %v595
      %v597 = vpack.c.bf16 %v596, %v596
      %598 = vrot.lane.b32.xlu0 %v411, 56
      %v599 = vpop.permute.xlu0 %598
      %v601 = vsel %vm424, %v597, 0
      %v604 = vsel %vm490, %v599, 0
      %606 = vmatprep.subr.bf16.mxu0 0
      %607 = vmatpush1.bf16.msra.mxu0 %v604
      %608 = vmatprep.subr.bf16.mxu0 0
      %609 = vmatpush1.bf16.msra.mxu0 0
      %610 = vmatprep.subr.bf16.mxu0 0
      %611 = vmatpush1.bf16.msra.mxu0 0
      %612 = vmatprep.subr.bf16.mxu0 0
      %613 = vmatpush1.bf16.msra.mxu0 0
      %614 = vmatprep.subr.bf16.mxu0 0
      %615 = vmatpush1.bf16.msra.mxu0 0
      %616 = vmatprep.subr.bf16.mxu0 0
      %617 = vmatpush1.bf16.msra.mxu0 0
      %618 = vmatprep.subr.bf16.mxu0 0
      %619 = vmatpush1.bf16.msra.mxu0 0
      %620 = vmatprep.subr.bf16.mxu0 0
      %621 = vmatpush1.bf16.msra.mxu0 0
      %622 = vmatprep.subr.bf16.mxu0 0
      %623 = vmatpush1.bf16.msra.mxu0 0
      %624 = vmatprep.subr.bf16.mxu0 0
      %625 = vmatpush1.bf16.msra.mxu0 0
      %626 = vmatprep.subr.bf16.mxu0 0
      %627 = vmatpush1.bf16.msra.mxu0 0
      %628 = vmatprep.subr.bf16.mxu0 0
      %629 = vmatpush1.bf16.msra.mxu0 0
      %630 = vmatprep.subr.bf16.mxu0 0
      %631 = vmatpush1.bf16.msra.mxu0 0
      %632 = vmatprep.subr.bf16.mxu0 0
      %633 = vmatpush1.bf16.msra.mxu0 0
      %634 = vmatprep.subr.bf16.mxu0 0
      %635 = vmatpush1.bf16.msra.mxu0 0
      %636 = vmatprep.subr.bf16.mxu0 0
      %637 = vmatpush1.bf16.msra.mxu0 0
      %638 = vmatprep.mubr.bf16.mxu0 0
      %639 = vmatmul.mubr.bf16.gmra.mrb[0].mxu0 %v601
      %v640 = vpop.f32.mrb[0].mxu0
      %v641 = vadd.f32 0.0, %v640
      %v642 = vpop.f32.mrb[0].mxu0
      %v643 = vpop.f32.mrb[0].mxu0
      %v644 = vpop.f32.mrb[0].mxu0
      %645 = vdwg.mxu0
      %646 = vrot.lane.b32.xlu0 %v411, 112
      %v647 = vpop.permute.xlu0 %646
      %648 = vrot.lane.b32.xlu0 %v411, 80
      %v649 = vpop.permute.xlu0 %648
      %v651 = vsel %vm424, %v647, 0
      %v654 = vsel %vm424, %v649, 0
      %656 = vmatprep.subr.bf16.mxu0 0
      %657 = vmatpush1.bf16.xpose.msra.mxu0 %v654
      %658 = vmatprep.subr.bf16.mxu0 0
      %659 = vmatpush1.bf16.xpose.msra.mxu0 0
      %660 = vmatprep.subr.bf16.mxu0 0
      %661 = vmatpush1.bf16.xpose.msra.mxu0 0
      %662 = vmatprep.subr.bf16.mxu0 0
      %663 = vmatpush1.bf16.xpose.msra.mxu0 0
      %664 = vmatprep.subr.bf16.mxu0 0
      %665 = vmatpush1.bf16.xpose.msra.mxu0 0
      %666 = vmatprep.subr.bf16.mxu0 0
      %667 = vmatpush1.bf16.xpose.msra.mxu0 0
      %668 = vmatprep.subr.bf16.mxu0 0
      %669 = vmatpush1.bf16.xpose.msra.mxu0 0
      %670 = vmatprep.subr.bf16.mxu0 0
      %671 = vmatpush1.bf16.xpose.msra.mxu0 0
      %672 = vmatprep.subr.bf16.mxu0 0
      %673 = vmatpush1.bf16.xpose.msra.mxu0 0
      %674 = vmatprep.subr.bf16.mxu0 0
      %675 = vmatpush1.bf16.xpose.msra.mxu0 0
      %676 = vmatprep.subr.bf16.mxu0 0
      %677 = vmatpush1.bf16.xpose.msra.mxu0 0
      %678 = vmatprep.subr.bf16.mxu0 0
      %679 = vmatpush1.bf16.xpose.msra.mxu0 0
      %680 = vmatprep.subr.bf16.mxu0 0
      %681 = vmatpush1.bf16.xpose.msra.mxu0 0
      %682 = vmatprep.subr.bf16.mxu0 0
      %683 = vmatpush1.bf16.xpose.msra.mxu0 0
      %684 = vmatprep.subr.bf16.mxu0 0
      %685 = vmatpush1.bf16.xpose.msra.mxu0 0
      %686 = vmatprep.subr.bf16.mxu0 0
      %687 = vmatpush1.bf16.xpose.msra.mxu0 0
      %688 = vmatprep.mubr.bf16.mxu0 0
      %689 = vmatmul.mubr.bf16.gmra.mrb[0].mxu0 %v651
      %v690 = vpop.f32.mrb[0].mxu0
      %v691 = vadd.f32 0.0, %v690
      %v692 = vpop.f32.mrb[0].mxu0
      %v693 = vpop.f32.mrb[0].mxu0
      %v694 = vpop.f32.mrb[0].mxu0
      %695 = vdwg.mxu0
      %v696 = vmul.f32 %v691, 0.35355338
      %v697 = vadd.f32 %v696, %v420
      %v698 = vsel %vm424, %v697, -inf
      %699 = vmax.xlane.f32.xlu0 %v698
      %v700 = vpop.xlane.xlu0 %699
      %v701 = vsub.f32 %v697, %v700
      %v702 = vmul.f32 %v701, 1.442695
      %v703 = vpow.pop %v702
      %v704 = vsel %vm424, %v703, 0.0
      %705 = vadd.xlane.f32.xlu0 %v704
      %v706 = vpop.xlane.xlu0 %705
      %v707 = vrcp.pop %v706
      %v708 = vmul.f32 %v703, %v707
      %v709 = vpack.c.bf16 %v708, %v708
      %710 = vrot.lane.b32.xlu0 %v411, 48
      %v711 = vpop.permute.xlu0 %710
      %v713 = vsel %vm424, %v709, 0
      %v716 = vsel %vm490, %v711, 0
      %718 = vmatprep.subr.bf16.mxu0 0
      %719 = vmatpush1.bf16.msra.mxu0 %v716
      %720 = vmatprep.subr.bf16.mxu0 0
      %721 = vmatpush1.bf16.msra.mxu0 0
      %722 = vmatprep.subr.bf16.mxu0 0
      %723 = vmatpush1.bf16.msra.mxu0 0
      %724 = vmatprep.subr.bf16.mxu0 0
      %725 = vmatpush1.bf16.msra.mxu0 0
      %726 = vmatprep.subr.bf16.mxu0 0
      %727 = vmatpush1.bf16.msra.mxu0 0
      %728 = vmatprep.subr.bf16.mxu0 0
      %729 = vmatpush1.bf16.msra.mxu0 0
      %730 = vmatprep.subr.bf16.mxu0 0
      %731 = vmatpush1.bf16.msra.mxu0 0
      %732 = vmatprep.subr.bf16.mxu0 0
      %733 = vmatpush1.bf16.msra.mxu0 0
      %734 = vmatprep.subr.bf16.mxu0 0
      %735 = vmatpush1.bf16.msra.mxu0 0
      %736 = vmatprep.subr.bf16.mxu0 0
      %737 = vmatpush1.bf16.msra.mxu0 0
      %738 = vmatprep.subr.bf16.mxu0 0
      %739 = vmatpush1.bf16.msra.mxu0 0
      %740 = vmatprep.subr.bf16.mxu0 0
      %741 = vmatpush1.bf16.msra.mxu0 0
      %742 = vmatprep.subr.bf16.mxu0 0
      %743 = vmatpush1.bf16.msra.mxu0 0
      %744 = vmatprep.subr.bf16.mxu0 0
      %745 = vmatpush1.bf16.msra.mxu0 0
      %746 = vmatprep.subr.bf16.mxu0 0
      %747 = vmatpush1.bf16.msra.mxu0 0
      %748 = vmatprep.subr.bf16.mxu0 0
      %749 = vmatpush1.bf16.msra.mxu0 0
      %750 = vmatprep.mubr.bf16.mxu0 0
      %751 = vmatmul.mubr.bf16.gmra.mrb[0].mxu0 %v713
      %v752 = vpop.f32.mrb[0].mxu0
      %v753 = vadd.f32 0.0, %v752
      %v754 = vpop.f32.mrb[0].mxu0
      %v755 = vpop.f32.mrb[0].mxu0
      %v756 = vpop.f32.mrb[0].mxu0
      %757 = vdwg.mxu0
      %758 = vrot.lane.b32.xlu0 %v411, 104
      %v759 = vpop.permute.xlu0 %758
      %760 = vrot.lane.b32.xlu0 %v411, 72
      %v761 = vpop.permute.xlu0 %760
      %v763 = vsel %vm424, %v759, 0
      %v766 = vsel %vm424, %v761, 0
      %768 = vmatprep.subr.bf16.mxu0 0
      %769 = vmatpush1.bf16.xpose.msra.mxu0 %v766
      %770 = vmatprep.subr.bf16.mxu0 0
      %771 = vmatpush1.bf16.xpose.msra.mxu0 0
      %772 = vmatprep.subr.bf16.mxu0 0
      %773 = vmatpush1.bf16.xpose.msra.mxu0 0
      %774 = vmatprep.subr.bf16.mxu0 0
      %775 = vmatpush1.bf16.xpose.msra.mxu0 0
      %776 = vmatprep.subr.bf16.mxu0 0
      %777 = vmatpush1.bf16.xpose.msra.mxu0 0
      %778 = vmatprep.subr.bf16.mxu0 0
      %779 = vmatpush1.bf16.xpose.msra.mxu0 0
      %780 = vmatprep.subr.bf16.mxu0 0
      %781 = vmatpush1.bf16.xpose.msra.mxu0 0
      %782 = vmatprep.subr.bf16.mxu0 0
      %783 = vmatpush1.bf16.xpose.msra.mxu0 0
      %784 = vmatprep.subr.bf16.mxu0 0
      %785 = vmatpush1.bf16.xpose.msra.mxu0 0
      %786 = vmatprep.subr.bf16.mxu0 0
      %787 = vmatpush1.bf16.xpose.msra.mxu0 0
      %788 = vmatprep.subr.bf16.mxu0 0
      %789 = vmatpush1.bf16.xpose.msra.mxu0 0
      %790 = vmatprep.subr.bf16.mxu0 0
      %791 = vmatpush1.bf16.xpose.msra.mxu0 0
      %792 = vmatprep.subr.bf16.mxu0 0
      %793 = vmatpush1.bf16.xpose.msra.mxu0 0
      %794 = vmatprep.subr.bf16.mxu0 0
      %795 = vmatpush1.bf16.xpose.msra.mxu0 0
      %796 = vmatprep.subr.bf16.mxu0 0
      %797 = vmatpush1.bf16.xpose.msra.mxu0 0
      %798 = vmatprep.subr.bf16.mxu0 0
      %799 = vmatpush1.bf16.xpose.msra.mxu0 0
      %800 = vmatprep.mubr.bf16.mxu0 0
      %801 = vmatmul.mubr.bf16.gmra.mrb[0].mxu0 %v763
      %v802 = vpop.f32.mrb[0].mxu0
      %v803 = vadd.f32 0.0, %v802
      %v804 = vpop.f32.mrb[0].mxu0
      %v805 = vpop.f32.mrb[0].mxu0
      %v806 = vpop.f32.mrb[0].mxu0
      %807 = vdwg.mxu0
      %v808 = vmul.f32 %v803, 0.35355338
      %v809 = vadd.f32 %v808, %v420
      %v810 = vsel %vm424, %v809, -inf
      %811 = vmax.xlane.f32.xlu0 %v810
      %v812 = vpop.xlane.xlu0 %811
      %v813 = vsub.f32 %v809, %v812
      %v814 = vmul.f32 %v813, 1.442695
      %v815 = vpow.pop %v814
      %v816 = vsel %vm424, %v815, 0.0
      %817 = vadd.xlane.f32.xlu0 %v816
      %v818 = vpop.xlane.xlu0 %817
      %v819 = vrcp.pop %v818
      %v820 = vmul.f32 %v815, %v819
      %v821 = vpack.c.bf16 %v820, %v820
      %822 = vrot.lane.b32.xlu0 %v411, 40
      %v823 = vpop.permute.xlu0 %822
      %v825 = vsel %vm424, %v821, 0
      %v828 = vsel %vm490, %v823, 0
      %830 = vmatprep.subr.bf16.mxu0 0
      %831 = vmatpush1.bf16.msra.mxu0 %v828
      %832 = vmatprep.subr.bf16.mxu0 0
      %833 = vmatpush1.bf16.msra.mxu0 0
      %834 = vmatprep.subr.bf16.mxu0 0
      %835 = vmatpush1.bf16.msra.mxu0 0
      %836 = vmatprep.subr.bf16.mxu0 0
      %837 = vmatpush1.bf16.msra.mxu0 0
      %838 = vmatprep.subr.bf16.mxu0 0
      %839 = vmatpush1.bf16.msra.mxu0 0
      %840 = vmatprep.subr.bf16.mxu0 0
      %841 = vmatpush1.bf16.msra.mxu0 0
      %842 = vmatprep.subr.bf16.mxu0 0
      %843 = vmatpush1.bf16.msra.mxu0 0
      %844 = vmatprep.subr.bf16.mxu0 0
      %845 = vmatpush1.bf16.msra.mxu0 0
      %846 = vmatprep.subr.bf16.mxu0 0
      %847 = vmatpush1.bf16.msra.mxu0 0
      %848 = vmatprep.subr.bf16.mxu0 0
      %849 = vmatpush1.bf16.msra.mxu0 0
      %850 = vmatprep.subr.bf16.mxu0 0
      %851 = vmatpush1.bf16.msra.mxu0 0
      %852 = vmatprep.subr.bf16.mxu0 0
      %853 = vmatpush1.bf16.msra.mxu0 0
      %854 = vmatprep.subr.bf16.mxu0 0
      %855 = vmatpush1.bf16.msra.mxu0 0
      %856 = vmatprep.subr.bf16.mxu0 0
      %857 = vmatpush1.bf16.msra.mxu0 0
      %858 = vmatprep.subr.bf16.mxu0 0
      %859 = vmatpush1.bf16.msra.mxu0 0
      %860 = vmatprep.subr.bf16.mxu0 0
      %861 = vmatpush1.bf16.msra.mxu0 0
      %862 = vmatprep.mubr.bf16.mxu0 0
      %863 = vmatmul.mubr.bf16.gmra.mrb[0].mxu0 %v825
      %v864 = vpop.f32.mrb[0].mxu0
      %v865 = vadd.f32 0.0, %v864
      %v866 = vpop.f32.mrb[0].mxu0
      %v867 = vpop.f32.mrb[0].mxu0
      %v868 = vpop.f32.mrb[0].mxu0
      %869 = vdwg.mxu0
      %871 = vrot.lane.b32.xlu0 %v641, 8
      %v872 = vpop.permute.xlu0 %871
      %875 = vrot.lane.b32.xlu0 %v753, 16
      %v876 = vpop.permute.xlu0 %875
      %879 = vrot.lane.b32.xlu0 %v865, 24
      %v880 = vpop.permute.xlu0 %879
      %v882 = vsel %vm424, %v529, %v872
      %vm883 = vcmask 130048
      %v884 = vsel %vm883, %v882, %v876
      %vm885 = vcmask 195584
      %v886 = vsel %vm885, %v884, %v880
      %v887 = vpack.c.bf16 %v886, %v886
      %v888 = vld [vmem:[%s3] sm:$0xf]
      %v889 = vld [vmem:[%s3 + $0x4] sm:$0xf]
      %v890 = vld [vmem:[%s3 + $0x8] sm:$0xf]
      %v891 = vld [vmem:[%s3 + $0xc] sm:$0xf]
      %v892 = vld [vmem:[%s4] sm:$0x1]
      %v894 = vlaneseq
      %v895 = vshrl.u32 %v894, 7
      %v896 = vsub.s32 0, %v895
      %v897 = vrot.slane %v892, %v896
      %v903 = vunpack.c.l.b16 %v888
      %v904 = vunpack.c.l.b16 %v889
      %v905 = vunpack.c.l.b16 %v890
      %v906 = vunpack.c.l.b16 %v891
      %v907 = vpack.c.b16 %v904, %v903
      %v908 = vpack.c.b16 %v906, %v905
      %v912 = vsel %vm367, %v887, 0
      %914 = vmatprep.subr.bf16.mxu0 0
      %915 = vmatpush1.bf16.msra.mxu0 %v907
      %916 = vmatprep.subr.bf16.mxu0 0
      %917 = vmatpush1.bf16.msra.mxu0 %v908
      %918 = vmatprep.subr.bf16.mxu0 0
      %919 = vmatpush1.bf16.msra.mxu0 0
      %920 = vmatprep.subr.bf16.mxu0 0
      %921 = vmatpush1.bf16.msra.mxu0 0
      %922 = vmatprep.subr.bf16.mxu0 0
      %923 = vmatpush1.bf16.msra.mxu0 0
      %924 = vmatprep.subr.bf16.mxu0 0
      %925 = vmatpush1.bf16.msra.mxu0 0
      %926 = vmatprep.subr.bf16.mxu0 0
      %927 = vmatpush1.bf16.msra.mxu0 0
      %928 = vmatprep.subr.bf16.mxu0 0
      %929 = vmatpush1.bf16.msra.mxu0 0
      %930 = vmatprep.subr.bf16.mxu0 0
      %931 = vmatpush1.bf16.msra.mxu0 0
      %932 = vmatprep.subr.bf16.mxu0 0
      %933 = vmatpush1.bf16.msra.mxu0 0
      %934 = vmatprep.subr.bf16.mxu0 0
      %935 = vmatpush1.bf16.msra.mxu0 0
      %936 = vmatprep.subr.bf16.mxu0 0
      %937 = vmatpush1.bf16.msra.mxu0 0
      %938 = vmatprep.subr.bf16.mxu0 0
      %939 = vmatpush1.bf16.msra.mxu0 0
      %940 = vmatprep.subr.bf16.mxu0 0
      %941 = vmatpush1.bf16.msra.mxu0 0
      %942 = vmatprep.subr.bf16.mxu0 0
      %943 = vmatpush1.bf16.msra.mxu0 0
      %944 = vmatprep.subr.bf16.mxu0 0
      %945 = vmatpush1.bf16.msra.mxu0 0
      %946 = vmatprep.mubr.bf16.mxu0 0
      %947 = vmatmul.mubr.bf16.gmra.mrb[0].mxu0 %v912
      %v948 = vpop.f32.mrb[0].mxu0
      %v949 = vadd.f32 %v897, %v948
      %v950 = vpop.f32.mrb[0].mxu0
      %v951 = vpop.f32.mrb[0].mxu0
      %v952 = vpop.f32.mrb[0].mxu0
      %953 = vdwg.mxu0
      %v954 = vunpack.c.l.bf16 %v343
      %v955 = vadd.f32 %v954, %v949
      %v956 = vsel %vm367, %v955, 0.0
      %957 = vadd.xlane.f32.xlu0 %v956
      %v958 = vpop.xlane.xlu0 %957
      %v959 = vrcp.pop 32.0
      %v960 = vmul.f32 %v958, %v959
      %v961 = vsub.f32 %v955, %v960
      %v962 = vmul.f32 %v961, %v961
      %v963 = vsel %vm367, %v962, 0.0
      %964 = vadd.xlane.f32.xlu0 %v963
      %v965 = vpop.xlane.xlu0 %964
      %v966 = vmul.f32 %v965, %v959
      %v967 = vadd.f32 %v966, 1e-05
      %v968 = vrsqrt.pop %v967
      %v969 = vmul.f32 %v961, %v968
      %v970 = vld [vmem:[%s7] sm:$0x1]
      %v972 = vlaneseq
      %v973 = vshrl.u32 %v972, 7
      %v974 = vsub.s32 0, %v973
      %v975 = vrot.slane %v970, %v974
      %v977 = vmul.f32 %v969, %v975
      %v978 = vld [vmem:[%s8] sm:$0x1]
      %v980 = vlaneseq
      %v981 = vshrl.u32 %v980, 7
      %v982 = vsub.s32 0, %v981
      %v983 = vrot.slane %v978, %v982
      %v985 = vadd.f32 %v977, %v983
      %v986 = vpack.c.bf16 %v985, %v985
      %vm987 = vcmask 257024
      %988 = vst.msk [vmem:[%s341] sm:$0xf] %vm987, %v986
      %p989 = scmp.lt.s32.totalorder %s20, 1
      %s990 = scalar_select %p989, %s20, 1
      %s991 = smul.addr %s990, 4
      %s992 = scalar_lea.vmem %s9, %s991
      // Predicated region
      $region57: #{transformer_decoder_forward.7} parent=55 // pred_check
        %p993 = pneg %p237
      $region58: #{transformer_decoder_forward.7} parent=55 // pred_check_branch
        %995 = sbr.rel (%p993) target = $region60
      $region59: #{transformer_decoder_forward.7} parent=55 // pred_region
        _
      $region60: #{transformer_decoder_forward.7} parent=55 // pred_fallthru
        _
    $region56: #{transformer_decoder_forward.7} parent=5 // pred_fallthru
      _
    %p996 = scmp.le.s32.totalorder 2, %s15
    // Predicated region
    $region61: #{transformer_decoder_forward.7} parent=5 // pred_check
      %p997 = pneg %p996
    $region62: #{transformer_decoder_forward.7} parent=5 // pred_check_branch
      %999 = sbr.rel (%p997) target = $region64
    $region63: #{transformer_decoder_forward.7} parent=5 // pred_region
      %s1000 = ssub.s32 %s15, 2
      // Predicated region
      $region65: #{transformer_decoder_forward.7} parent=63 // pred_check
        %p1001 = pneg %p243
      $region66: #{transformer_decoder_forward.7} parent=63 // pred_check_branch
        %1003 = sbr.rel (%p1001) target = $region68
      $region67: #{transformer_decoder_forward.7} parent=63 // pred_region
        %p1004 = scmp.lt.s32.totalorder %s21, 1
        %s1005 = scalar_select %p1004, %s21, 1
        %s1006 = smul.addr %s1005, 4
        %s1007 = scalar_lea.vmem %s9, %s1006
      $region68: #{transformer_decoder_forward.7} parent=63 // pred_fallthru
        _
    $region64: #{transformer_decoder_forward.7} parent=5 // pred_fallthru
      _
  $region6: #{transformer_decoder_forward.7} parent=0 // loop_footer
    %s19 = sadd.s32 1, %s15
  $region7: #{transformer_decoder_forward.7} parent=0 // loop_footer_branch
    %14 = sbr.rel target = $region3
  $region8: #{transformer_decoder_forward.7} parent=0 // loop_exit
    _

// kernel: transformer_decoder_forward.8
$region0: #{transformer_decoder_forward.8}
  #allocation0 [shape = 'u32[]', space=smem, size = 0x4, offset = 0x4, fixed_abs, tag = 'smem constant byte address 0x4 - core index']
  #allocation1 [shape = 'u32[144,128]{1,0:T(1,128)}', space=vmem, size = 0x12000, scoped, tag = 'internal scratch']
  %s0 = inlined_call_operand.vmem [shape: bf16[2,8,32], index: 0, kind: input, shape index: {}]
  %s1 = inlined_call_operand.vmem [shape: bf16[2,8,32], index: 1, kind: input, shape index: {}]
  %s2 = inlined_call_operand.vmem [shape: bf16[32,32], index: 2, kind: input, shape index: {}]
  %s3 = inlined_call_operand.vmem [shape: f32[1,32], index: 3, kind: input, shape index: {}]
  %s4 = inlined_call_operand.vmem [shape: bf16[32,64], index: 4, kind: input, shape index: {}]
  %s5 = inlined_call_operand.vmem [shape: f32[1,64], index: 5, kind: input, shape index: {}]
  %s6 = inlined_call_operand.vmem [shape: bf16[32,32], index: 6, kind: input, shape index: {}]
  %s7 = inlined_call_operand.vmem [shape: f32[1,32], index: 7, kind: input, shape index: {}]
  %s8 = inlined_call_operand.vmem [shape: f32[1,32], index: 8, kind: input, shape index: {}]
  %s9 = inlined_call_operand.vmem [shape: f32[1,32], index: 9, kind: input, shape index: {}]
  %s10 = inlined_call_operand.vmem [shape: bf16[2,8,32], index: 10, kind: output, shape index: {}]
  %s11 = sld [smem:[#allocation0]]
  $region73: #{transformer_decoder_forward.8} parent=0
    _
  %s13 = ssub.s32 1, %s11
  %s14 = scalar_select 0, %s13, %s11
  loop: start=0, step=1, limit=4
  $region2: #{transformer_decoder_forward.8} parent=0 // loop_pre_header
    _
  $region3: #{transformer_decoder_forward.8} parent=0 // loop_header
    %s16 = sphi 0, %s20
    %p17 = scmp.ge.s32.totalorder %s16, 4
    %s26 = sphi 0, %s28
    %s29 = sphi 0, %s26
    %s30 = sphi 0, %s29
    %s46 = sphi 0, %s30
    %s52 = sphi 0, %s54
    %s55 = sphi 0, %s52
    %s56 = sphi 0, %s55
    %s72 = sphi 0, %s56
    %s76 = sphi 0, %s76
    %s78 = sphi 0, %s76
    %s79 = sphi 0, %s78
    %s93 = sphi 0, %s79
    %s97 = sphi 0, %s97
    %s99 = sphi 0, %s97
    %s100 = sphi 0, %s99
    %s114 = sphi 0, %s100
    %s118 = sphi 0, %s118
    %s120 = sphi 0, %s118
    %s121 = sphi 0, %s120
    %s135 = sphi 0, %s121
    %s139 = sphi 0, %s139
    %s141 = sphi 0, %s139
    %s142 = sphi 0, %s141
    %s156 = sphi 0, %s142
    %s160 = sphi 0, %s160
    %s162 = sphi 0, %s160
    %s163 = sphi 0, %s162
    %s177 = sphi 0, %s163
    %s181 = sphi 0, %s181
    %s183 = sphi 0, %s181
    %s184 = sphi 0, %s183
    %s198 = sphi 0, %s184
    %s202 = sphi 0, %s202
    %s204 = sphi 0, %s202
    %s205 = sphi 0, %s204
    %s219 = sphi 0, %s205
    %s223 = sphi 0, %s223
    %s225 = sphi 0, %s223
    %s226 = sphi 0, %s225
    %s240 = sphi 0, %s226
    %s246 = sphi 0, %s248
    %s249 = sphi 0, %s246
    %s250 = sphi 0, %s249
    %s266 = sphi 0, %s250
  $region4: #{transformer_decoder_forward.8} parent=0 // loop_header_branch
    %19 = sbr.rel (%p17) target = $region8
  $region5: #{transformer_decoder_forward.8} parent=0 // loop_body
    %s21 = ssub.s32 %s16, 1
    %s22 = ssub.s32 %s16, 2
    %s23 = sadd.s32 %s16, 1
    %s24 = ssub.s32 %s16, %s23
    %p25 = scmp.eq.s32.totalorder %s24, 0
    %s27 = sadd.s32 %s26, 1
    %s28 = scalar_select %p25, %s26, %s27
    %p31 = pneg %p25
    %p32 = scmp.eq.s32.totalorder %s16, 1
    %p33 = por %p31, %p32
    %p34 = scmp.ne.s32.totalorder %s26, %s29
    %p35 = scmp.eq.s32.totalorder %s16, 0
    %p36 = por %p34, %p35
    %p37 = scmp.ne.s32.totalorder %s26, %s29
    %p38 = scmp.eq.s32.totalorder %s21, 1
    %p39 = por %p37, %p38
    %p40 = scmp.ne.s32.totalorder %s29, %s30
    %p41 = scmp.eq.s32.totalorder %s21, 0
    %p42 = por %p40, %p41
    %p43 = scmp.ne.s32.totalorder %s29, %s30
    %p44 = scmp.eq.s32.totalorder %s22, 1
    %p45 = por %p43, %p44
    %p47 = scmp.ne.s32.totalorder %s30, %s46
    %p48 = scmp.eq.s32.totalorder %s22, 0
    %p49 = por %p47, %p48
    %s50 = ssub.s32 %s16, %s23
    %p51 = scmp.eq.s32.totalorder %s50, 0
    %s53 = sadd.s32 %s52, 1
    %s54 = scalar_select %p51, %s52, %s53
    %p57 = pneg %p51
    %p58 = scmp.eq.s32.totalorder %s16, 1
    %p59 = por %p57, %p58
    %p60 = scmp.ne.s32.totalorder %s52, %s55
    %p61 = scmp.eq.s32.totalorder %s16, 0
    %p62 = por %p60, %p61
    %p63 = scmp.ne.s32.totalorder %s52, %s55
    %p64 = scmp.eq.s32.totalorder %s21, 1
    %p65 = por %p63, %p64
    %p66 = scmp.ne.s32.totalorder %s55, %s56
    %p67 = scmp.eq.s32.totalorder %s21, 0
    %p68 = por %p66, %p67
    %p69 = scmp.ne.s32.totalorder %s55, %s56
    %p70 = scmp.eq.s32.totalorder %s22, 1
    %p71 = por %p69, %p70
    %p73 = scmp.ne.s32.totalorder %s56, %s72
    %p74 = scmp.eq.s32.totalorder %s22, 0
    %p75 = por %p73, %p74
    %s77 = sadd.s32 %s76, 1
    %p80 = scmp.eq.s32.totalorder %s16, 1
    %p81 = scmp.ne.s32.totalorder %s76, %s78
    %p82 = scmp.eq.s32.totalorder %s16, 0
    %p83 = por %p81, %p82
    %p84 = scmp.ne.s32.totalorder %s76, %s78
    %p85 = scmp.eq.s32.totalorder %s21, 1
    %p86 = por %p84, %p85
    %p87 = scmp.ne.s32.totalorder %s78, %s79
    %p88 = scmp.eq.s32.totalorder %s21, 0
    %p89 = por %p87, %p88
    %p90 = scmp.ne.s32.totalorder %s78, %s79
    %p91 = scmp.eq.s32.totalorder %s22, 1
    %p92 = por %p90, %p91
    %p94 = scmp.ne.s32.totalorder %s79, %s93
    %p95 = scmp.eq.s32.totalorder %s22, 0
    %p96 = por %p94, %p95
    %s98 = sadd.s32 %s97, 1
    %p101 = scmp.eq.s32.totalorder %s16, 1
    %p102 = scmp.ne.s32.totalorder %s97, %s99
    %p103 = scmp.eq.s32.totalorder %s16, 0
    %p104 = por %p102, %p103
    %p105 = scmp.ne.s32.totalorder %s97, %s99
    %p106 = scmp.eq.s32.totalorder %s21, 1
    %p107 = por %p105, %p106
    %p108 = scmp.ne.s32.totalorder %s99, %s100
    %p109 = scmp.eq.s32.totalorder %s21, 0
    %p110 = por %p108, %p109
    %p111 = scmp.ne.s32.totalorder %s99, %s100
    %p112 = scmp.eq.s32.totalorder %s22, 1
    %p113 = por %p111, %p112
    %p115 = scmp.ne.s32.totalorder %s100, %s114
    %p116 = scmp.eq.s32.totalorder %s22, 0
    %p117 = por %p115, %p116
    %s119 = sadd.s32 %s118, 1
    %p122 = scmp.eq.s32.totalorder %s16, 1
    %p123 = scmp.ne.s32.totalorder %s118, %s120
    %p124 = scmp.eq.s32.totalorder %s16, 0
    %p125 = por %p123, %p124
    %p126 = scmp.ne.s32.totalorder %s118, %s120
    %p127 = scmp.eq.s32.totalorder %s21, 1
    %p128 = por %p126, %p127
    %p129 = scmp.ne.s32.totalorder %s120, %s121
    %p130 = scmp.eq.s32.totalorder %s21, 0
    %p131 = por %p129, %p130
    %p132 = scmp.ne.s32.totalorder %s120, %s121
    %p133 = scmp.eq.s32.totalorder %s22, 1
    %p134 = por %p132, %p133
    %p136 = scmp.ne.s32.totalorder %s121, %s135
    %p137 = scmp.eq.s32.totalorder %s22, 0
    %p138 = por %p136, %p137
    %s140 = sadd.s32 %s139, 1
    %p143 = scmp.eq.s32.totalorder %s16, 1
    %p144 = scmp.ne.s32.totalorder %s139, %s141
    %p145 = scmp.eq.s32.totalorder %s16, 0
    %p146 = por %p144, %p145
    %p147 = scmp.ne.s32.totalorder %s139, %s141
    %p148 = scmp.eq.s32.totalorder %s21, 1
    %p149 = por %p147, %p148
    %p150 = scmp.ne.s32.totalorder %s141, %s142
    %p151 = scmp.eq.s32.totalorder %s21, 0
    %p152 = por %p150, %p151
    %p153 = scmp.ne.s32.totalorder %s141, %s142
    %p154 = scmp.eq.s32.totalorder %s22, 1
    %p155 = por %p153, %p154
    %p157 = scmp.ne.s32.totalorder %s142, %s156
    %p158 = scmp.eq.s32.totalorder %s22, 0
    %p159 = por %p157, %p158
    %s161 = sadd.s32 %s160, 1
    %p164 = scmp.eq.s32.totalorder %s16, 1
    %p165 = scmp.ne.s32.totalorder %s160, %s162
    %p166 = scmp.eq.s32.totalorder %s16, 0
    %p167 = por %p165, %p166
    %p168 = scmp.ne.s32.totalorder %s160, %s162
    %p169 = scmp.eq.s32.totalorder %s21, 1
    %p170 = por %p168, %p169
    %p171 = scmp.ne.s32.totalorder %s162, %s163
    %p172 = scmp.eq.s32.totalorder %s21, 0
    %p173 = por %p171, %p172
    %p174 = scmp.ne.s32.totalorder %s162, %s163
    %p175 = scmp.eq.s32.totalorder %s22, 1
    %p176 = por %p174, %p175
    %p178 = scmp.ne.s32.totalorder %s163, %s177
    %p179 = scmp.eq.s32.totalorder %s22, 0
    %p180 = por %p178, %p179
    %s182 = sadd.s32 %s181, 1
    %p185 = scmp.eq.s32.totalorder %s16, 1
    %p186 = scmp.ne.s32.totalorder %s181, %s183
    %p187 = scmp.eq.s32.totalorder %s16, 0
    %p188 = por %p186, %p187
    %p189 = scmp.ne.s32.totalorder %s181, %s183
    %p190 = scmp.eq.s32.totalorder %s21, 1
    %p191 = por %p189, %p190
    %p192 = scmp.ne.s32.totalorder %s183, %s184
    %p193 = scmp.eq.s32.totalorder %s21, 0
    %p194 = por %p192, %p193
    %p195 = scmp.ne.s32.totalorder %s183, %s184
    %p196 = scmp.eq.s32.totalorder %s22, 1
    %p197 = por %p195, %p196
    %p199 = scmp.ne.s32.totalorder %s184, %s198
    %p200 = scmp.eq.s32.totalorder %s22, 0
    %p201 = por %p199, %p200
    %s203 = sadd.s32 %s202, 1
    %p206 = scmp.eq.s32.totalorder %s16, 1
    %p207 = scmp.ne.s32.totalorder %s202, %s204
    %p208 = scmp.eq.s32.totalorder %s16, 0
    %p209 = por %p207, %p208
    %p210 = scmp.ne.s32.totalorder %s202, %s204
    %p211 = scmp.eq.s32.totalorder %s21, 1
    %p212 = por %p210, %p211
    %p213 = scmp.ne.s32.totalorder %s204, %s205
    %p214 = scmp.eq.s32.totalorder %s21, 0
    %p215 = por %p213, %p214
    %p216 = scmp.ne.s32.totalorder %s204, %s205
    %p217 = scmp.eq.s32.totalorder %s22, 1
    %p218 = por %p216, %p217
    %p220 = scmp.ne.s32.totalorder %s205, %s219
    %p221 = scmp.eq.s32.totalorder %s22, 0
    %p222 = por %p220, %p221
    %s224 = sadd.s32 %s223, 1
    %p227 = scmp.eq.s32.totalorder %s16, 1
    %p228 = scmp.ne.s32.totalorder %s223, %s225
    %p229 = scmp.eq.s32.totalorder %s16, 0
    %p230 = por %p228, %p229
    %p231 = scmp.ne.s32.totalorder %s223, %s225
    %p232 = scmp.eq.s32.totalorder %s21, 1
    %p233 = por %p231, %p232
    %p234 = scmp.ne.s32.totalorder %s225, %s226
    %p235 = scmp.eq.s32.totalorder %s21, 0
    %p236 = por %p234, %p235
    %p237 = scmp.ne.s32.totalorder %s225, %s226
    %p238 = scmp.eq.s32.totalorder %s22, 1
    %p239 = por %p237, %p238
    %p241 = scmp.ne.s32.totalorder %s226, %s240
    %p242 = scmp.eq.s32.totalorder %s22, 0
    %p243 = por %p241, %p242
    %s244 = ssub.s32 %s16, %s23
    %p245 = scmp.eq.s32.totalorder %s244, 0
    %s247 = sadd.s32 %s246, 1
    %s248 = scalar_select %p245, %s246, %s247
    %p251 = pneg %p245
    %p252 = scmp.eq.s32.totalorder %s16, 1
    %p253 = por %p251, %p252
    %p254 = scmp.ne.s32.totalorder %s246, %s249
    %p255 = scmp.eq.s32.totalorder %s16, 0
    %p256 = por %p254, %p255
    %p257 = scmp.ne.s32.totalorder %s246, %s249
    %p258 = scmp.eq.s32.totalorder %s21, 1
    %p259 = por %p257, %p258
    %p260 = scmp.ne.s32.totalorder %s249, %s250
    %p261 = scmp.eq.s32.totalorder %s21, 0
    %p262 = por %p260, %p261
    %p263 = scmp.ne.s32.totalorder %s249, %s250
    %p264 = scmp.eq.s32.totalorder %s22, 1
    %p265 = por %p263, %p264
    %p267 = scmp.ne.s32.totalorder %s250, %s266
    %p268 = scmp.eq.s32.totalorder %s22, 0
    %p269 = por %p267, %p268
    %p270 = scmp.le.s32.totalorder 1, %s16
    %p271 = scmp.lt.s32.totalorder %s16, 3
    %p272 = pnand %p270, %p271
    %p273 = pneg %p272
    // Predicated region
    $region9: #{transformer_decoder_forward.8} parent=5 // pred_check
      _
    $region10: #{transformer_decoder_forward.8} parent=5 // pred_check_branch
      %275 = sbr.rel (%p272) target = $region12
    $region11: #{transformer_decoder_forward.8} parent=5 // pred_region
      %s276 = ssub.s32 %s16, 1
      // Predicated region
      $region13: #{transformer_decoder_forward.8} parent=11 // pred_check
        %p277 = pneg %p89
      $region14: #{transformer_decoder_forward.8} parent=11 // pred_check_branch
        %279 = sbr.rel (%p277) target = $region16
      $region15: #{transformer_decoder_forward.8} parent=11 // pred_region
        _
      $region16: #{transformer_decoder_forward.8} parent=11 // pred_fallthru
        _
      // Predicated region
      $region17: #{transformer_decoder_forward.8} parent=11 // pred_check
        %p280 = pneg %p110
      $region18: #{transformer_decoder_forward.8} parent=11 // pred_check_branch
        %282 = sbr.rel (%p280) target = $region20
      $region19: #{transformer_decoder_forward.8} parent=11 // pred_region
        _
      $region20: #{transformer_decoder_forward.8} parent=11 // pred_fallthru
        _
      // Predicated region
      $region21: #{transformer_decoder_forward.8} parent=11 // pred_check
        %p283 = pneg %p131
      $region22: #{transformer_decoder_forward.8} parent=11 // pred_check_branch
        %285 = sbr.rel (%p283) target = $region24
      $region23: #{transformer_decoder_forward.8} parent=11 // pred_region
        _
      $region24: #{transformer_decoder_forward.8} parent=11 // pred_fallthru
        _
      // Predicated region
      $region25: #{transformer_decoder_forward.8} parent=11 // pred_check
        %p286 = pneg %p152
      $region26: #{transformer_decoder_forward.8} parent=11 // pred_check_branch
        %288 = sbr.rel (%p286) target = $region28
      $region27: #{transformer_decoder_forward.8} parent=11 // pred_region
        _
      $region28: #{transformer_decoder_forward.8} parent=11 // pred_fallthru
        _
      // Predicated region
      $region29: #{transformer_decoder_forward.8} parent=11 // pred_check
        %p289 = pneg %p173
      $region30: #{transformer_decoder_forward.8} parent=11 // pred_check_branch
        %291 = sbr.rel (%p289) target = $region32
      $region31: #{transformer_decoder_forward.8} parent=11 // pred_region
        _
      $region32: #{transformer_decoder_forward.8} parent=11 // pred_fallthru
        _
      // Predicated region
      $region33: #{transformer_decoder_forward.8} parent=11 // pred_check
        %p292 = pneg %p194
      $region34: #{transformer_decoder_forward.8} parent=11 // pred_check_branch
        %294 = sbr.rel (%p292) target = $region36
      $region35: #{transformer_decoder_forward.8} parent=11 // pred_region
        _
      $region36: #{transformer_decoder_forward.8} parent=11 // pred_fallthru
        _
      // Predicated region
      $region37: #{transformer_decoder_forward.8} parent=11 // pred_check
        %p295 = pneg %p215
      $region38: #{transformer_decoder_forward.8} parent=11 // pred_check_branch
        %297 = sbr.rel (%p295) target = $region40
      $region39: #{transformer_decoder_forward.8} parent=11 // pred_region
        _
      $region40: #{transformer_decoder_forward.8} parent=11 // pred_fallthru
        _
      // Predicated region
      $region41: #{transformer_decoder_forward.8} parent=11 // pred_check
        %p298 = pneg %p236
      $region42: #{transformer_decoder_forward.8} parent=11 // pred_check_branch
        %300 = sbr.rel (%p298) target = $region44
      $region43: #{transformer_decoder_forward.8} parent=11 // pred_region
        _
      $region44: #{transformer_decoder_forward.8} parent=11 // pred_fallthru
        _
    $region12: #{transformer_decoder_forward.8} parent=5 // pred_fallthru
      _
    %p301 = scmp.lt.s32.totalorder %s16, 2
    // Predicated region
    $region45: #{transformer_decoder_forward.8} parent=5 // pred_check
      %p302 = pneg %p301
    $region46: #{transformer_decoder_forward.8} parent=5 // pred_check_branch
      %304 = sbr.rel (%p302) target = $region48
    $region47: #{transformer_decoder_forward.8} parent=5 // pred_region
      // Predicated region
      $region49: #{transformer_decoder_forward.8} parent=47 // pred_check
        %p305 = pneg %p36
      $region50: #{transformer_decoder_forward.8} parent=47 // pred_check_branch
        %307 = sbr.rel (%p305) target = $region52
      $region51: #{transformer_decoder_forward.8} parent=47 // pred_region
        %p308 = scmp.lt.s32.totalorder %s16, 1
        %s309 = scalar_select %p308, %s16, 1
        %s310 = smul.addr %s309, 4
        %s311 = scalar_lea.vmem %s0, %s310
      $region52: #{transformer_decoder_forward.8} parent=47 // pred_fallthru
        _
      // Predicated region
      $region53: #{transformer_decoder_forward.8} parent=47 // pred_check
        %p312 = pneg %p62
      $region54: #{transformer_decoder_forward.8} parent=47 // pred_check_branch
        %314 = sbr.rel (%p312) target = $region56
      $region55: #{transformer_decoder_forward.8} parent=47 // pred_region
        %p315 = scmp.lt.s32.totalorder %s16, 1
        %s316 = scalar_select %p315, %s16, 1
        %s317 = smul.addr %s316, 4
        %s318 = scalar_lea.vmem %s1, %s317
      $region56: #{transformer_decoder_forward.8} parent=47 // pred_fallthru
        _
    $region48: #{transformer_decoder_forward.8} parent=5 // pred_fallthru
      _
    %p319 = scmp.le.s32.totalorder 1, %s16
    %p320 = scmp.lt.s32.totalorder %s16, 3
    %p321 = pnand %p319, %p320
    %p322 = pneg %p321
    // Predicated region
    $region57: #{transformer_decoder_forward.8} parent=5 // pred_check
      _
    $region58: #{transformer_decoder_forward.8} parent=5 // pred_check_branch
      %324 = sbr.rel (%p321) target = $region60
    $region59: #{transformer_decoder_forward.8} parent=5 // pred_region
      %s325 = ssub.s32 %s16, 1
      %p326 = scmp.lt.s32.totalorder %s21, 1
      %s327 = scalar_select %p326, %s21, 1
      %s328 = smul.addr %s327, 4
      %s329 = scalar_lea.vmem %s0, %s328
      %p330 = pneg %p42
      %p331 = pneg %p39
      %p332 = scmp.lt.s32.totalorder %s21, 1
      %s333 = scalar_select %p332, %s21, 1
      %s334 = smul.addr %s333, 4
      %s335 = scalar_lea.vmem %s1, %s334
      %p336 = pneg %p68
      %p337 = pneg %p65
      %p338 = pneg %p89
      %p339 = pneg %p86
      %p340 = pneg %p110
      %p341 = pneg %p107
      %p342 = pneg %p131
      %p343 = pneg %p128
      %p344 = pneg %p152
      %p345 = pneg %p149
      %p346 = pneg %p173
      %p347 = pneg %p170
      %p348 = pneg %p194
      %p349 = pneg %p191
      %p350 = pneg %p215
      %p351 = pneg %p212
      %p352 = pneg %p236
      %p353 = pneg %p233
      %p354 = pneg %p262
      %p355 = pneg %p259
      %p356 = scmp.lt.s32.totalorder %s21, 1
      %s357 = scalar_select %p356, %s21, 1
      %s358 = smul.addr %s357, 4
      %s359 = scalar_lea.vmem %s10, %s358
      %p360 = scmp.lt.s32.totalorder %s21, 1
      %s361 = scalar_select %p360, %s21, 1
      %s362 = smul.addr %s361, 4
      %s363 = scalar_lea.vmem %s0, %s362
      %p364 = scmp.lt.s32.totalorder %s21, 1
      %s365 = scalar_select %p364, %s21, 1
      %s366 = smul.addr %s365, 4
      %s367 = scalar_lea.vmem %s1, %s366
      %p368 = scmp.lt.s32.totalorder %s21, 1
      %s369 = scalar_select %p368, %s21, 1
      %s370 = smul.addr %s369, 4
      %s371 = scalar_lea.vmem %s10, %s370
      %v373 = vld [vmem:[%s363] sm:$0xf]
      %v374 = vld [vmem:[%s367] sm:$0xf]
      %v375 = vld [vmem:[%s2] sm:$0xf]
      %v376 = vld [vmem:[%s2 + $0x4] sm:$0xf]
      %v377 = vld [vmem:[%s2 + $0x8] sm:$0xf]
      %v378 = vld [vmem:[%s2 + $0xc] sm:$0xf]
      %v379 = vld [vmem:[%s3] sm:$0x1]
      %v381 = vlaneseq
      %v382 = vshrl.u32 %v381, 7
      %v383 = vsub.s32 0, %v382
      %v384 = vrot.slane %v379, %v383
      %v390 = vunpack.c.l.b16 %v375
      %v391 = vunpack.c.l.b16 %v376
      %v392 = vunpack.c.l.b16 %v377
      %v393 = vunpack.c.l.b16 %v378
      %v394 = vpack.c.b16 %v391, %v390
      %v395 = vpack.c.b16 %v393, %v392
      %vm398 = vcmask 261120
      %v400 = vsel %vm398, %v373, 0
      %402 = vmatprep.subr.bf16.mxu0 0
      %403 = vmatpush1.bf16.msra.mxu0 %v394
      %404 = vmatprep.subr.bf16.mxu0 0
      %405 = vmatpush1.bf16.msra.mxu0 %v395
      %406 = vmatprep.subr.bf16.mxu0 0
      %407 = vmatpush1.bf16.msra.mxu0 0
      %408 = vmatprep.subr.bf16.mxu0 0
      %409 = vmatpush1.bf16.msra.mxu0 0
      %410 = vmatprep.subr.bf16.mxu0 0
      %411 = vmatpush1.bf16.msra.mxu0 0
      %412 = vmatprep.subr.bf16.mxu0 0
      %413 = vmatpush1.bf16.msra.mxu0 0
      %414 = vmatprep.subr.bf16.mxu0 0
      %415 = vmatpush1.bf16.msra.mxu0 0
      %416 = vmatprep.subr.bf16.mxu0 0
      %417 = vmatpush1.bf16.msra.mxu0 0
      %418 = vmatprep.subr.bf16.mxu0 0
      %419 = vmatpush1.bf16.msra.mxu0 0
      %420 = vmatprep.subr.bf16.mxu0 0
      %421 = vmatpush1.bf16.msra.mxu0 0
      %422 = vmatprep.subr.bf16.mxu0 0
      %423 = vmatpush1.bf16.msra.mxu0 0
      %424 = vmatprep.subr.bf16.mxu0 0
      %425 = vmatpush1.bf16.msra.mxu0 0
      %426 = vmatprep.subr.bf16.mxu0 0
      %427 = vmatpush1.bf16.msra.mxu0 0
      %428 = vmatprep.subr.bf16.mxu0 0
      %429 = vmatpush1.bf16.msra.mxu0 0
      %430 = vmatprep.subr.bf16.mxu0 0
      %431 = vmatpush1.bf16.msra.mxu0 0
      %432 = vmatprep.subr.bf16.mxu0 0
      %433 = vmatpush1.bf16.msra.mxu0 0
      %434 = vmatprep.mubr.bf16.mxu0 0
      %435 = vmatmul.mubr.bf16.gmra.mrb[0].mxu0 %v400
      %v436 = vpop.f32.mrb[0].mxu0
      %v437 = vadd.f32 %v384, %v436
      %v438 = vpop.f32.mrb[0].mxu0
      %v439 = vpop.f32.mrb[0].mxu0
      %v440 = vpop.f32.mrb[0].mxu0
      %441 = vdwg.mxu0
      %v442 = vpack.c.bf16 %v437, %v437
      %v443 = vld [vmem:[%s4] sm:$0xf]
      %v444 = vld [vmem:[%s4 + $0x4] sm:$0xf]
      %v445 = vld [vmem:[%s4 + $0x8] sm:$0xf]
      %v446 = vld [vmem:[%s4 + $0xc] sm:$0xf]
      %v447 = vld [vmem:[%s5] sm:$0x1]
      %v449 = vlaneseq
      %v450 = vshrl.u32 %v449, 7
      %v451 = vsub.s32 0, %v450
      %v452 = vrot.slane %v447, %v451
      %v458 = vunpack.c.l.b16 %v443
      %v459 = vunpack.c.l.b16 %v444
      %v460 = vunpack.c.l.b16 %v445
      %v461 = vunpack.c.l.b16 %v446
      %v462 = vpack.c.b16 %v459, %v458
      %v463 = vpack.c.b16 %v461, %v460
      %v467 = vsel %vm398, %v374, 0
      %469 = vmatprep.subr.bf16.mxu0 0
      %470 = vmatpush1.bf16.msra.mxu0 %v462
      %471 = vmatprep.subr.bf16.mxu0 0
      %472 = vmatpush1.bf16.msra.mxu0 %v463
      %473 = vmatprep.subr.bf16.mxu0 0
      %474 = vmatpush1.bf16.msra.mxu0 0
      %475 = vmatprep.subr.bf16.mxu0 0
      %476 = vmatpush1.bf16.msra.mxu0 0
      %477 = vmatprep.subr.bf16.mxu0 0
      %478 = vmatpush1.bf16.msra.mxu0 0
      %479 = vmatprep.subr.bf16.mxu0 0
      %480 = vmatpush1.bf16.msra.mxu0 0
      %481 = vmatprep.subr.bf16.mxu0 0
      %482 = vmatpush1.bf16.msra.mxu0 0
      %483 = vmatprep.subr.bf16.mxu0 0
      %484 = vmatpush1.bf16.msra.mxu0 0
      %485 = vmatprep.subr.bf16.mxu0 0
      %486 = vmatpush1.bf16.msra.mxu0 0
      %487 = vmatprep.subr.bf16.mxu0 0
      %488 = vmatpush1.bf16.msra.mxu0 0
      %489 = vmatprep.subr.bf16.mxu0 0
      %490 = vmatpush1.bf16.msra.mxu0 0
      %491 = vmatprep.subr.bf16.mxu0 0
      %492 = vmatpush1.bf16.msra.mxu0 0
      %493 = vmatprep.subr.bf16.mxu0 0
      %494 = vmatpush1.bf16.msra.mxu0 0
      %495 = vmatprep.subr.bf16.mxu0 0
      %496 = vmatpush1.bf16.msra.mxu0 0
      %497 = vmatprep.subr.bf16.mxu0 0
      %498 = vmatpush1.bf16.msra.mxu0 0
      %499 = vmatprep.subr.bf16.mxu0 0
      %500 = vmatpush1.bf16.msra.mxu0 0
      %501 = vmatprep.mubr.bf16.mxu0 0
      %502 = vmatmul.mubr.bf16.gmra.mrb[0].mxu0 %v467
      %v503 = vpop.f32.mrb[0].mxu0
      %v504 = vadd.f32 %v452, %v503
      %v505 = vpop.f32.mrb[0].mxu0
      %v506 = vpop.f32.mrb[0].mxu0
      %v507 = vpop.f32.mrb[0].mxu0
      %508 = vdwg.mxu0
      %v509 = vpack.c.bf16 %v504, %v504
      %vm510 = vcmask 64512
      %v512 = vsel %vm510, %v442, 0
      %v515 = vsel %vm510, %v509, 0
      %517 = vmatprep.subr.bf16.mxu0 0
      %518 = vmatpush1.bf16.xpose.msra.mxu0 %v515
      %519 = vmatprep.subr.bf16.mxu0 0
      %520 = vmatpush1.bf16.xpose.msra.mxu0 0
      %521 = vmatprep.subr.bf16.mxu0 0
      %522 = vmatpush1.bf16.xpose.msra.mxu0 0
      %523 = vmatprep.subr.bf16.mxu0 0
      %524 = vmatpush1.bf16.xpose.msra.mxu0 0
      %525 = vmatprep.subr.bf16.mxu0 0
      %526 = vmatpush1.bf16.xpose.msra.mxu0 0
      %527 = vmatprep.subr.bf16.mxu0 0
      %528 = vmatpush1.bf16.xpose.msra.mxu0 0
      %529 = vmatprep.subr.bf16.mxu0 0
      %530 = vmatpush1.bf16.xpose.msra.mxu0 0
      %531 = vmatprep.subr.bf16.mxu0 0
      %532 = vmatpush1.bf16.xpose.msra.mxu0 0
      %533 = vmatprep.subr.bf16.mxu0 0
      %534 = vmatpush1.bf16.xpose.msra.mxu0 0
      %535 = vmatprep.subr.bf16.mxu0 0
      %536 = vmatpush1.bf16.xpose.msra.mxu0 0
      %537 = vmatprep.subr.bf16.mxu0 0
      %538 = vmatpush1.bf16.xpose.msra.mxu0 0
      %539 = vmatprep.subr.bf16.mxu0 0
      %540 = vmatpush1.bf16.xpose.msra.mxu0 0
      %541 = vmatprep.subr.bf16.mxu0 0
      %542 = vmatpush1.bf16.xpose.msra.mxu0 0
      %543 = vmatprep.subr.bf16.mxu0 0
      %544 = vmatpush1.bf16.xpose.msra.mxu0 0
      %545 = vmatprep.subr.bf16.mxu0 0
      %546 = vmatpush1.bf16.xpose.msra.mxu0 0
      %547 = vmatprep.subr.bf16.mxu0 0
      %548 = vmatpush1.bf16.xpose.msra.mxu0 0
      %549 = vmatprep.mubr.bf16.mxu0 0
      %550 = vmatmul.mubr.bf16.gmra.mrb[0].mxu0 %v512
      %v551 = vpop.f32.mrb[0].mxu0
      %v552 = vadd.f32 0.0, %v551
      %v553 = vpop.f32.mrb[0].mxu0
      %v554 = vpop.f32.mrb[0].mxu0
      %v555 = vpop.f32.mrb[0].mxu0
      %556 = vdwg.mxu0
      %v557 = vmul.f32 %v552, 0.35355338
      %v558 = vsel %vm510, %v557, -inf
      %559 = vmax.xlane.f32.xlu0 %v558
      %v560 = vpop.xlane.xlu0 %559
      %v561 = vsub.f32 %v557, %v560
      %v562 = vmul.f32 %v561, 1.442695
      %v563 = vpow.pop %v562
      %v564 = vsel %vm510, %v563, 0.0
      %565 = vadd.xlane.f32.xlu0 %v564
      %v566 = vpop.xlane.xlu0 %565
      %v567 = vrcp.pop %v566
      %v568 = vmul.f32 %v563, %v567
      %v569 = vpack.c.bf16 %v568, %v568
      %571 = vrot.lane.b32.xlu0 %v509, 96
      %v572 = vpop.permute.xlu0 %571
      %v574 = vsel %vm510, %v569, 0
      %vm576 = vcmask 1043456
      %v578 = vsel %vm576, %v572, 0
      %580 = vmatprep.subr.bf16.mxu0 0
      %581 = vmatpush1.bf16.msra.mxu0 %v578
      %582 = vmatprep.subr.bf16.mxu0 0
      %583 = vmatpush1.bf16.msra.mxu0 0
      %584 = vmatprep.subr.bf16.mxu0 0
      %585 = vmatpush1.bf16.msra.mxu0 0
      %586 = vmatprep.subr.bf16.mxu0 0
      %587 = vmatpush1.bf16.msra.mxu0 0
      %588 = vmatprep.subr.bf16.mxu0 0
      %589 = vmatpush1.bf16.msra.mxu0 0
      %590 = vmatprep.subr.bf16.mxu0 0
      %591 = vmatpush1.bf16.msra.mxu0 0
      %592 = vmatprep.subr.bf16.mxu0 0
      %593 = vmatpush1.bf16.msra.mxu0 0
      %594 = vmatprep.subr.bf16.mxu0 0
      %595 = vmatpush1.bf16.msra.mxu0 0
      %596 = vmatprep.subr.bf16.mxu0 0
      %597 = vmatpush1.bf16.msra.mxu0 0
      %598 = vmatprep.subr.bf16.mxu0 0
      %599 = vmatpush1.bf16.msra.mxu0 0
      %600 = vmatprep.subr.bf16.mxu0 0
      %601 = vmatpush1.bf16.msra.mxu0 0
      %602 = vmatprep.subr.bf16.mxu0 0
      %603 = vmatpush1.bf16.msra.mxu0 0
      %604 = vmatprep.subr.bf16.mxu0 0
      %605 = vmatpush1.bf16.msra.mxu0 0
      %606 = vmatprep.subr.bf16.mxu0 0
      %607 = vmatpush1.bf16.msra.mxu0 0
      %608 = vmatprep.subr.bf16.mxu0 0
      %609 = vmatpush1.bf16.msra.mxu0 0
      %610 = vmatprep.subr.bf16.mxu0 0
      %611 = vmatpush1.bf16.msra.mxu0 0
      %612 = vmatprep.mubr.bf16.mxu0 0
      %613 = vmatmul.mubr.bf16.gmra.mrb[0].mxu0 %v574
      %v614 = vpop.f32.mrb[0].mxu0
      %v615 = vadd.f32 0.0, %v614
      %v616 = vpop.f32.mrb[0].mxu0
      %v617 = vpop.f32.mrb[0].mxu0
      %v618 = vpop.f32.mrb[0].mxu0
      %619 = vdwg.mxu0
      %621 = vrot.lane.b32.xlu0 %v442, 120
      %v622 = vpop.permute.xlu0 %621
      %623 = vrot.lane.b32.xlu0 %v509, 120
      %v624 = vpop.permute.xlu0 %623
      %v626 = vsel %vm510, %v622, 0
      %v629 = vsel %vm510, %v624, 0
      %631 = vmatprep.subr.bf16.mxu0 0
      %632 = vmatpush1.bf16.xpose.msra.mxu0 %v629
      %633 = vmatprep.subr.bf16.mxu0 0
      %634 = vmatpush1.bf16.xpose.msra.mxu0 0
      %635 = vmatprep.subr.bf16.mxu0 0
      %636 = vmatpush1.bf16.xpose.msra.mxu0 0
      %637 = vmatprep.subr.bf16.mxu0 0
      %638 = vmatpush1.bf16.xpose.msra.mxu0 0
      %639 = vmatprep.subr.bf16.mxu0 0
      %640 = vmatpush1.bf16.xpose.msra.mxu0 0
      %641 = vmatprep.subr.bf16.mxu0 0
      %642 = vmatpush1.bf16.xpose.msra.mxu0 0
      %643 = vmatprep.subr.bf16.mxu0 0
      %644 = vmatpush1.bf16.xpose.msra.mxu0 0
      %645 = vmatprep.subr.bf16.mxu0 0
      %646 = vmatpush1.bf16.xpose.msra.mxu0 0
      %647 = vmatprep.subr.bf16.mxu0 0
      %648 = vmatpush1.bf16.xpose.msra.mxu0 0
      %649 = vmatprep.subr.bf16.mxu0 0
      %650 = vmatpush1.bf16.xpose.msra.mxu0 0
      %651 = vmatprep.subr.bf16.mxu0 0
      %652 = vmatpush1.bf16.xpose.msra.mxu0 0
      %653 = vmatprep.subr.bf16.mxu0 0
      %654 = vmatpush1.bf16.xpose.msra.mxu0 0
      %655 = vmatprep.subr.bf16.mxu0 0
      %656 = vmatpush1.bf16.xpose.msra.mxu0 0
      %657 = vmatprep.subr.bf16.mxu0 0
      %658 = vmatpush1.bf16.xpose.msra.mxu0 0
      %659 = vmatprep.subr.bf16.mxu0 0
      %660 = vmatpush1.bf16.xpose.msra.mxu0 0
      %661 = vmatprep.subr.bf16.mxu0 0
      %662 = vmatpush1.bf16.xpose.msra.mxu0 0
      %663 = vmatprep.mubr.bf16.mxu0 0
      %664 = vmatmul.mubr.bf16.gmra.mrb[0].mxu0 %v626
      %v665 = vpop.f32.mrb[0].mxu0
      %v666 = vadd.f32 0.0, %v665
      %v667 = vpop.f32.mrb[0].mxu0
      %v668 = vpop.f32.mrb[0].mxu0
      %v669 = vpop.f32.mrb[0].mxu0
      %670 = vdwg.mxu0
      %v671 = vmul.f32 %v666, 0.35355338
      %v672 = vsel %vm510, %v671, -inf
      %673 = vmax.xlane.f32.xlu0 %v672
      %v674 = vpop.xlane.xlu0 %673
      %v675 = vsub.f32 %v671, %v674
      %v676 = vmul.f32 %v675, 1.442695
      %v677 = vpow.pop %v676
      %v678 = vsel %vm510, %v677, 0.0
      %679 = vadd.xlane.f32.xlu0 %v678
      %v680 = vpop.xlane.xlu0 %679
      %v681 = vrcp.pop %v680
      %v682 = vmul.f32 %v677, %v681
      %v683 = vpack.c.bf16 %v682, %v682
      %684 = vrot.lane.b32.xlu0 %v509, 88
      %v685 = vpop.permute.xlu0 %684
      %v687 = vsel %vm510, %v683, 0
      %v690 = vsel %vm576, %v685, 0
      %692 = vmatprep.subr.bf16.mxu0 0
      %693 = vmatpush1.bf16.msra.mxu0 %v690
      %694 = vmatprep.subr.bf16.mxu0 0
      %695 = vmatpush1.bf16.msra.mxu0 0
      %696 = vmatprep.subr.bf16.mxu0 0
      %697 = vmatpush1.bf16.msra.mxu0 0
      %698 = vmatprep.subr.bf16.mxu0 0
      %699 = vmatpush1.bf16.msra.mxu0 0
      %700 = vmatprep.subr.bf16.mxu0 0
      %701 = vmatpush1.bf16.msra.mxu0 0
      %702 = vmatprep.subr.bf16.mxu0 0
      %703 = vmatpush1.bf16.msra.mxu0 0
      %704 = vmatprep.subr.bf16.mxu0 0
      %705 = vmatpush1.bf16.msra.mxu0 0
      %706 = vmatprep.subr.bf16.mxu0 0
      %707 = vmatpush1.bf16.msra.mxu0 0
      %708 = vmatprep.subr.bf16.mxu0 0
      %709 = vmatpush1.bf16.msra.mxu0 0
      %710 = vmatprep.subr.bf16.mxu0 0
      %711 = vmatpush1.bf16.msra.mxu0 0
      %712 = vmatprep.subr.bf16.mxu0 0
      %713 = vmatpush1.bf16.msra.mxu0 0
      %714 = vmatprep.subr.bf16.mxu0 0
      %715 = vmatpush1.bf16.msra.mxu0 0
      %716 = vmatprep.subr.bf16.mxu0 0
      %717 = vmatpush1.bf16.msra.mxu0 0
      %718 = vmatprep.subr.bf16.mxu0 0
      %719 = vmatpush1.bf16.msra.mxu0 0
      %720 = vmatprep.subr.bf16.mxu0 0
      %721 = vmatpush1.bf16.msra.mxu0 0
      %722 = vmatprep.subr.bf16.mxu0 0
      %723 = vmatpush1.bf16.msra.mxu0 0
      %724 = vmatprep.mubr.bf16.mxu0 0
      %725 = vmatmul.mubr.bf16.gmra.mrb[0].mxu0 %v687
      %v726 = vpop.f32.mrb[0].mxu0
      %v727 = vadd.f32 0.0, %v726
      %v728 = vpop.f32.mrb[0].mxu0
      %v729 = vpop.f32.mrb[0].mxu0
      %v730 = vpop.f32.mrb[0].mxu0
      %731 = vdwg.mxu0
      %732 = vrot.lane.b32.xlu0 %v442, 112
      %v733 = vpop.permute.xlu0 %732
      %734 = vrot.lane.b32.xlu0 %v509, 112
      %v735 = vpop.permute.xlu0 %734
      %v737 = vsel %vm510, %v733, 0
      %v740 = vsel %vm510, %v735, 0
      %742 = vmatprep.subr.bf16.mxu0 0
      %743 = vmatpush1.bf16.xpose.msra.mxu0 %v740
      %744 = vmatprep.subr.bf16.mxu0 0
      %745 = vmatpush1.bf16.xpose.msra.mxu0 0
      %746 = vmatprep.subr.bf16.mxu0 0
      %747 = vmatpush1.bf16.xpose.msra.mxu0 0
      %748 = vmatprep.subr.bf16.mxu0 0
      %749 = vmatpush1.bf16.xpose.msra.mxu0 0
      %750 = vmatprep.subr.bf16.mxu0 0
      %751 = vmatpush1.bf16.xpose.msra.mxu0 0
      %752 = vmatprep.subr.bf16.mxu0 0
      %753 = vmatpush1.bf16.xpose.msra.mxu0 0
      %754 = vmatprep.subr.bf16.mxu0 0
      %755 = vmatpush1.bf16.xpose.msra.mxu0 0
      %756 = vmatprep.subr.bf16.mxu0 0
      %757 = vmatpush1.bf16.xpose.msra.mxu0 0
      %758 = vmatprep.subr.bf16.mxu0 0
      %759 = vmatpush1.bf16.xpose.msra.mxu0 0
      %760 = vmatprep.subr.bf16.mxu0 0
      %761 = vmatpush1.bf16.xpose.msra.mxu0 0
      %762 = vmatprep.subr.bf16.mxu0 0
      %763 = vmatpush1.bf16.xpose.msra.mxu0 0
      %764 = vmatprep.subr.bf16.mxu0 0
      %765 = vmatpush1.bf16.xpose.msra.mxu0 0
      %766 = vmatprep.subr.bf16.mxu0 0
      %767 = vmatpush1.bf16.xpose.msra.mxu0 0
      %768 = vmatprep.subr.bf16.mxu0 0
      %769 = vmatpush1.bf16.xpose.msra.mxu0 0
      %770 = vmatprep.subr.bf16.mxu0 0
      %771 = vmatpush1.bf16.xpose.msra.mxu0 0
      %772 = vmatprep.subr.bf16.mxu0 0
      %773 = vmatpush1.bf16.xpose.msra.mxu0 0
      %774 = vmatprep.mubr.bf16.mxu0 0
      %775 = vmatmul.mubr.bf16.gmra.mrb[0].mxu0 %v737
      %v776 = vpop.f32.mrb[0].mxu0
      %v777 = vadd.f32 0.0, %v776
      %v778 = vpop.f32.mrb[0].mxu0
      %v779 = vpop.f32.mrb[0].mxu0
      %v780 = vpop.f32.mrb[0].mxu0
      %781 = vdwg.mxu0
      %v782 = vmul.f32 %v777, 0.35355338
      %v783 = vsel %vm510, %v782, -inf
      %784 = vmax.xlane.f32.xlu0 %v783
      %v785 = vpop.xlane.xlu0 %784
      %v786 = vsub.f32 %v782, %v785
      %v787 = vmul.f32 %v786, 1.442695
      %v788 = vpow.pop %v787
      %v789 = vsel %vm510, %v788, 0.0
      %790 = vadd.xlane.f32.xlu0 %v789
      %v791 = vpop.xlane.xlu0 %790
      %v792 = vrcp.pop %v791
      %v793 = vmul.f32 %v788, %v792
      %v794 = vpack.c.bf16 %v793, %v793
      %795 = vrot.lane.b32.xlu0 %v509, 80
      %v796 = vpop.permute.xlu0 %795
      %v798 = vsel %vm510, %v794, 0
      %v801 = vsel %vm576, %v796, 0
      %803 = vmatprep.subr.bf16.mxu0 0
      %804 = vmatpush1.bf16.msra.mxu0 %v801
      %805 = vmatprep.subr.bf16.mxu0 0
      %806 = vmatpush1.bf16.msra.mxu0 0
      %807 = vmatprep.subr.bf16.mxu0 0
      %808 = vmatpush1.bf16.msra.mxu0 0
      %809 = vmatprep.subr.bf16.mxu0 0
      %810 = vmatpush1.bf16.msra.mxu0 0
      %811 = vmatprep.subr.bf16.mxu0 0
      %812 = vmatpush1.bf16.msra.mxu0 0
      %813 = vmatprep.subr.bf16.mxu0 0
      %814 = vmatpush1.bf16.msra.mxu0 0
      %815 = vmatprep.subr.bf16.mxu0 0
      %816 = vmatpush1.bf16.msra.mxu0 0
      %817 = vmatprep.subr.bf16.mxu0 0
      %818 = vmatpush1.bf16.msra.mxu0 0
      %819 = vmatprep.subr.bf16.mxu0 0
      %820 = vmatpush1.bf16.msra.mxu0 0
      %821 = vmatprep.subr.bf16.mxu0 0
      %822 = vmatpush1.bf16.msra.mxu0 0
      %823 = vmatprep.subr.bf16.mxu0 0
      %824 = vmatpush1.bf16.msra.mxu0 0
      %825 = vmatprep.subr.bf16.mxu0 0
      %826 = vmatpush1.bf16.msra.mxu0 0
      %827 = vmatprep.subr.bf16.mxu0 0
      %828 = vmatpush1.bf16.msra.mxu0 0
      %829 = vmatprep.subr.bf16.mxu0 0
      %830 = vmatpush1.bf16.msra.mxu0 0
      %831 = vmatprep.subr.bf16.mxu0 0
      %832 = vmatpush1.bf16.msra.mxu0 0
      %833 = vmatprep.subr.bf16.mxu0 0
      %834 = vmatpush1.bf16.msra.mxu0 0
      %835 = vmatprep.mubr.bf16.mxu0 0
      %836 = vmatmul.mubr.bf16.gmra.mrb[0].mxu0 %v798
      %v837 = vpop.f32.mrb[0].mxu0
      %v838 = vadd.f32 0.0, %v837
      %v839 = vpop.f32.mrb[0].mxu0
      %v840 = vpop.f32.mrb[0].mxu0
      %v841 = vpop.f32.mrb[0].mxu0
      %842 = vdwg.mxu0
      %843 = vrot.lane.b32.xlu0 %v442, 104
      %v844 = vpop.permute.xlu0 %843
      %845 = vrot.lane.b32.xlu0 %v509, 104
      %v846 = vpop.permute.xlu0 %845
      %v848 = vsel %vm510, %v844, 0
      %v851 = vsel %vm510, %v846, 0
      %853 = vmatprep.subr.bf16.mxu0 0
      %854 = vmatpush1.bf16.xpose.msra.mxu0 %v851
      %855 = vmatprep.subr.bf16.mxu0 0
      %856 = vmatpush1.bf16.xpose.msra.mxu0 0
      %857 = vmatprep.subr.bf16.mxu0 0
      %858 = vmatpush1.bf16.xpose.msra.mxu0 0
      %859 = vmatprep.subr.bf16.mxu0 0
      %860 = vmatpush1.bf16.xpose.msra.mxu0 0
      %861 = vmatprep.subr.bf16.mxu0 0
      %862 = vmatpush1.bf16.xpose.msra.mxu0 0
      %863 = vmatprep.subr.bf16.mxu0 0
      %864 = vmatpush1.bf16.xpose.msra.mxu0 0
      %865 = vmatprep.subr.bf16.mxu0 0
      %866 = vmatpush1.bf16.xpose.msra.mxu0 0
      %867 = vmatprep.subr.bf16.mxu0 0
      %868 = vmatpush1.bf16.xpose.msra.mxu0 0
      %869 = vmatprep.subr.bf16.mxu0 0
      %870 = vmatpush1.bf16.xpose.msra.mxu0 0
      %871 = vmatprep.subr.bf16.mxu0 0
      %872 = vmatpush1.bf16.xpose.msra.mxu0 0
      %873 = vmatprep.subr.bf16.mxu0 0
      %874 = vmatpush1.bf16.xpose.msra.mxu0 0
      %875 = vmatprep.subr.bf16.mxu0 0
      %876 = vmatpush1.bf16.xpose.msra.mxu0 0
      %877 = vmatprep.subr.bf16.mxu0 0
      %878 = vmatpush1.bf16.xpose.msra.mxu0 0
      %879 = vmatprep.subr.bf16.mxu0 0
      %880 = vmatpush1.bf16.xpose.msra.mxu0 0
      %881 = vmatprep.subr.bf16.mxu0 0
      %882 = vmatpush1.bf16.xpose.msra.mxu0 0
      %883 = vmatprep.subr.bf16.mxu0 0
      %884 = vmatpush1.bf16.xpose.msra.mxu0 0
      %885 = vmatprep.mubr.bf16.mxu0 0
      %886 = vmatmul.mubr.bf16.gmra.mrb[0].mxu0 %v848
      %v887 = vpop.f32.mrb[0].mxu0
      %v888 = vadd.f32 0.0, %v887
      %v889 = vpop.f32.mrb[0].mxu0
      %v890 = vpop.f32.mrb[0].mxu0
      %v891 = vpop.f32.mrb[0].mxu0
      %892 = vdwg.mxu0
      %v893 = vmul.f32 %v888, 0.35355338
      %v894 = vsel %vm510, %v893, -inf
      %895 = vmax.xlane.f32.xlu0 %v894
      %v896 = vpop.xlane.xlu0 %895
      %v897 = vsub.f32 %v893, %v896
      %v898 = vmul.f32 %v897, 1.442695
      %v899 = vpow.pop %v898
      %v900 = vsel %vm510, %v899, 0.0
      %901 = vadd.xlane.f32.xlu0 %v900
      %v902 = vpop.xlane.xlu0 %901
      %v903 = vrcp.pop %v902
      %v904 = vmul.f32 %v899, %v903
      %v905 = vpack.c.bf16 %v904, %v904
      %906 = vrot.lane.b32.xlu0 %v509, 72
      %v907 = vpop.permute.xlu0 %906
      %v909 = vsel %vm510, %v905, 0
      %v912 = vsel %vm576, %v907, 0
      %914 = vmatprep.subr.bf16.mxu0 0
      %915 = vmatpush1.bf16.msra.mxu0 %v912
      %916 = vmatprep.subr.bf16.mxu0 0
      %917 = vmatpush1.bf16.msra.mxu0 0
      %918 = vmatprep.subr.bf16.mxu0 0
      %919 = vmatpush1.bf16.msra.mxu0 0
      %920 = vmatprep.subr.bf16.mxu0 0
      %921 = vmatpush1.bf16.msra.mxu0 0
      %922 = vmatprep.subr.bf16.mxu0 0
      %923 = vmatpush1.bf16.msra.mxu0 0
      %924 = vmatprep.subr.bf16.mxu0 0
      %925 = vmatpush1.bf16.msra.mxu0 0
      %926 = vmatprep.subr.bf16.mxu0 0
      %927 = vmatpush1.bf16.msra.mxu0 0
      %928 = vmatprep.subr.bf16.mxu0 0
      %929 = vmatpush1.bf16.msra.mxu0 0
      %930 = vmatprep.subr.bf16.mxu0 0
      %931 = vmatpush1.bf16.msra.mxu0 0
      %932 = vmatprep.subr.bf16.mxu0 0
      %933 = vmatpush1.bf16.msra.mxu0 0
      %934 = vmatprep.subr.bf16.mxu0 0
      %935 = vmatpush1.bf16.msra.mxu0 0
      %936 = vmatprep.subr.bf16.mxu0 0
      %937 = vmatpush1.bf16.msra.mxu0 0
      %938 = vmatprep.subr.bf16.mxu0 0
      %939 = vmatpush1.bf16.msra.mxu0 0
      %940 = vmatprep.subr.bf16.mxu0 0
      %941 = vmatpush1.bf16.msra.mxu0 0
      %942 = vmatprep.subr.bf16.mxu0 0
      %943 = vmatpush1.bf16.msra.mxu0 0
      %944 = vmatprep.subr.bf16.mxu0 0
      %945 = vmatpush1.bf16.msra.mxu0 0
      %946 = vmatprep.mubr.bf16.mxu0 0
      %947 = vmatmul.mubr.bf16.gmra.mrb[0].mxu0 %v909
      %v948 = vpop.f32.mrb[0].mxu0
      %v949 = vadd.f32 0.0, %v948
      %v950 = vpop.f32.mrb[0].mxu0
      %v951 = vpop.f32.mrb[0].mxu0
      %v952 = vpop.f32.mrb[0].mxu0
      %953 = vdwg.mxu0
      %955 = vrot.lane.b32.xlu0 %v727, 8
      %v956 = vpop.permute.xlu0 %955
      %959 = vrot.lane.b32.xlu0 %v838, 16
      %v960 = vpop.permute.xlu0 %959
      %963 = vrot.lane.b32.xlu0 %v949, 24
      %v964 = vpop.permute.xlu0 %963
      %v966 = vsel %vm510, %v615, %v956
      %vm967 = vcmask 130048
      %v968 = vsel %vm967, %v966, %v960
      %vm969 = vcmask 195584
      %v970 = vsel %vm969, %v968, %v964
      %v971 = vpack.c.bf16 %v970, %v970
      %v972 = vld [vmem:[%s6] sm:$0xf]
      %v973 = vld [vmem:[%s6 + $0x4] sm:$0xf]
      %v974 = vld [vmem:[%s6 + $0x8] sm:$0xf]
      %v975 = vld [vmem:[%s6 + $0xc] sm:$0xf]
      %v976 = vld [vmem:[%s7] sm:$0x1]
      %v978 = vlaneseq
      %v979 = vshrl.u32 %v978, 7
      %v980 = vsub.s32 0, %v979
      %v981 = vrot.slane %v976, %v980
      %v987 = vunpack.c.l.b16 %v972
      %v988 = vunpack.c.l.b16 %v973
      %v989 = vunpack.c.l.b16 %v974
      %v990 = vunpack.c.l.b16 %v975
      %v991 = vpack.c.b16 %v988, %v987
      %v992 = vpack.c.b16 %v990, %v989
      %v996 = vsel %vm398, %v971, 0
      %998 = vmatprep.subr.bf16.mxu0 0
      %999 = vmatpush1.bf16.msra.mxu0 %v991
      %1000 = vmatprep.subr.bf16.mxu0 0
      %1001 = vmatpush1.bf16.msra.mxu0 %v992
      %1002 = vmatprep.subr.bf16.mxu0 0
      %1003 = vmatpush1.bf16.msra.mxu0 0
      %1004 = vmatprep.subr.bf16.mxu0 0
      %1005 = vmatpush1.bf16.msra.mxu0 0
      %1006 = vmatprep.subr.bf16.mxu0 0
      %1007 = vmatpush1.bf16.msra.mxu0 0
      %1008 = vmatprep.subr.bf16.mxu0 0
      %1009 = vmatpush1.bf16.msra.mxu0 0
      %1010 = vmatprep.subr.bf16.mxu0 0
      %1011 = vmatpush1.bf16.msra.mxu0 0
      %1012 = vmatprep.subr.bf16.mxu0 0
      %1013 = vmatpush1.bf16.msra.mxu0 0
      %1014 = vmatprep.subr.bf16.mxu0 0
      %1015 = vmatpush1.bf16.msra.mxu0 0
      %1016 = vmatprep.subr.bf16.mxu0 0
      %1017 = vmatpush1.bf16.msra.mxu0 0
      %1018 = vmatprep.subr.bf16.mxu0 0
      %1019 = vmatpush1.bf16.msra.mxu0 0
      %1020 = vmatprep.subr.bf16.mxu0 0
      %1021 = vmatpush1.bf16.msra.mxu0 0
      %1022 = vmatprep.subr.bf16.mxu0 0
      %1023 = vmatpush1.bf16.msra.mxu0 0
      %1024 = vmatprep.subr.bf16.mxu0 0
      %1025 = vmatpush1.bf16.msra.mxu0 0
      %1026 = vmatprep.subr.bf16.mxu0 0
      %1027 = vmatpush1.bf16.msra.mxu0 0
      %1028 = vmatprep.subr.bf16.mxu0 0
      %1029 = vmatpush1.bf16.msra.mxu0 0
      %1030 = vmatprep.mubr.bf16.mxu0 0
      %1031 = vmatmul.mubr.bf16.gmra.mrb[0].mxu0 %v996
      %v1032 = vpop.f32.mrb[0].mxu0
      %v1033 = vadd.f32 %v981, %v1032
      %v1034 = vpop.f32.mrb[0].mxu0
      %v1035 = vpop.f32.mrb[0].mxu0
      %v1036 = vpop.f32.mrb[0].mxu0
      %1037 = vdwg.mxu0
      %v1038 = vunpack.c.l.bf16 %v373
      %v1039 = vadd.f32 %v1038, %v1033
      %v1040 = vsel %vm398, %v1039, 0.0
      %1041 = vadd.xlane.f32.xlu0 %v1040
      %v1042 = vpop.xlane.xlu0 %1041
      %v1043 = vrcp.pop 32.0
      %v1044 = vmul.f32 %v1042, %v1043
      %v1045 = vsub.f32 %v1039, %v1044
      %v1046 = vmul.f32 %v1045, %v1045
      %v1047 = vsel %vm398, %v1046, 0.0
      %1048 = vadd.xlane.f32.xlu0 %v1047
      %v1049 = vpop.xlane.xlu0 %1048
      %v1050 = vmul.f32 %v1049, %v1043
      %v1051 = vadd.f32 %v1050, 1e-05
      %v1052 = vrsqrt.pop %v1051
      %v1053 = vmul.f32 %v1045, %v1052
      %v1054 = vld [vmem:[%s8] sm:$0x1]
      %v1056 = vlaneseq
      %v1057 = vshrl.u32 %v1056, 7
      %v1058 = vsub.s32 0, %v1057
      %v1059 = vrot.slane %v1054, %v1058
      %v1061 = vmul.f32 %v1053, %v1059
      %v1062 = vld [vmem:[%s9] sm:$0x1]
      %v1064 = vlaneseq
      %v1065 = vshrl.u32 %v1064, 7
      %v1066 = vsub.s32 0, %v1065
      %v1067 = vrot.slane %v1062, %v1066
      %v1069 = vadd.f32 %v1061, %v1067
      %v1070 = vpack.c.bf16 %v1069, %v1069
      %vm1071 = vcmask 257024
      %1072 = vst.msk [vmem:[%s371] sm:$0xf] %vm1071, %v1070
      %p1073 = scmp.lt.s32.totalorder %s21, 1
      %s1074 = scalar_select %p1073, %s21, 1
      %s1075 = smul.addr %s1074, 4
      %s1076 = scalar_lea.vmem %s10, %s1075
      // Predicated region
      $region61: #{transformer_decoder_forward.8} parent=59 // pred_check
        %p1077 = pneg %p259
      $region62: #{transformer_decoder_forward.8} parent=59 // pred_check_branch
        %1079 = sbr.rel (%p1077) target = $region64
      $region63: #{transformer_decoder_forward.8} parent=59 // pred_region
        _
      $region64: #{transformer_decoder_forward.8} parent=59 // pred_fallthru
        _
    $region60: #{transformer_decoder_forward.8} parent=5 // pred_fallthru
      _
    %p1080 = scmp.le.s32.totalorder 2, %s16
    // Predicated region
    $region65: #{transformer_decoder_forward.8} parent=5 // pred_check
      %p1081 = pneg %p1080
    $region66: #{transformer_decoder_forward.8} parent=5 // pred_check_branch
      %1083 = sbr.rel (%p1081) target = $region68
    $region67: #{transformer_decoder_forward.8} parent=5 // pred_region
      %s1084 = ssub.s32 %s16, 2
      // Predicated region
      $region69: #{transformer_decoder_forward.8} parent=67 // pred_check
        %p1085 = pneg %p265
      $region70: #{transformer_decoder_forward.8} parent=67 // pred_check_branch
        %1087 = sbr.rel (%p1085) target = $region72
      $region71: #{transformer_decoder_forward.8} parent=67 // pred_region
        %p1088 = scmp.lt.s32.totalorder %s22, 1
        %s1089 = scalar_select %p1088, %s22, 1
        %s1090 = smul.addr %s1089, 4
        %s1091 = scalar_lea.vmem %s10, %s1090
      $region72: #{transformer_decoder_forward.8} parent=67 // pred_fallthru
        _
    $region68: #{transformer_decoder_forward.8} parent=5 // pred_fallthru
      _
  $region6: #{transformer_decoder_forward.8} parent=0 // loop_footer
    %s20 = sadd.s32 1, %s16
  $region7: #{transformer_decoder_forward.8} parent=0 // loop_footer_branch
    %15 = sbr.rel target = $region3
  $region8: #{transformer_decoder_forward.8} parent=0 // loop_exit
    _

// kernel: transformer_decoder_forward.9
$region0: #{transformer_decoder_forward.9}
  #allocation0 [shape = 'u32[]', space=smem, size = 0x4, offset = 0x4, fixed_abs, tag = 'smem constant byte address 0x4 - core index']
  #allocation1 [shape = 'u32[144,128]{1,0:T(1,128)}', space=vmem, size = 0x12000, scoped, tag = 'internal scratch']
  #allocation2 [shape = 'f32[16,32]{1,0:T(8,128)}', space=vmem, size = 0x2000, scoped, tag = 'scratch operand']
  %s0 = inlined_call_operand.vmem [shape: bf16[16,32], index: 0, kind: input, shape index: {}]
  %s1 = inlined_call_operand.vmem [shape: bf16[32,2048], index: 1, kind: input, shape index: {}]
  %s2 = inlined_call_operand.vmem [shape: f32[1,2048], index: 2, kind: input, shape index: {}]
  %s3 = inlined_call_operand.vmem [shape: bf16[2048,32], index: 3, kind: input, shape index: {}]
  %s4 = inlined_call_operand.vmem [shape: f32[1,32], index: 4, kind: input, shape index: {}]
  %s5 = inlined_call_operand.vmem [shape: f32[1,32], index: 5, kind: input, shape index: {}]
  %s6 = inlined_call_operand.vmem [shape: f32[1,32], index: 6, kind: input, shape index: {}]
  %s7 = inlined_call_operand.vmem [shape: bf16[16,32], index: 7, kind: output, shape index: {}]
  %s8 = sld [smem:[#allocation0]]
  $region46: #{transformer_decoder_forward.9} parent=0
    _
  %s10 = ssub.s32 1, %s8
  %s11 = scalar_select 0, %s10, %s8
  // Predicated region
  $region2: #{transformer_decoder_forward.9} parent=0 // pred_check
    _
  $region3: #{transformer_decoder_forward.9} parent=0 // pred_check_branch
    %13 = sbr.rel (0) target = $region5
  $region4: #{transformer_decoder_forward.9} parent=0 // pred_region
    _
  $region5: #{transformer_decoder_forward.9} parent=0 // pred_fallthru
    _
  // Predicated region
  $region6: #{transformer_decoder_forward.9} parent=0 // pred_check
    _
  $region7: #{transformer_decoder_forward.9} parent=0 // pred_check_branch
    %15 = sbr.rel (0) target = $region9
  $region8: #{transformer_decoder_forward.9} parent=0 // pred_region
    _
  $region9: #{transformer_decoder_forward.9} parent=0 // pred_fallthru
    _
  // Predicated region
  $region10: #{transformer_decoder_forward.9} parent=0 // pred_check
    _
  $region11: #{transformer_decoder_forward.9} parent=0 // pred_check_branch
    %17 = sbr.rel (0) target = $region13
  $region12: #{transformer_decoder_forward.9} parent=0 // pred_region
    _
  $region13: #{transformer_decoder_forward.9} parent=0 // pred_fallthru
    _
  // Predicated region
  $region14: #{transformer_decoder_forward.9} parent=0 // pred_check
    _
  $region15: #{transformer_decoder_forward.9} parent=0 // pred_check_branch
    %19 = sbr.rel (0) target = $region17
  $region16: #{transformer_decoder_forward.9} parent=0 // pred_region
    _
  $region17: #{transformer_decoder_forward.9} parent=0 // pred_fallthru
    _
  // Predicated region
  $region18: #{transformer_decoder_forward.9} parent=0 // pred_check
    _
  $region19: #{transformer_decoder_forward.9} parent=0 // pred_check_branch
    %21 = sbr.rel (0) target = $region21
  $region20: #{transformer_decoder_forward.9} parent=0 // pred_region
    _
  $region21: #{transformer_decoder_forward.9} parent=0 // pred_fallthru
    _
  // Predicated region
  $region22: #{transformer_decoder_forward.9} parent=0 // pred_check
    _
  $region23: #{transformer_decoder_forward.9} parent=0 // pred_check_branch
    %23 = sbr.rel (0) target = $region25
  $region24: #{transformer_decoder_forward.9} parent=0 // pred_region
    _
  $region25: #{transformer_decoder_forward.9} parent=0 // pred_fallthru
    _
  // Predicated region
  $region26: #{transformer_decoder_forward.9} parent=0 // pred_check
    _
  $region27: #{transformer_decoder_forward.9} parent=0 // pred_check_branch
    %25 = sbr.rel (0) target = $region29
  $region28: #{transformer_decoder_forward.9} parent=0 // pred_region
    _
  $region29: #{transformer_decoder_forward.9} parent=0 // pred_fallthru
    _
  %p27 = scmp.eq.s32.totalorder 0, 0
  // Predicated region
  $region30: #{transformer_decoder_forward.9} parent=0 // pred_check
    %p28 = pneg %p27
  $region31: #{transformer_decoder_forward.9} parent=0 // pred_check_branch
    %30 = sbr.rel (%p28) target = $region33
  $region32: #{transformer_decoder_forward.9} parent=0 // pred_region
    %vm31 = vcmask 261120
    %32 = vst.msk [vmem:[#allocation2] sm:$0xff] %vm31, 0.0
    %33 = vst.msk [vmem:[#allocation2 + $0x8] sm:$0xff] %vm31, 0.0
  $region33: #{transformer_decoder_forward.9} parent=0 // pred_fallthru
    _
  %v34 = vld [vmem:[%s0] sm:$0xf]
  %v35 = vld [vmem:[%s0 + $0x4] sm:$0xf]
  %v36 = vld [vmem:[%s1] sm:$0xff]
  %v37 = vld [vmem:[%s1 + $0x8] sm:$0xff]
  %v38 = vld [vmem:[%s1 + $0x10] sm:$0xff]
  %v39 = vld [vmem:[%s1 + $0x18] sm:$0xff]
  %v40 = vld [vmem:[%s1 + $0x20] sm:$0xff]
  %v41 = vld [vmem:[%s1 + $0x28] sm:$0xff]
  %v42 = vld [vmem:[%s1 + $0x30] sm:$0xff]
  %v43 = vld [vmem:[%s1 + $0x38] sm:$0xff]
  %v44 = vld [vmem:[%s1 + $0x40] sm:$0xff]
  %v45 = vld [vmem:[%s1 + $0x48] sm:$0xff]
  %v46 = vld [vmem:[%s1 + $0x50] sm:$0xff]
  %v47 = vld [vmem:[%s1 + $0x58] sm:$0xff]
  %v48 = vld [vmem:[%s1 + $0x60] sm:$0xff]
  %v49 = vld [vmem:[%s1 + $0x68] sm:$0xff]
  %v50 = vld [vmem:[%s1 + $0x70] sm:$0xff]
  %v51 = vld [vmem:[%s1 + $0x78] sm:$0xff]
  %v52 = vld [vmem:[%s1 + $0x80] sm:$0xff]
  %v53 = vld [vmem:[%s1 + $0x88] sm:$0xff]
  %v54 = vld [vmem:[%s1 + $0x90] sm:$0xff]
  %v55 = vld [vmem:[%s1 + $0x98] sm:$0xff]
  %v56 = vld [vmem:[%s1 + $0xa0] sm:$0xff]
  %v57 = vld [vmem:[%s1 + $0xa8] sm:$0xff]
  %v58 = vld [vmem:[%s1 + $0xb0] sm:$0xff]
  %v59 = vld [vmem:[%s1 + $0xb8] sm:$0xff]
  %v60 = vld [vmem:[%s1 + $0xc0] sm:$0xff]
  %v61 = vld [vmem:[%s1 + $0xc8] sm:$0xff]
  %v62 = vld [vmem:[%s1 + $0xd0] sm:$0xff]
  %v63 = vld [vmem:[%s1 + $0xd8] sm:$0xff]
  %v64 = vld [vmem:[%s1 + $0xe0] sm:$0xff]
  %v65 = vld [vmem:[%s1 + $0xe8] sm:$0xff]
  %v66 = vld [vmem:[%s1 + $0xf0] sm:$0xff]
  %v67 = vld [vmem:[%s1 + $0xf8] sm:$0xff]
  %v68 = vld [vmem:[%s2] sm:$0xff]
  %v69 = vld [vmem:[%s2 + $0x8] sm:$0xff]
  %v72 = vlaneseq
  %v73 = vshrl.u32 %v72, 7
  %v74 = vsub.s32 0, %v73
  %v75 = vrot.slane %v68, %v74
  %v76 = vlaneseq
  %v77 = vshrl.u32 %v76, 7
  %v78 = vsub.s32 1, %v77
  %v79 = vrot.slane %v68, %v78
  %v80 = vlaneseq
  %v81 = vshrl.u32 %v80, 7
  %v82 = vsub.s32 2, %v81
  %v83 = vrot.slane %v68, %v82
  %v84 = vlaneseq
  %v85 = vshrl.u32 %v84, 7
  %v86 = vsub.s32 3, %v85
  %v87 = vrot.slane %v68, %v86
  %v88 = vlaneseq
  %v89 = vshrl.u32 %v88, 7
  %v90 = vsub.s32 4, %v89
  %v91 = vrot.slane %v68, %v90
  %v92 = vlaneseq
  %v93 = vshrl.u32 %v92, 7
  %v94 = vsub.s32 5, %v93
  %v95 = vrot.slane %v68, %v94
  %v96 = vlaneseq
  %v97 = vshrl.u32 %v96, 7
  %v98 = vsub.s32 6, %v97
  %v99 = vrot.slane %v68, %v98
  %v100 = vlaneseq
  %v101 = vshrl.u32 %v100, 7
  %v102 = vsub.s32 7, %v101
  %v103 = vrot.slane %v68, %v102
  %v104 = vlaneseq
  %v105 = vshrl.u32 %v104, 7
  %v106 = vsub.s32 0, %v105
  %v107 = vrot.slane %v69, %v106
  %v108 = vlaneseq
  %v109 = vshrl.u32 %v108, 7
  %v110 = vsub.s32 1, %v109
  %v111 = vrot.slane %v69, %v110
  %v112 = vlaneseq
  %v113 = vshrl.u32 %v112, 7
  %v114 = vsub.s32 2, %v113
  %v115 = vrot.slane %v69, %v114
  %v116 = vlaneseq
  %v117 = vshrl.u32 %v116, 7
  %v118 = vsub.s32 3, %v117
  %v119 = vrot.slane %v69, %v118
  %v120 = vlaneseq
  %v121 = vshrl.u32 %v120, 7
  %v122 = vsub.s32 4, %v121
  %v123 = vrot.slane %v69, %v122
  %v124 = vlaneseq
  %v125 = vshrl.u32 %v124, 7
  %v126 = vsub.s32 5, %v125
  %v127 = vrot.slane %v69, %v126
  %v128 = vlaneseq
  %v129 = vshrl.u32 %v128, 7
  %v130 = vsub.s32 6, %v129
  %v131 = vrot.slane %v69, %v130
  %v132 = vlaneseq
  %v133 = vshrl.u32 %v132, 7
  %v134 = vsub.s32 7, %v133
  %v135 = vrot.slane %v69, %v134
  %v154 = vunpack.c.l.b16 %v34
  %v155 = vunpack.c.l.b16 %v35
  %v156 = vpack.c.b16 %v155, %v154
  %v189 = vunpack.c.l.b16 %v36
  %v190 = vunpack.c.h.b16 %v36
  %v191 = vunpack.c.l.b16 %v37
  %v192 = vunpack.c.h.b16 %v37
  %v193 = vunpack.c.l.b16 %v38
  %v194 = vunpack.c.h.b16 %v38
  %v195 = vunpack.c.l.b16 %v39
  %v196 = vunpack.c.h.b16 %v39
  %v197 = vunpack.c.l.b16 %v40
  %v198 = vunpack.c.h.b16 %v40
  %v199 = vunpack.c.l.b16 %v41
  %v200 = vunpack.c.h.b16 %v41
  %v201 = vunpack.c.l.b16 %v42
  %v202 = vunpack.c.h.b16 %v42
  %v203 = vunpack.c.l.b16 %v43
  %v204 = vunpack.c.h.b16 %v43
  %v205 = vunpack.c.l.b16 %v44
  %v206 = vunpack.c.h.b16 %v44
  %v207 = vunpack.c.l.b16 %v45
  %v208 = vunpack.c.h.b16 %v45
  %v209 = vunpack.c.l.b16 %v46
  %v210 = vunpack.c.h.b16 %v46
  %v211 = vunpack.c.l.b16 %v47
  %v212 = vunpack.c.h.b16 %v47
  %v213 = vunpack.c.l.b16 %v48
  %v214 = vunpack.c.h.b16 %v48
  %v215 = vunpack.c.l.b16 %v49
  %v216 = vunpack.c.h.b16 %v49
  %v217 = vunpack.c.l.b16 %v50
  %v218 = vunpack.c.h.b16 %v50
  %v219 = vunpack.c.l.b16 %v51
  %v220 = vunpack.c.h.b16 %v51
  %v221 = vunpack.c.l.b16 %v52
  %v222 = vunpack.c.h.b16 %v52
  %v223 = vunpack.c.l.b16 %v53
  %v224 = vunpack.c.h.b16 %v53
  %v225 = vunpack.c.l.b16 %v54
  %v226 = vunpack.c.h.b16 %v54
  %v227 = vunpack.c.l.b16 %v55
  %v228 = vunpack.c.h.b16 %v55
  %v229 = vunpack.c.l.b16 %v56
  %v230 = vunpack.c.h.b16 %v56
  %v231 = vunpack.c.l.b16 %v57
  %v232 = vunpack.c.h.b16 %v57
  %v233 = vunpack.c.l.b16 %v58
  %v234 = vunpack.c.h.b16 %v58
  %v235 = vunpack.c.l.b16 %v59
  %v236 = vunpack.c.h.b16 %v59
  %v237 = vunpack.c.l.b16 %v60
  %v238 = vunpack.c.h.b16 %v60
  %v239 = vunpack.c.l.b16 %v61
  %v240 = vunpack.c.h.b16 %v61
  %v241 = vunpack.c.l.b16 %v62
  %v242 = vunpack.c.h.b16 %v62
  %v243 = vunpack.c.l.b16 %v63
  %v244 = vunpack.c.h.b16 %v63
  %v245 = vunpack.c.l.b16 %v64
  %v246 = vunpack.c.h.b16 %v64
  %v247 = vunpack.c.l.b16 %v65
  %v248 = vunpack.c.h.b16 %v65
  %v249 = vunpack.c.l.b16 %v66
  %v250 = vunpack.c.h.b16 %v66
  %v251 = vunpack.c.l.b16 %v67
  %v252 = vunpack.c.h.b16 %v67
  %v253 = vpack.c.b16 %v205, %v189
  %v254 = vpack.c.b16 %v206, %v190
  %v255 = vpack.c.b16 %v207, %v191
  %v256 = vpack.c.b16 %v208, %v192
  %v257 = vpack.c.b16 %v209, %v193
  %v258 = vpack.c.b16 %v210, %v194
  %v259 = vpack.c.b16 %v211, %v195
  %v260 = vpack.c.b16 %v212, %v196
  %v261 = vpack.c.b16 %v213, %v197
  %v262 = vpack.c.b16 %v214, %v198
  %v263 = vpack.c.b16 %v215, %v199
  %v264 = vpack.c.b16 %v216, %v200
  %v265 = vpack.c.b16 %v217, %v201
  %v266 = vpack.c.b16 %v218, %v202
  %v267 = vpack.c.b16 %v219, %v203
  %v268 = vpack.c.b16 %v220, %v204
  %v269 = vpack.c.b16 %v237, %v221
  %v270 = vpack.c.b16 %v238, %v222
  %v271 = vpack.c.b16 %v239, %v223
  %v272 = vpack.c.b16 %v240, %v224
  %v273 = vpack.c.b16 %v241, %v225
  %v274 = vpack.c.b16 %v242, %v226
  %v275 = vpack.c.b16 %v243, %v227
  %v276 = vpack.c.b16 %v244, %v228
  %v277 = vpack.c.b16 %v245, %v229
  %v278 = vpack.c.b16 %v246, %v230
  %v279 = vpack.c.b16 %v247, %v231
  %v280 = vpack.c.b16 %v248, %v232
  %v281 = vpack.c.b16 %v249, %v233
  %v282 = vpack.c.b16 %v250, %v234
  %v283 = vpack.c.b16 %v251, %v235
  %v284 = vpack.c.b16 %v252, %v236
  %vm317 = vcmask 261120
  %v319 = vsel %vm317, %v156, 0
  %321 = vmatprep.subr.bf16.mxu0 %v254
  %322 = vmatpush1.bf16.msra.mxu0 %v253
  %323 = vmatprep.subr.bf16.mxu0 %v270
  %324 = vmatpush1.bf16.msra.mxu0 %v269
  %325 = vmatprep.subr.bf16.mxu0 0
  %326 = vmatpush1.bf16.msra.mxu0 0
  %327 = vmatprep.subr.bf16.mxu0 0
  %328 = vmatpush1.bf16.msra.mxu0 0
  %329 = vmatprep.subr.bf16.mxu0 0
  %330 = vmatpush1.bf16.msra.mxu0 0
  %331 = vmatprep.subr.bf16.mxu0 0
  %332 = vmatpush1.bf16.msra.mxu0 0
  %333 = vmatprep.subr.bf16.mxu0 0
  %334 = vmatpush1.bf16.msra.mxu0 0
  %335 = vmatprep.subr.bf16.mxu0 0
  %336 = vmatpush1.bf16.msra.mxu0 0
  %337 = vmatprep.subr.bf16.mxu0 0
  %338 = vmatpush1.bf16.msra.mxu0 0
  %339 = vmatprep.subr.bf16.mxu0 0
  %340 = vmatpush1.bf16.msra.mxu0 0
  %341 = vmatprep.subr.bf16.mxu0 0
  %342 = vmatpush1.bf16.msra.mxu0 0
  %343 = vmatprep.subr.bf16.mxu0 0
  %344 = vmatpush1.bf16.msra.mxu0 0
  %345 = vmatprep.subr.bf16.mxu0 0
  %346 = vmatpush1.bf16.msra.mxu0 0
  %347 = vmatprep.subr.bf16.mxu0 0
  %348 = vmatpush1.bf16.msra.mxu0 0
  %349 = vmatprep.subr.bf16.mxu0 0
  %350 = vmatpush1.bf16.msra.mxu0 0
  %351 = vmatprep.subr.bf16.mxu0 0
  %352 = vmatpush1.bf16.msra.mxu0 0
  %353 = vmatprep.mubr.bf16.mxu0 0
  %354 = vmatmul.mubr.bf16.gmra.mrb[0].mxu0 %v319
  %v355 = vpop.f32.mrb[0].mxu0
  %v356 = vadd.f32 %v75, %v355
  %v357 = vpop.f32.mrb[0].mxu0
  %v358 = vadd.f32 %v79, %v357
  %v359 = vpop.f32.mrb[0].mxu0
  %v360 = vadd.f32 %v75, %v359
  %v361 = vpop.f32.mrb[0].mxu0
  %v362 = vadd.f32 %v79, %v361
  %363 = vdwg.mxu0
  %364 = vmatprep.subr.bf16.mxu0 %v256
  %365 = vmatpush1.bf16.msra.mxu0 %v255
  %366 = vmatprep.subr.bf16.mxu0 %v272
  %367 = vmatpush1.bf16.msra.mxu0 %v271
  %368 = vmatprep.subr.bf16.mxu0 0
  %369 = vmatpush1.bf16.msra.mxu0 0
  %370 = vmatprep.subr.bf16.mxu0 0
  %371 = vmatpush1.bf16.msra.mxu0 0
  %372 = vmatprep.subr.bf16.mxu0 0
  %373 = vmatpush1.bf16.msra.mxu0 0
  %374 = vmatprep.subr.bf16.mxu0 0
  %375 = vmatpush1.bf16.msra.mxu0 0
  %376 = vmatprep.subr.bf16.mxu0 0
  %377 = vmatpush1.bf16.msra.mxu0 0
  %378 = vmatprep.subr.bf16.mxu0 0
  %379 = vmatpush1.bf16.msra.mxu0 0
  %380 = vmatprep.subr.bf16.mxu0 0
  %381 = vmatpush1.bf16.msra.mxu0 0
  %382 = vmatprep.subr.bf16.mxu0 0
  %383 = vmatpush1.bf16.msra.mxu0 0
  %384 = vmatprep.subr.bf16.mxu0 0
  %385 = vmatpush1.bf16.msra.mxu0 0
  %386 = vmatprep.subr.bf16.mxu0 0
  %387 = vmatpush1.bf16.msra.mxu0 0
  %388 = vmatprep.subr.bf16.mxu0 0
  %389 = vmatpush1.bf16.msra.mxu0 0
  %390 = vmatprep.subr.bf16.mxu0 0
  %391 = vmatpush1.bf16.msra.mxu0 0
  %392 = vmatprep.subr.bf16.mxu0 0
  %393 = vmatpush1.bf16.msra.mxu0 0
  %394 = vmatprep.subr.bf16.mxu0 0
  %395 = vmatpush1.bf16.msra.mxu0 0
  %396 = vmatprep.mubr.bf16.mxu0 0
  %397 = vmatmul.mubr.bf16.gmra.mrb[0].mxu0 %v319
  %v398 = vpop.f32.mrb[0].mxu0
  %v399 = vadd.f32 %v83, %v398
  %v400 = vpop.f32.mrb[0].mxu0
  %v401 = vadd.f32 %v87, %v400
  %v402 = vpop.f32.mrb[0].mxu0
  %v403 = vadd.f32 %v83, %v402
  %v404 = vpop.f32.mrb[0].mxu0
  %v405 = vadd.f32 %v87, %v404
  %406 = vdwg.mxu0
  %407 = vmatprep.subr.bf16.mxu0 %v258
  %408 = vmatpush1.bf16.msra.mxu0 %v257
  %409 = vmatprep.subr.bf16.mxu0 %v274
  %410 = vmatpush1.bf16.msra.mxu0 %v273
  %411 = vmatprep.subr.bf16.mxu0 0
  %412 = vmatpush1.bf16.msra.mxu0 0
  %413 = vmatprep.subr.bf16.mxu0 0
  %414 = vmatpush1.bf16.msra.mxu0 0
  %415 = vmatprep.subr.bf16.mxu0 0
  %416 = vmatpush1.bf16.msra.mxu0 0
  %417 = vmatprep.subr.bf16.mxu0 0
  %418 = vmatpush1.bf16.msra.mxu0 0
  %419 = vmatprep.subr.bf16.mxu0 0
  %420 = vmatpush1.bf16.msra.mxu0 0
  %421 = vmatprep.subr.bf16.mxu0 0
  %422 = vmatpush1.bf16.msra.mxu0 0
  %423 = vmatprep.subr.bf16.mxu0 0
  %424 = vmatpush1.bf16.msra.mxu0 0
  %425 = vmatprep.subr.bf16.mxu0 0
  %426 = vmatpush1.bf16.msra.mxu0 0
  %427 = vmatprep.subr.bf16.mxu0 0
  %428 = vmatpush1.bf16.msra.mxu0 0
  %429 = vmatprep.subr.bf16.mxu0 0
  %430 = vmatpush1.bf16.msra.mxu0 0
  %431 = vmatprep.subr.bf16.mxu0 0
  %432 = vmatpush1.bf16.msra.mxu0 0
  %433 = vmatprep.subr.bf16.mxu0 0
  %434 = vmatpush1.bf16.msra.mxu0 0
  %435 = vmatprep.subr.bf16.mxu0 0
  %436 = vmatpush1.bf16.msra.mxu0 0
  %437 = vmatprep.subr.bf16.mxu0 0
  %438 = vmatpush1.bf16.msra.mxu0 0
  %439 = vmatprep.mubr.bf16.mxu0 0
  %440 = vmatmul.mubr.bf16.gmra.mrb[0].mxu0 %v319
  %v441 = vpop.f32.mrb[0].mxu0
  %v442 = vadd.f32 %v91, %v441
  %v443 = vpop.f32.mrb[0].mxu0
  %v444 = vadd.f32 %v95, %v443
  %v445 = vpop.f32.mrb[0].mxu0
  %v446 = vadd.f32 %v91, %v445
  %v447 = vpop.f32.mrb[0].mxu0
  %v448 = vadd.f32 %v95, %v447
  %449 = vdwg.mxu0
  %450 = vmatprep.subr.bf16.mxu0 %v260
  %451 = vmatpush1.bf16.msra.mxu0 %v259
  %452 = vmatprep.subr.bf16.mxu0 %v276
  %453 = vmatpush1.bf16.msra.mxu0 %v275
  %454 = vmatprep.subr.bf16.mxu0 0
  %455 = vmatpush1.bf16.msra.mxu0 0
  %456 = vmatprep.subr.bf16.mxu0 0
  %457 = vmatpush1.bf16.msra.mxu0 0
  %458 = vmatprep.subr.bf16.mxu0 0
  %459 = vmatpush1.bf16.msra.mxu0 0
  %460 = vmatprep.subr.bf16.mxu0 0
  %461 = vmatpush1.bf16.msra.mxu0 0
  %462 = vmatprep.subr.bf16.mxu0 0
  %463 = vmatpush1.bf16.msra.mxu0 0
  %464 = vmatprep.subr.bf16.mxu0 0
  %465 = vmatpush1.bf16.msra.mxu0 0
  %466 = vmatprep.subr.bf16.mxu0 0
  %467 = vmatpush1.bf16.msra.mxu0 0
  %468 = vmatprep.subr.bf16.mxu0 0
  %469 = vmatpush1.bf16.msra.mxu0 0
  %470 = vmatprep.subr.bf16.mxu0 0
  %471 = vmatpush1.bf16.msra.mxu0 0
  %472 = vmatprep.subr.bf16.mxu0 0
  %473 = vmatpush1.bf16.msra.mxu0 0
  %474 = vmatprep.subr.bf16.mxu0 0
  %475 = vmatpush1.bf16.msra.mxu0 0
  %476 = vmatprep.subr.bf16.mxu0 0
  %477 = vmatpush1.bf16.msra.mxu0 0
  %478 = vmatprep.subr.bf16.mxu0 0
  %479 = vmatpush1.bf16.msra.mxu0 0
  %480 = vmatprep.subr.bf16.mxu0 0
  %481 = vmatpush1.bf16.msra.mxu0 0
  %482 = vmatprep.mubr.bf16.mxu0 0
  %483 = vmatmul.mubr.bf16.gmra.mrb[0].mxu0 %v319
  %v484 = vpop.f32.mrb[0].mxu0
  %v485 = vadd.f32 %v99, %v484
  %v486 = vpop.f32.mrb[0].mxu0
  %v487 = vadd.f32 %v103, %v486
  %v488 = vpop.f32.mrb[0].mxu0
  %v489 = vadd.f32 %v99, %v488
  %v490 = vpop.f32.mrb[0].mxu0
  %v491 = vadd.f32 %v103, %v490
  %492 = vdwg.mxu0
  %493 = vmatprep.subr.bf16.mxu0 %v262
  %494 = vmatpush1.bf16.msra.mxu0 %v261
  %495 = vmatprep.subr.bf16.mxu0 %v278
  %496 = vmatpush1.bf16.msra.mxu0 %v277
  %497 = vmatprep.subr.bf16.mxu0 0
  %498 = vmatpush1.bf16.msra.mxu0 0
  %499 = vmatprep.subr.bf16.mxu0 0
  %500 = vmatpush1.bf16.msra.mxu0 0
  %501 = vmatprep.subr.bf16.mxu0 0
  %502 = vmatpush1.bf16.msra.mxu0 0
  %503 = vmatprep.subr.bf16.mxu0 0
  %504 = vmatpush1.bf16.msra.mxu0 0
  %505 = vmatprep.subr.bf16.mxu0 0
  %506 = vmatpush1.bf16.msra.mxu0 0
  %507 = vmatprep.subr.bf16.mxu0 0
  %508 = vmatpush1.bf16.msra.mxu0 0
  %509 = vmatprep.subr.bf16.mxu0 0
  %510 = vmatpush1.bf16.msra.mxu0 0
  %511 = vmatprep.subr.bf16.mxu0 0
  %512 = vmatpush1.bf16.msra.mxu0 0
  %513 = vmatprep.subr.bf16.mxu0 0
  %514 = vmatpush1.bf16.msra.mxu0 0
  %515 = vmatprep.subr.bf16.mxu0 0
  %516 = vmatpush1.bf16.msra.mxu0 0
  %517 = vmatprep.subr.bf16.mxu0 0
  %518 = vmatpush1.bf16.msra.mxu0 0
  %519 = vmatprep.subr.bf16.mxu0 0
  %520 = vmatpush1.bf16.msra.mxu0 0
  %521 = vmatprep.subr.bf16.mxu0 0
  %522 = vmatpush1.bf16.msra.mxu0 0
  %523 = vmatprep.subr.bf16.mxu0 0
  %524 = vmatpush1.bf16.msra.mxu0 0
  %525 = vmatprep.mubr.bf16.mxu0 0
  %526 = vmatmul.mubr.bf16.gmra.mrb[0].mxu0 %v319
  %v527 = vpop.f32.mrb[0].mxu0
  %v528 = vadd.f32 %v107, %v527
  %v529 = vpop.f32.mrb[0].mxu0
  %v530 = vadd.f32 %v111, %v529
  %v531 = vpop.f32.mrb[0].mxu0
  %v532 = vadd.f32 %v107, %v531
  %v533 = vpop.f32.mrb[0].mxu0
  %v534 = vadd.f32 %v111, %v533
  %535 = vdwg.mxu0
  %536 = vmatprep.subr.bf16.mxu0 %v264
  %537 = vmatpush1.bf16.msra.mxu0 %v263
  %538 = vmatprep.subr.bf16.mxu0 %v280
  %539 = vmatpush1.bf16.msra.mxu0 %v279
  %540 = vmatprep.subr.bf16.mxu0 0
  %541 = vmatpush1.bf16.msra.mxu0 0
  %542 = vmatprep.subr.bf16.mxu0 0
  %543 = vmatpush1.bf16.msra.mxu0 0
  %544 = vmatprep.subr.bf16.mxu0 0
  %545 = vmatpush1.bf16.msra.mxu0 0
  %546 = vmatprep.subr.bf16.mxu0 0
  %547 = vmatpush1.bf16.msra.mxu0 0
  %548 = vmatprep.subr.bf16.mxu0 0
  %549 = vmatpush1.bf16.msra.mxu0 0
  %550 = vmatprep.subr.bf16.mxu0 0
  %551 = vmatpush1.bf16.msra.mxu0 0
  %552 = vmatprep.subr.bf16.mxu0 0
  %553 = vmatpush1.bf16.msra.mxu0 0
  %554 = vmatprep.subr.bf16.mxu0 0
  %555 = vmatpush1.bf16.msra.mxu0 0
  %556 = vmatprep.subr.bf16.mxu0 0
  %557 = vmatpush1.bf16.msra.mxu0 0
  %558 = vmatprep.subr.bf16.mxu0 0
  %559 = vmatpush1.bf16.msra.mxu0 0
  %560 = vmatprep.subr.bf16.mxu0 0
  %561 = vmatpush1.bf16.msra.mxu0 0
  %562 = vmatprep.subr.bf16.mxu0 0
  %563 = vmatpush1.bf16.msra.mxu0 0
  %564 = vmatprep.subr.bf16.mxu0 0
  %565 = vmatpush1.bf16.msra.mxu0 0
  %566 = vmatprep.subr.bf16.mxu0 0
  %567 = vmatpush1.bf16.msra.mxu0 0
  %568 = vmatprep.mubr.bf16.mxu0 0
  %569 = vmatmul.mubr.bf16.gmra.mrb[0].mxu0 %v319
  %v570 = vpop.f32.mrb[0].mxu0
  %v571 = vadd.f32 %v115, %v570
  %v572 = vpop.f32.mrb[0].mxu0
  %v573 = vadd.f32 %v119, %v572
  %v574 = vpop.f32.mrb[0].mxu0
  %v575 = vadd.f32 %v115, %v574
  %v576 = vpop.f32.mrb[0].mxu0
  %v577 = vadd.f32 %v119, %v576
  %578 = vdwg.mxu0
  %579 = vmatprep.subr.bf16.mxu0 %v266
  %580 = vmatpush1.bf16.msra.mxu0 %v265
  %581 = vmatprep.subr.bf16.mxu0 %v282
  %582 = vmatpush1.bf16.msra.mxu0 %v281
  %583 = vmatprep.subr.bf16.mxu0 0
  %584 = vmatpush1.bf16.msra.mxu0 0
  %585 = vmatprep.subr.bf16.mxu0 0
  %586 = vmatpush1.bf16.msra.mxu0 0
  %587 = vmatprep.subr.bf16.mxu0 0
  %588 = vmatpush1.bf16.msra.mxu0 0
  %589 = vmatprep.subr.bf16.mxu0 0
  %590 = vmatpush1.bf16.msra.mxu0 0
  %591 = vmatprep.subr.bf16.mxu0 0
  %592 = vmatpush1.bf16.msra.mxu0 0
  %593 = vmatprep.subr.bf16.mxu0 0
  %594 = vmatpush1.bf16.msra.mxu0 0
  %595 = vmatprep.subr.bf16.mxu0 0
  %596 = vmatpush1.bf16.msra.mxu0 0
  %597 = vmatprep.subr.bf16.mxu0 0
  %598 = vmatpush1.bf16.msra.mxu0 0
  %599 = vmatprep.subr.bf16.mxu0 0
  %600 = vmatpush1.bf16.msra.mxu0 0
  %601 = vmatprep.subr.bf16.mxu0 0
  %602 = vmatpush1.bf16.msra.mxu0 0
  %603 = vmatprep.subr.bf16.mxu0 0
  %604 = vmatpush1.bf16.msra.mxu0 0
  %605 = vmatprep.subr.bf16.mxu0 0
  %606 = vmatpush1.bf16.msra.mxu0 0
  %607 = vmatprep.subr.bf16.mxu0 0
  %608 = vmatpush1.bf16.msra.mxu0 0
  %609 = vmatprep.subr.bf16.mxu0 0
  %610 = vmatpush1.bf16.msra.mxu0 0
  %611 = vmatprep.mubr.bf16.mxu0 0
  %612 = vmatmul.mubr.bf16.gmra.mrb[0].mxu0 %v319
  %v613 = vpop.f32.mrb[0].mxu0
  %v614 = vadd.f32 %v123, %v613
  %v615 = vpop.f32.mrb[0].mxu0
  %v616 = vadd.f32 %v127, %v615
  %v617 = vpop.f32.mrb[0].mxu0
  %v618 = vadd.f32 %v123, %v617
  %v619 = vpop.f32.mrb[0].mxu0
  %v620 = vadd.f32 %v127, %v619
  %621 = vdwg.mxu0
  %622 = vmatprep.subr.bf16.mxu0 %v268
  %623 = vmatpush1.bf16.msra.mxu0 %v267
  %624 = vmatprep.subr.bf16.mxu0 %v284
  %625 = vmatpush1.bf16.msra.mxu0 %v283
  %626 = vmatprep.subr.bf16.mxu0 0
  %627 = vmatpush1.bf16.msra.mxu0 0
  %628 = vmatprep.subr.bf16.mxu0 0
  %629 = vmatpush1.bf16.msra.mxu0 0
  %630 = vmatprep.subr.bf16.mxu0 0
  %631 = vmatpush1.bf16.msra.mxu0 0
  %632 = vmatprep.subr.bf16.mxu0 0
  %633 = vmatpush1.bf16.msra.mxu0 0
  %634 = vmatprep.subr.bf16.mxu0 0
  %635 = vmatpush1.bf16.msra.mxu0 0
  %636 = vmatprep.subr.bf16.mxu0 0
  %637 = vmatpush1.bf16.msra.mxu0 0
  %638 = vmatprep.subr.bf16.mxu0 0
  %639 = vmatpush1.bf16.msra.mxu0 0
  %640 = vmatprep.subr.bf16.mxu0 0
  %641 = vmatpush1.bf16.msra.mxu0 0
  %642 = vmatprep.subr.bf16.mxu0 0
  %643 = vmatpush1.bf16.msra.mxu0 0
  %644 = vmatprep.subr.bf16.mxu0 0
  %645 = vmatpush1.bf16.msra.mxu0 0
  %646 = vmatprep.subr.bf16.mxu0 0
  %647 = vmatpush1.bf16.msra.mxu0 0
  %648 = vmatprep.subr.bf16.mxu0 0
  %649 = vmatpush1.bf16.msra.mxu0 0
  %650 = vmatprep.subr.bf16.mxu0 0
  %651 = vmatpush1.bf16.msra.mxu0 0
  %652 = vmatprep.subr.bf16.mxu0 0
  %653 = vmatpush1.bf16.msra.mxu0 0
  %654 = vmatprep.mubr.bf16.mxu0 0
  %655 = vmatmul.mubr.bf16.gmra.mrb[0].mxu0 %v319
  %v656 = vpop.f32.mrb[0].mxu0
  %v657 = vadd.f32 %v131, %v656
  %v658 = vpop.f32.mrb[0].mxu0
  %v659 = vadd.f32 %v135, %v658
  %v660 = vpop.f32.mrb[0].mxu0
  %v661 = vadd.f32 %v131, %v660
  %v662 = vpop.f32.mrb[0].mxu0
  %v663 = vadd.f32 %v135, %v662
  %664 = vdwg.mxu0
  %v665 = vmax.f32 %v356, 0.0
  %v666 = vmax.f32 %v358, 0.0
  %v667 = vmax.f32 %v399, 0.0
  %v668 = vmax.f32 %v401, 0.0
  %v669 = vmax.f32 %v442, 0.0
  %v670 = vmax.f32 %v444, 0.0
  %v671 = vmax.f32 %v485, 0.0
  %v672 = vmax.f32 %v487, 0.0
  %v673 = vmax.f32 %v528, 0.0
  %v674 = vmax.f32 %v530, 0.0
  %v675 = vmax.f32 %v571, 0.0
  %v676 = vmax.f32 %v573, 0.0
  %v677 = vmax.f32 %v614, 0.0
  %v678 = vmax.f32 %v616, 0.0
  %v679 = vmax.f32 %v657, 0.0
  %v680 = vmax.f32 %v659, 0.0
  %v681 = vmax.f32 %v360, 0.0
  %v682 = vmax.f32 %v362, 0.0
  %v683 = vmax.f32 %v403, 0.0
  %v684 = vmax.f32 %v405, 0.0
  %v685 = vmax.f32 %v446, 0.0
  %v686 = vmax.f32 %v448, 0.0
  %v687 = vmax.f32 %v489, 0.0
  %v688 = vmax.f32 %v491, 0.0
  %v689 = vmax.f32 %v532, 0.0
  %v690 = vmax.f32 %v534, 0.0
  %v691 = vmax.f32 %v575, 0.0
  %v692 = vmax.f32 %v577, 0.0
  %v693 = vmax.f32 %v618, 0.0
  %v694 = vmax.f32 %v620, 0.0
  %v695 = vmax.f32 %v661, 0.0
  %v696 = vmax.f32 %v663, 0.0
  %v697 = vld [vmem:[#allocation2] sm:$0xff]
  %v698 = vld [vmem:[#allocation2 + $0x8] sm:$0xff]
  %v699 = vpack.c.bf16 %v681, %v665
  %v700 = vpack.c.bf16 %v682, %v666
  %v701 = vpack.c.bf16 %v683, %v667
  %v702 = vpack.c.bf16 %v684, %v668
  %v703 = vpack.c.bf16 %v685, %v669
  %v704 = vpack.c.bf16 %v686, %v670
  %v705 = vpack.c.bf16 %v687, %v671
  %v706 = vpack.c.bf16 %v688, %v672
  %v707 = vpack.c.bf16 %v689, %v673
  %v708 = vpack.c.bf16 %v690, %v674
  %v709 = vpack.c.bf16 %v691, %v675
  %v710 = vpack.c.bf16 %v692, %v676
  %v711 = vpack.c.bf16 %v693, %v677
  %v712 = vpack.c.bf16 %v694, %v678
  %v713 = vpack.c.bf16 %v695, %v679
  %v714 = vpack.c.bf16 %v696, %v680
  %v715 = vld [vmem:[%s3] sm:$0xf]
  %v716 = vld [vmem:[%s3 + $0x4] sm:$0xf]
  %v717 = vld [vmem:[%s3 + $0x8] sm:$0xf]
  %v718 = vld [vmem:[%s3 + $0xc] sm:$0xf]
  %v719 = vld [vmem:[%s3 + $0x10] sm:$0xf]
  %v720 = vld [vmem:[%s3 + $0x14] sm:$0xf]
  %v721 = vld [vmem:[%s3 + $0x18] sm:$0xf]
  %v722 = vld [vmem:[%s3 + $0x1c] sm:$0xf]
  %v723 = vld [vmem:[%s3 + $0x20] sm:$0xf]
  %v724 = vld [vmem:[%s3 + $0x24] sm:$0xf]
  %v725 = vld [vmem:[%s3 + $0x28] sm:$0xf]
  %v726 = vld [vmem:[%s3 + $0x2c] sm:$0xf]
  %v727 = vld [vmem:[%s3 + $0x30] sm:$0xf]
  %v728 = vld [vmem:[%s3 + $0x34] sm:$0xf]
  %v729 = vld [vmem:[%s3 + $0x38] sm:$0xf]
  %v730 = vld [vmem:[%s3 + $0x3c] sm:$0xf]
  %v731 = vld [vmem:[%s3 + $0x40] sm:$0xf]
  %v732 = vld [vmem:[%s3 + $0x44] sm:$0xf]
  %v733 = vld [vmem:[%s3 + $0x48] sm:$0xf]
  %v734 = vld [vmem:[%s3 + $0x4c] sm:$0xf]
  %v735 = vld [vmem:[%s3 + $0x50] sm:$0xf]
  %v736 = vld [vmem:[%s3 + $0x54] sm:$0xf]
  %v737 = vld [vmem:[%s3 + $0x58] sm:$0xf]
  %v738 = vld [vmem:[%s3 + $0x5c] sm:$0xf]
  %v739 = vld [vmem:[%s3 + $0x60] sm:$0xf]
  %v740 = vld [vmem:[%s3 + $0x64] sm:$0xf]
  %v741 = vld [vmem:[%s3 + $0x68] sm:$0xf]
  %v742 = vld [vmem:[%s3 + $0x6c] sm:$0xf]
  %v743 = vld [vmem:[%s3 + $0x70] sm:$0xf]
  %v744 = vld [vmem:[%s3 + $0x74] sm:$0xf]
  %v745 = vld [vmem:[%s3 + $0x78] sm:$0xf]
  %v746 = vld [vmem:[%s3 + $0x7c] sm:$0xf]
  %v747 = vld [vmem:[%s3 + $0x80] sm:$0xf]
  %v748 = vld [vmem:[%s3 + $0x84] sm:$0xf]
  %v749 = vld [vmem:[%s3 + $0x88] sm:$0xf]
  %v750 = vld [vmem:[%s3 + $0x8c] sm:$0xf]
  %v751 = vld [vmem:[%s3 + $0x90] sm:$0xf]
  %v752 = vld [vmem:[%s3 + $0x94] sm:$0xf]
  %v753 = vld [vmem:[%s3 + $0x98] sm:$0xf]
  %v754 = vld [vmem:[%s3 + $0x9c] sm:$0xf]
  %v755 = vld [vmem:[%s3 + $0xa0] sm:$0xf]
  %v756 = vld [vmem:[%s3 + $0xa4] sm:$0xf]
  %v757 = vld [vmem:[%s3 + $0xa8] sm:$0xf]
  %v758 = vld [vmem:[%s3 + $0xac] sm:$0xf]
  %v759 = vld [vmem:[%s3 + $0xb0] sm:$0xf]
  %v760 = vld [vmem:[%s3 + $0xb4] sm:$0xf]
  %v761 = vld [vmem:[%s3 + $0xb8] sm:$0xf]
  %v762 = vld [vmem:[%s3 + $0xbc] sm:$0xf]
  %v763 = vld [vmem:[%s3 + $0xc0] sm:$0xf]
  %v764 = vld [vmem:[%s3 + $0xc4] sm:$0xf]
  %v765 = vld [vmem:[%s3 + $0xc8] sm:$0xf]
  %v766 = vld [vmem:[%s3 + $0xcc] sm:$0xf]
  %v767 = vld [vmem:[%s3 + $0xd0] sm:$0xf]
  %v768 = vld [vmem:[%s3 + $0xd4] sm:$0xf]
  %v769 = vld [vmem:[%s3 + $0xd8] sm:$0xf]
  %v770 = vld [vmem:[%s3 + $0xdc] sm:$0xf]
  %v771 = vld [vmem:[%s3 + $0xe0] sm:$0xf]
  %v772 = vld [vmem:[%s3 + $0xe4] sm:$0xf]
  %v773 = vld [vmem:[%s3 + $0xe8] sm:$0xf]
  %v774 = vld [vmem:[%s3 + $0xec] sm:$0xf]
  %v775 = vld [vmem:[%s3 + $0xf0] sm:$0xf]
  %v776 = vld [vmem:[%s3 + $0xf4] sm:$0xf]
  %v777 = vld [vmem:[%s3 + $0xf8] sm:$0xf]
  %v778 = vld [vmem:[%s3 + $0xfc] sm:$0xf]
  %v779 = vld [vmem:[%s3 + $0x100] sm:$0xf]
  %v780 = vld [vmem:[%s3 + $0x104] sm:$0xf]
  %v781 = vld [vmem:[%s3 + $0x108] sm:$0xf]
  %v782 = vld [vmem:[%s3 + $0x10c] sm:$0xf]
  %v783 = vld [vmem:[%s3 + $0x110] sm:$0xf]
  %v784 = vld [vmem:[%s3 + $0x114] sm:$0xf]
  %v785 = vld [vmem:[%s3 + $0x118] sm:$0xf]
  %v786 = vld [vmem:[%s3 + $0x11c] sm:$0xf]
  %v787 = vld [vmem:[%s3 + $0x120] sm:$0xf]
  %v788 = vld [vmem:[%s3 + $0x124] sm:$0xf]
  %v789 = vld [vmem:[%s3 + $0x128] sm:$0xf]
  %v790 = vld [vmem:[%s3 + $0x12c] sm:$0xf]
  %v791 = vld [vmem:[%s3 + $0x130] sm:$0xf]
  %v792 = vld [vmem:[%s3 + $0x134] sm:$0xf]
  %v793 = vld [vmem:[%s3 + $0x138] sm:$0xf]
  %v794 = vld [vmem:[%s3 + $0x13c] sm:$0xf]
  %v795 = vld [vmem:[%s3 + $0x140] sm:$0xf]
  %v796 = vld [vmem:[%s3 + $0x144] sm:$0xf]
  %v797 = vld [vmem:[%s3 + $0x148] sm:$0xf]
  %v798 = vld [vmem:[%s3 + $0x14c] sm:$0xf]
  %v799 = vld [vmem:[%s3 + $0x150] sm:$0xf]
  %v800 = vld [vmem:[%s3 + $0x154] sm:$0xf]
  %v801 = vld [vmem:[%s3 + $0x158] sm:$0xf]
  %v802 = vld [vmem:[%s3 + $0x15c] sm:$0xf]
  %v803 = vld [vmem:[%s3 + $0x160] sm:$0xf]
  %v804 = vld [vmem:[%s3 + $0x164] sm:$0xf]
  %v805 = vld [vmem:[%s3 + $0x168] sm:$0xf]
  %v806 = vld [vmem:[%s3 + $0x16c] sm:$0xf]
  %v807 = vld [vmem:[%s3 + $0x170] sm:$0xf]
  %v808 = vld [vmem:[%s3 + $0x174] sm:$0xf]
  %v809 = vld [vmem:[%s3 + $0x178] sm:$0xf]
  %v810 = vld [vmem:[%s3 + $0x17c] sm:$0xf]
  %v811 = vld [vmem:[%s3 + $0x180] sm:$0xf]
  %v812 = vld [vmem:[%s3 + $0x184] sm:$0xf]
  %v813 = vld [vmem:[%s3 + $0x188] sm:$0xf]
  %v814 = vld [vmem:[%s3 + $0x18c] sm:$0xf]
  %v815 = vld [vmem:[%s3 + $0x190] sm:$0xf]
  %v816 = vld [vmem:[%s3 + $0x194] sm:$0xf]
  %v817 = vld [vmem:[%s3 + $0x198] sm:$0xf]
  %v818 = vld [vmem:[%s3 + $0x19c] sm:$0xf]
  %v819 = vld [vmem:[%s3 + $0x1a0] sm:$0xf]
  %v820 = vld [vmem:[%s3 + $0x1a4] sm:$0xf]
  %v821 = vld [vmem:[%s3 + $0x1a8] sm:$0xf]
  %v822 = vld [vmem:[%s3 + $0x1ac] sm:$0xf]
  %v823 = vld [vmem:[%s3 + $0x1b0] sm:$0xf]
  %v824 = vld [vmem:[%s3 + $0x1b4] sm:$0xf]
  %v825 = vld [vmem:[%s3 + $0x1b8] sm:$0xf]
  %v826 = vld [vmem:[%s3 + $0x1bc] sm:$0xf]
  %v827 = vld [vmem:[%s3 + $0x1c0] sm:$0xf]
  %v828 = vld [vmem:[%s3 + $0x1c4] sm:$0xf]
  %v829 = vld [vmem:[%s3 + $0x1c8] sm:$0xf]
  %v830 = vld [vmem:[%s3 + $0x1cc] sm:$0xf]
  %v831 = vld [vmem:[%s3 + $0x1d0] sm:$0xf]
  %v832 = vld [vmem:[%s3 + $0x1d4] sm:$0xf]
  %v833 = vld [vmem:[%s3 + $0x1d8] sm:$0xf]
  %v834 = vld [vmem:[%s3 + $0x1dc] sm:$0xf]
  %v835 = vld [vmem:[%s3 + $0x1e0] sm:$0xf]
  %v836 = vld [vmem:[%s3 + $0x1e4] sm:$0xf]
  %v837 = vld [vmem:[%s3 + $0x1e8] sm:$0xf]
  %v838 = vld [vmem:[%s3 + $0x1ec] sm:$0xf]
  %v839 = vld [vmem:[%s3 + $0x1f0] sm:$0xf]
  %v840 = vld [vmem:[%s3 + $0x1f4] sm:$0xf]
  %v841 = vld [vmem:[%s3 + $0x1f8] sm:$0xf]
  %v842 = vld [vmem:[%s3 + $0x1fc] sm:$0xf]
  %v843 = vld [vmem:[%s3 + $0x200] sm:$0xf]
  %v844 = vld [vmem:[%s3 + $0x204] sm:$0xf]
  %v845 = vld [vmem:[%s3 + $0x208] sm:$0xf]
  %v846 = vld [vmem:[%s3 + $0x20c] sm:$0xf]
  %v847 = vld [vmem:[%s3 + $0x210] sm:$0xf]
  %v848 = vld [vmem:[%s3 + $0x214] sm:$0xf]
  %v849 = vld [vmem:[%s3 + $0x218] sm:$0xf]
  %v850 = vld [vmem:[%s3 + $0x21c] sm:$0xf]
  %v851 = vld [vmem:[%s3 + $0x220] sm:$0xf]
  %v852 = vld [vmem:[%s3 + $0x224] sm:$0xf]
  %v853 = vld [vmem:[%s3 + $0x228] sm:$0xf]
  %v854 = vld [vmem:[%s3 + $0x22c] sm:$0xf]
  %v855 = vld [vmem:[%s3 + $0x230] sm:$0xf]
  %v856 = vld [vmem:[%s3 + $0x234] sm:$0xf]
  %v857 = vld [vmem:[%s3 + $0x238] sm:$0xf]
  %v858 = vld [vmem:[%s3 + $0x23c] sm:$0xf]
  %v859 = vld [vmem:[%s3 + $0x240] sm:$0xf]
  %v860 = vld [vmem:[%s3 + $0x244] sm:$0xf]
  %v861 = vld [vmem:[%s3 + $0x248] sm:$0xf]
  %v862 = vld [vmem:[%s3 + $0x24c] sm:$0xf]
  %v863 = vld [vmem:[%s3 + $0x250] sm:$0xf]
  %v864 = vld [vmem:[%s3 + $0x254] sm:$0xf]
  %v865 = vld [vmem:[%s3 + $0x258] sm:$0xf]
  %v866 = vld [vmem:[%s3 + $0x25c] sm:$0xf]
  %v867 = vld [vmem:[%s3 + $0x260] sm:$0xf]
  %v868 = vld [vmem:[%s3 + $0x264] sm:$0xf]
  %v869 = vld [vmem:[%s3 + $0x268] sm:$0xf]
  %v870 = vld [vmem:[%s3 + $0x26c] sm:$0xf]
  %v871 = vld [vmem:[%s3 + $0x270] sm:$0xf]
  %v872 = vld [vmem:[%s3 + $0x274] sm:$0xf]
  %v873 = vld [vmem:[%s3 + $0x278] sm:$0xf]
  %v874 = vld [vmem:[%s3 + $0x27c] sm:$0xf]
  %v875 = vld [vmem:[%s3 + $0x280] sm:$0xf]
  %v876 = vld [vmem:[%s3 + $0x284] sm:$0xf]
  %v877 = vld [vmem:[%s3 + $0x288] sm:$0xf]
  %v878 = vld [vmem:[%s3 + $0x28c] sm:$0xf]
  %v879 = vld [vmem:[%s3 + $0x290] sm:$0xf]
  %v880 = vld [vmem:[%s3 + $0x294] sm:$0xf]
  %v881 = vld [vmem:[%s3 + $0x298] sm:$0xf]
  %v882 = vld [vmem:[%s3 + $0x29c] sm:$0xf]
  %v883 = vld [vmem:[%s3 + $0x2a0] sm:$0xf]
  %v884 = vld [vmem:[%s3 + $0x2a4] sm:$0xf]
  %v885 = vld [vmem:[%s3 + $0x2a8] sm:$0xf]
  %v886 = vld [vmem:[%s3 + $0x2ac] sm:$0xf]
  %v887 = vld [vmem:[%s3 + $0x2b0] sm:$0xf]
  %v888 = vld [vmem:[%s3 + $0x2b4] sm:$0xf]
  %v889 = vld [vmem:[%s3 + $0x2b8] sm:$0xf]
  %v890 = vld [vmem:[%s3 + $0x2bc] sm:$0xf]
  %v891 = vld [vmem:[%s3 + $0x2c0] sm:$0xf]
  %v892 = vld [vmem:[%s3 + $0x2c4] sm:$0xf]
  %v893 = vld [vmem:[%s3 + $0x2c8] sm:$0xf]
  %v894 = vld [vmem:[%s3 + $0x2cc] sm:$0xf]
  %v895 = vld [vmem:[%s3 + $0x2d0] sm:$0xf]
  %v896 = vld [vmem:[%s3 + $0x2d4] sm:$0xf]
  %v897 = vld [vmem:[%s3 + $0x2d8] sm:$0xf]
  %v898 = vld [vmem:[%s3 + $0x2dc] sm:$0xf]
  %v899 = vld [vmem:[%s3 + $0x2e0] sm:$0xf]
  %v900 = vld [vmem:[%s3 + $0x2e4] sm:$0xf]
  %v901 = vld [vmem:[%s3 + $0x2e8] sm:$0xf]
  %v902 = vld [vmem:[%s3 + $0x2ec] sm:$0xf]
  %v903 = vld [vmem:[%s3 + $0x2f0] sm:$0xf]
  %v904 = vld [vmem:[%s3 + $0x2f4] sm:$0xf]
  %v905 = vld [vmem:[%s3 + $0x2f8] sm:$0xf]
  %v906 = vld [vmem:[%s3 + $0x2fc] sm:$0xf]
  %v907 = vld [vmem:[%s3 + $0x300] sm:$0xf]
  %v908 = vld [vmem:[%s3 + $0x304] sm:$0xf]
  %v909 = vld [vmem:[%s3 + $0x308] sm:$0xf]
  %v910 = vld [vmem:[%s3 + $0x30c] sm:$0xf]
  %v911 = vld [vmem:[%s3 + $0x310] sm:$0xf]
  %v912 = vld [vmem:[%s3 + $0x314] sm:$0xf]
  %v913 = vld [vmem:[%s3 + $0x318] sm:$0xf]
  %v914 = vld [vmem:[%s3 + $0x31c] sm:$0xf]
  %v915 = vld [vmem:[%s3 + $0x320] sm:$0xf]
  %v916 = vld [vmem:[%s3 + $0x324] sm:$0xf]
  %v917 = vld [vmem:[%s3 + $0x328] sm:$0xf]
  %v918 = vld [vmem:[%s3 + $0x32c] sm:$0xf]
  %v919 = vld [vmem:[%s3 + $0x330] sm:$0xf]
  %v920 = vld [vmem:[%s3 + $0x334] sm:$0xf]
  %v921 = vld [vmem:[%s3 + $0x338] sm:$0xf]
  %v922 = vld [vmem:[%s3 + $0x33c] sm:$0xf]
  %v923 = vld [vmem:[%s3 + $0x340] sm:$0xf]
  %v924 = vld [vmem:[%s3 + $0x344] sm:$0xf]
  %v925 = vld [vmem:[%s3 + $0x348] sm:$0xf]
  %v926 = vld [vmem:[%s3 + $0x34c] sm:$0xf]
  %v927 = vld [vmem:[%s3 + $0x350] sm:$0xf]
  %v928 = vld [vmem:[%s3 + $0x354] sm:$0xf]
  %v929 = vld [vmem:[%s3 + $0x358] sm:$0xf]
  %v930 = vld [vmem:[%s3 + $0x35c] sm:$0xf]
  %v931 = vld [vmem:[%s3 + $0x360] sm:$0xf]
  %v932 = vld [vmem:[%s3 + $0x364] sm:$0xf]
  %v933 = vld [vmem:[%s3 + $0x368] sm:$0xf]
  %v934 = vld [vmem:[%s3 + $0x36c] sm:$0xf]
  %v935 = vld [vmem:[%s3 + $0x370] sm:$0xf]
  %v936 = vld [vmem:[%s3 + $0x374] sm:$0xf]
  %v937 = vld [vmem:[%s3 + $0x378] sm:$0xf]
  %v938 = vld [vmem:[%s3 + $0x37c] sm:$0xf]
  %v939 = vld [vmem:[%s3 + $0x380] sm:$0xf]
  %v940 = vld [vmem:[%s3 + $0x384] sm:$0xf]
  %v941 = vld [vmem:[%s3 + $0x388] sm:$0xf]
  %v942 = vld [vmem:[%s3 + $0x38c] sm:$0xf]
  %v943 = vld [vmem:[%s3 + $0x390] sm:$0xf]
  %v944 = vld [vmem:[%s3 + $0x394] sm:$0xf]
  %v945 = vld [vmem:[%s3 + $0x398] sm:$0xf]
  %v946 = vld [vmem:[%s3 + $0x39c] sm:$0xf]
  %v947 = vld [vmem:[%s3 + $0x3a0] sm:$0xf]
  %v948 = vld [vmem:[%s3 + $0x3a4] sm:$0xf]
  %v949 = vld [vmem:[%s3 + $0x3a8] sm:$0xf]
  %v950 = vld [vmem:[%s3 + $0x3ac] sm:$0xf]
  %v951 = vld [vmem:[%s3 + $0x3b0] sm:$0xf]
  %v952 = vld [vmem:[%s3 + $0x3b4] sm:$0xf]
  %v953 = vld [vmem:[%s3 + $0x3b8] sm:$0xf]
  %v954 = vld [vmem:[%s3 + $0x3bc] sm:$0xf]
  %v955 = vld [vmem:[%s3 + $0x3c0] sm:$0xf]
  %v956 = vld [vmem:[%s3 + $0x3c4] sm:$0xf]
  %v957 = vld [vmem:[%s3 + $0x3c8] sm:$0xf]
  %v958 = vld [vmem:[%s3 + $0x3cc] sm:$0xf]
  %v959 = vld [vmem:[%s3 + $0x3d0] sm:$0xf]
  %v960 = vld [vmem:[%s3 + $0x3d4] sm:$0xf]
  %v961 = vld [vmem:[%s3 + $0x3d8] sm:$0xf]
  %v962 = vld [vmem:[%s3 + $0x3dc] sm:$0xf]
  %v963 = vld [vmem:[%s3 + $0x3e0] sm:$0xf]
  %v964 = vld [vmem:[%s3 + $0x3e4] sm:$0xf]
  %v965 = vld [vmem:[%s3 + $0x3e8] sm:$0xf]
  %v966 = vld [vmem:[%s3 + $0x3ec] sm:$0xf]
  %v967 = vld [vmem:[%s3 + $0x3f0] sm:$0xf]
  %v968 = vld [vmem:[%s3 + $0x3f4] sm:$0xf]
  %v969 = vld [vmem:[%s3 + $0x3f8] sm:$0xf]
  %v970 = vld [vmem:[%s3 + $0x3fc] sm:$0xf]
  %v1227 = vunpack.c.l.b16 %v715
  %v1228 = vunpack.c.l.b16 %v716
  %v1229 = vunpack.c.l.b16 %v717
  %v1230 = vunpack.c.l.b16 %v718
  %v1231 = vunpack.c.l.b16 %v719
  %v1232 = vunpack.c.l.b16 %v720
  %v1233 = vunpack.c.l.b16 %v721
  %v1234 = vunpack.c.l.b16 %v722
  %v1235 = vunpack.c.l.b16 %v723
  %v1236 = vunpack.c.l.b16 %v724
  %v1237 = vunpack.c.l.b16 %v725
  %v1238 = vunpack.c.l.b16 %v726
  %v1239 = vunpack.c.l.b16 %v727
  %v1240 = vunpack.c.l.b16 %v728
  %v1241 = vunpack.c.l.b16 %v729
  %v1242 = vunpack.c.l.b16 %v730
  %v1243 = vunpack.c.l.b16 %v731
  %v1244 = vunpack.c.l.b16 %v732
  %v1245 = vunpack.c.l.b16 %v733
  %v1246 = vunpack.c.l.b16 %v734
  %v1247 = vunpack.c.l.b16 %v735
  %v1248 = vunpack.c.l.b16 %v736
  %v1249 = vunpack.c.l.b16 %v737
  %v1250 = vunpack.c.l.b16 %v738
  %v1251 = vunpack.c.l.b16 %v739
  %v1252 = vunpack.c.l.b16 %v740
  %v1253 = vunpack.c.l.b16 %v741
  %v1254 = vunpack.c.l.b16 %v742
  %v1255 = vunpack.c.l.b16 %v743
  %v1256 = vunpack.c.l.b16 %v744
  %v1257 = vunpack.c.l.b16 %v745
  %v1258 = vunpack.c.l.b16 %v746
  %v1259 = vunpack.c.l.b16 %v747
  %v1260 = vunpack.c.l.b16 %v748
  %v1261 = vunpack.c.l.b16 %v749
  %v1262 = vunpack.c.l.b16 %v750
  %v1263 = vunpack.c.l.b16 %v751
  %v1264 = vunpack.c.l.b16 %v752
  %v1265 = vunpack.c.l.b16 %v753
  %v1266 = vunpack.c.l.b16 %v754
  %v1267 = vunpack.c.l.b16 %v755
  %v1268 = vunpack.c.l.b16 %v756
  %v1269 = vunpack.c.l.b16 %v757
  %v1270 = vunpack.c.l.b16 %v758
  %v1271 = vunpack.c.l.b16 %v759
  %v1272 = vunpack.c.l.b16 %v760
  %v1273 = vunpack.c.l.b16 %v761
  %v1274 = vunpack.c.l.b16 %v762
  %v1275 = vunpack.c.l.b16 %v763
  %v1276 = vunpack.c.l.b16 %v764
  %v1277 = vunpack.c.l.b16 %v765
  %v1278 = vunpack.c.l.b16 %v766
  %v1279 = vunpack.c.l.b16 %v767
  %v1280 = vunpack.c.l.b16 %v768
  %v1281 = vunpack.c.l.b16 %v769
  %v1282 = vunpack.c.l.b16 %v770
  %v1283 = vunpack.c.l.b16 %v771
  %v1284 = vunpack.c.l.b16 %v772
  %v1285 = vunpack.c.l.b16 %v773
  %v1286 = vunpack.c.l.b16 %v774
  %v1287 = vunpack.c.l.b16 %v775
  %v1288 = vunpack.c.l.b16 %v776
  %v1289 = vunpack.c.l.b16 %v777
  %v1290 = vunpack.c.l.b16 %v778
  %v1291 = vunpack.c.l.b16 %v779
  %v1292 = vunpack.c.l.b16 %v780
  %v1293 = vunpack.c.l.b16 %v781
  %v1294 = vunpack.c.l.b16 %v782
  %v1295 = vunpack.c.l.b16 %v783
  %v1296 = vunpack.c.l.b16 %v784
  %v1297 = vunpack.c.l.b16 %v785
  %v1298 = vunpack.c.l.b16 %v786
  %v1299 = vunpack.c.l.b16 %v787
  %v1300 = vunpack.c.l.b16 %v788
  %v1301 = vunpack.c.l.b16 %v789
  %v1302 = vunpack.c.l.b16 %v790
  %v1303 = vunpack.c.l.b16 %v791
  %v1304 = vunpack.c.l.b16 %v792
  %v1305 = vunpack.c.l.b16 %v793
  %v1306 = vunpack.c.l.b16 %v794
  %v1307 = vunpack.c.l.b16 %v795
  %v1308 = vunpack.c.l.b16 %v796
  %v1309 = vunpack.c.l.b16 %v797
  %v1310 = vunpack.c.l.b16 %v798
  %v1311 = vunpack.c.l.b16 %v799
  %v1312 = vunpack.c.l.b16 %v800
  %v1313 = vunpack.c.l.b16 %v801
  %v1314 = vunpack.c.l.b16 %v802
  %v1315 = vunpack.c.l.b16 %v803
  %v1316 = vunpack.c.l.b16 %v804
  %v1317 = vunpack.c.l.b16 %v805
  %v1318 = vunpack.c.l.b16 %v806
  %v1319 = vunpack.c.l.b16 %v807
  %v1320 = vunpack.c.l.b16 %v808
  %v1321 = vunpack.c.l.b16 %v809
  %v1322 = vunpack.c.l.b16 %v810
  %v1323 = vunpack.c.l.b16 %v811
  %v1324 = vunpack.c.l.b16 %v812
  %v1325 = vunpack.c.l.b16 %v813
  %v1326 = vunpack.c.l.b16 %v814
  %v1327 = vunpack.c.l.b16 %v815
  %v1328 = vunpack.c.l.b16 %v816
  %v1329 = vunpack.c.l.b16 %v817
  %v1330 = vunpack.c.l.b16 %v818
  %v1331 = vunpack.c.l.b16 %v819
  %v1332 = vunpack.c.l.b16 %v820
  %v1333 = vunpack.c.l.b16 %v821
  %v1334 = vunpack.c.l.b16 %v822
  %v1335 = vunpack.c.l.b16 %v823
  %v1336 = vunpack.c.l.b16 %v824
  %v1337 = vunpack.c.l.b16 %v825
  %v1338 = vunpack.c.l.b16 %v826
  %v1339 = vunpack.c.l.b16 %v827
  %v1340 = vunpack.c.l.b16 %v828
  %v1341 = vunpack.c.l.b16 %v829
  %v1342 = vunpack.c.l.b16 %v830
  %v1343 = vunpack.c.l.b16 %v831
  %v1344 = vunpack.c.l.b16 %v832
  %v1345 = vunpack.c.l.b16 %v833
  %v1346 = vunpack.c.l.b16 %v834
  %v1347 = vunpack.c.l.b16 %v835
  %v1348 = vunpack.c.l.b16 %v836
  %v1349 = vunpack.c.l.b16 %v837
  %v1350 = vunpack.c.l.b16 %v838
  %v1351 = vunpack.c.l.b16 %v839
  %v1352 = vunpack.c.l.b16 %v840
  %v1353 = vunpack.c.l.b16 %v841
  %v1354 = vunpack.c.l.b16 %v842
  %v1355 = vunpack.c.l.b16 %v843
  %v1356 = vunpack.c.l.b16 %v844
  %v1357 = vunpack.c.l.b16 %v845
  %v1358 = vunpack.c.l.b16 %v846
  %v1359 = vunpack.c.l.b16 %v847
  %v1360 = vunpack.c.l.b16 %v848
  %v1361 = vunpack.c.l.b16 %v849
  %v1362 = vunpack.c.l.b16 %v850
  %v1363 = vunpack.c.l.b16 %v851
  %v1364 = vunpack.c.l.b16 %v852
  %v1365 = vunpack.c.l.b16 %v853
  %v1366 = vunpack.c.l.b16 %v854
  %v1367 = vunpack.c.l.b16 %v855
  %v1368 = vunpack.c.l.b16 %v856
  %v1369 = vunpack.c.l.b16 %v857
  %v1370 = vunpack.c.l.b16 %v858
  %v1371 = vunpack.c.l.b16 %v859
  %v1372 = vunpack.c.l.b16 %v860
  %v1373 = vunpack.c.l.b16 %v861
  %v1374 = vunpack.c.l.b16 %v862
  %v1375 = vunpack.c.l.b16 %v863
  %v1376 = vunpack.c.l.b16 %v864
  %v1377 = vunpack.c.l.b16 %v865
  %v1378 = vunpack.c.l.b16 %v866
  %v1379 = vunpack.c.l.b16 %v867
  %v1380 = vunpack.c.l.b16 %v868
  %v1381 = vunpack.c.l.b16 %v869
  %v1382 = vunpack.c.l.b16 %v870
  %v1383 = vunpack.c.l.b16 %v871
  %v1384 = vunpack.c.l.b16 %v872
  %v1385 = vunpack.c.l.b16 %v873
  %v1386 = vunpack.c.l.b16 %v874
  %v1387 = vunpack.c.l.b16 %v875
  %v1388 = vunpack.c.l.b16 %v876
  %v1389 = vunpack.c.l.b16 %v877
  %v1390 = vunpack.c.l.b16 %v878
  %v1391 = vunpack.c.l.b16 %v879
  %v1392 = vunpack.c.l.b16 %v880
  %v1393 = vunpack.c.l.b16 %v881
  %v1394 = vunpack.c.l.b16 %v882
  %v1395 = vunpack.c.l.b16 %v883
  %v1396 = vunpack.c.l.b16 %v884
  %v1397 = vunpack.c.l.b16 %v885
  %v1398 = vunpack.c.l.b16 %v886
  %v1399 = vunpack.c.l.b16 %v887
  %v1400 = vunpack.c.l.b16 %v888
  %v1401 = vunpack.c.l.b16 %v889
  %v1402 = vunpack.c.l.b16 %v890
  %v1403 = vunpack.c.l.b16 %v891
  %v1404 = vunpack.c.l.b16 %v892
  %v1405 = vunpack.c.l.b16 %v893
  %v1406 = vunpack.c.l.b16 %v894
  %v1407 = vunpack.c.l.b16 %v895
  %v1408 = vunpack.c.l.b16 %v896
  %v1409 = vunpack.c.l.b16 %v897
  %v1410 = vunpack.c.l.b16 %v898
  %v1411 = vunpack.c.l.b16 %v899
  %v1412 = vunpack.c.l.b16 %v900
  %v1413 = vunpack.c.l.b16 %v901
  %v1414 = vunpack.c.l.b16 %v902
  %v1415 = vunpack.c.l.b16 %v903
  %v1416 = vunpack.c.l.b16 %v904
  %v1417 = vunpack.c.l.b16 %v905
  %v1418 = vunpack.c.l.b16 %v906
  %v1419 = vunpack.c.l.b16 %v907
  %v1420 = vunpack.c.l.b16 %v908
  %v1421 = vunpack.c.l.b16 %v909
  %v1422 = vunpack.c.l.b16 %v910
  %v1423 = vunpack.c.l.b16 %v911
  %v1424 = vunpack.c.l.b16 %v912
  %v1425 = vunpack.c.l.b16 %v913
  %v1426 = vunpack.c.l.b16 %v914
  %v1427 = vunpack.c.l.b16 %v915
  %v1428 = vunpack.c.l.b16 %v916
  %v1429 = vunpack.c.l.b16 %v917
  %v1430 = vunpack.c.l.b16 %v918
  %v1431 = vunpack.c.l.b16 %v919
  %v1432 = vunpack.c.l.b16 %v920
  %v1433 = vunpack.c.l.b16 %v921
  %v1434 = vunpack.c.l.b16 %v922
  %v1435 = vunpack.c.l.b16 %v923
  %v1436 = vunpack.c.l.b16 %v924
  %v1437 = vunpack.c.l.b16 %v925
  %v1438 = vunpack.c.l.b16 %v926
  %v1439 = vunpack.c.l.b16 %v927
  %v1440 = vunpack.c.l.b16 %v928
  %v1441 = vunpack.c.l.b16 %v929
  %v1442 = vunpack.c.l.b16 %v930
  %v1443 = vunpack.c.l.b16 %v931
  %v1444 = vunpack.c.l.b16 %v932
  %v1445 = vunpack.c.l.b16 %v933
  %v1446 = vunpack.c.l.b16 %v934
  %v1447 = vunpack.c.l.b16 %v935
  %v1448 = vunpack.c.l.b16 %v936
  %v1449 = vunpack.c.l.b16 %v937
  %v1450 = vunpack.c.l.b16 %v938
  %v1451 = vunpack.c.l.b16 %v939
  %v1452 = vunpack.c.l.b16 %v940
  %v1453 = vunpack.c.l.b16 %v941
  %v1454 = vunpack.c.l.b16 %v942
  %v1455 = vunpack.c.l.b16 %v943
  %v1456 = vunpack.c.l.b16 %v944
  %v1457 = vunpack.c.l.b16 %v945
  %v1458 = vunpack.c.l.b16 %v946
  %v1459 = vunpack.c.l.b16 %v947
  %v1460 = vunpack.c.l.b16 %v948
  %v1461 = vunpack.c.l.b16 %v949
  %v1462 = vunpack.c.l.b16 %v950
  %v1463 = vunpack.c.l.b16 %v951
  %v1464 = vunpack.c.l.b16 %v952
  %v1465 = vunpack.c.l.b16 %v953
  %v1466 = vunpack.c.l.b16 %v954
  %v1467 = vunpack.c.l.b16 %v955
  %v1468 = vunpack.c.l.b16 %v956
  %v1469 = vunpack.c.l.b16 %v957
  %v1470 = vunpack.c.l.b16 %v958
  %v1471 = vunpack.c.l.b16 %v959
  %v1472 = vunpack.c.l.b16 %v960
  %v1473 = vunpack.c.l.b16 %v961
  %v1474 = vunpack.c.l.b16 %v962
  %v1475 = vunpack.c.l.b16 %v963
  %v1476 = vunpack.c.l.b16 %v964
  %v1477 = vunpack.c.l.b16 %v965
  %v1478 = vunpack.c.l.b16 %v966
  %v1479 = vunpack.c.l.b16 %v967
  %v1480 = vunpack.c.l.b16 %v968
  %v1481 = vunpack.c.l.b16 %v969
  %v1482 = vunpack.c.l.b16 %v970
  %v1483 = vpack.c.b16 %v1228, %v1227
  %v1484 = vpack.c.b16 %v1230, %v1229
  %v1485 = vpack.c.b16 %v1232, %v1231
  %v1486 = vpack.c.b16 %v1234, %v1233
  %v1487 = vpack.c.b16 %v1236, %v1235
  %v1488 = vpack.c.b16 %v1238, %v1237
  %v1489 = vpack.c.b16 %v1240, %v1239
  %v1490 = vpack.c.b16 %v1242, %v1241
  %v1491 = vpack.c.b16 %v1244, %v1243
  %v1492 = vpack.c.b16 %v1246, %v1245
  %v1493 = vpack.c.b16 %v1248, %v1247
  %v1494 = vpack.c.b16 %v1250, %v1249
  %v1495 = vpack.c.b16 %v1252, %v1251
  %v1496 = vpack.c.b16 %v1254, %v1253
  %v1497 = vpack.c.b16 %v1256, %v1255
  %v1498 = vpack.c.b16 %v1258, %v1257
  %v1499 = vpack.c.b16 %v1260, %v1259
  %v1500 = vpack.c.b16 %v1262, %v1261
  %v1501 = vpack.c.b16 %v1264, %v1263
  %v1502 = vpack.c.b16 %v1266, %v1265
  %v1503 = vpack.c.b16 %v1268, %v1267
  %v1504 = vpack.c.b16 %v1270, %v1269
  %v1505 = vpack.c.b16 %v1272, %v1271
  %v1506 = vpack.c.b16 %v1274, %v1273
  %v1507 = vpack.c.b16 %v1276, %v1275
  %v1508 = vpack.c.b16 %v1278, %v1277
  %v1509 = vpack.c.b16 %v1280, %v1279
  %v1510 = vpack.c.b16 %v1282, %v1281
  %v1511 = vpack.c.b16 %v1284, %v1283
  %v1512 = vpack.c.b16 %v1286, %v1285
  %v1513 = vpack.c.b16 %v1288, %v1287
  %v1514 = vpack.c.b16 %v1290, %v1289
  %v1515 = vpack.c.b16 %v1292, %v1291
  %v1516 = vpack.c.b16 %v1294, %v1293
  %v1517 = vpack.c.b16 %v1296, %v1295
  %v1518 = vpack.c.b16 %v1298, %v1297
  %v1519 = vpack.c.b16 %v1300, %v1299
  %v1520 = vpack.c.b16 %v1302, %v1301
  %v1521 = vpack.c.b16 %v1304, %v1303
  %v1522 = vpack.c.b16 %v1306, %v1305
  %v1523 = vpack.c.b16 %v1308, %v1307
  %v1524 = vpack.c.b16 %v1310, %v1309
  %v1525 = vpack.c.b16 %v1312, %v1311
  %v1526 = vpack.c.b16 %v1314, %v1313
  %v1527 = vpack.c.b16 %v1316, %v1315
  %v1528 = vpack.c.b16 %v1318, %v1317
  %v1529 = vpack.c.b16 %v1320, %v1319
  %v1530 = vpack.c.b16 %v1322, %v1321
  %v1531 = vpack.c.b16 %v1324, %v1323
  %v1532 = vpack.c.b16 %v1326, %v1325
  %v1533 = vpack.c.b16 %v1328, %v1327
  %v1534 = vpack.c.b16 %v1330, %v1329
  %v1535 = vpack.c.b16 %v1332, %v1331
  %v1536 = vpack.c.b16 %v1334, %v1333
  %v1537 = vpack.c.b16 %v1336, %v1335
  %v1538 = vpack.c.b16 %v1338, %v1337
  %v1539 = vpack.c.b16 %v1340, %v1339
  %v1540 = vpack.c.b16 %v1342, %v1341
  %v1541 = vpack.c.b16 %v1344, %v1343
  %v1542 = vpack.c.b16 %v1346, %v1345
  %v1543 = vpack.c.b16 %v1348, %v1347
  %v1544 = vpack.c.b16 %v1350, %v1349
  %v1545 = vpack.c.b16 %v1352, %v1351
  %v1546 = vpack.c.b16 %v1354, %v1353
  %v1547 = vpack.c.b16 %v1356, %v1355
  %v1548 = vpack.c.b16 %v1358, %v1357
  %v1549 = vpack.c.b16 %v1360, %v1359
  %v1550 = vpack.c.b16 %v1362, %v1361
  %v1551 = vpack.c.b16 %v1364, %v1363
  %v1552 = vpack.c.b16 %v1366, %v1365
  %v1553 = vpack.c.b16 %v1368, %v1367
  %v1554 = vpack.c.b16 %v1370, %v1369
  %v1555 = vpack.c.b16 %v1372, %v1371
  %v1556 = vpack.c.b16 %v1374, %v1373
  %v1557 = vpack.c.b16 %v1376, %v1375
  %v1558 = vpack.c.b16 %v1378, %v1377
  %v1559 = vpack.c.b16 %v1380, %v1379
  %v1560 = vpack.c.b16 %v1382, %v1381
  %v1561 = vpack.c.b16 %v1384, %v1383
  %v1562 = vpack.c.b16 %v1386, %v1385
  %v1563 = vpack.c.b16 %v1388, %v1387
  %v1564 = vpack.c.b16 %v1390, %v1389
  %v1565 = vpack.c.b16 %v1392, %v1391
  %v1566 = vpack.c.b16 %v1394, %v1393
  %v1567 = vpack.c.b16 %v1396, %v1395
  %v1568 = vpack.c.b16 %v1398, %v1397
  %v1569 = vpack.c.b16 %v1400, %v1399
  %v1570 = vpack.c.b16 %v1402, %v1401
  %v1571 = vpack.c.b16 %v1404, %v1403
  %v1572 = vpack.c.b16 %v1406, %v1405
  %v1573 = vpack.c.b16 %v1408, %v1407
  %v1574 = vpack.c.b16 %v1410, %v1409
  %v1575 = vpack.c.b16 %v1412, %v1411
  %v1576 = vpack.c.b16 %v1414, %v1413
  %v1577 = vpack.c.b16 %v1416, %v1415
  %v1578 = vpack.c.b16 %v1418, %v1417
  %v1579 = vpack.c.b16 %v1420, %v1419
  %v1580 = vpack.c.b16 %v1422, %v1421
  %v1581 = vpack.c.b16 %v1424, %v1423
  %v1582 = vpack.c.b16 %v1426, %v1425
  %v1583 = vpack.c.b16 %v1428, %v1427
  %v1584 = vpack.c.b16 %v1430, %v1429
  %v1585 = vpack.c.b16 %v1432, %v1431
  %v1586 = vpack.c.b16 %v1434, %v1433
  %v1587 = vpack.c.b16 %v1436, %v1435
  %v1588 = vpack.c.b16 %v1438, %v1437
  %v1589 = vpack.c.b16 %v1440, %v1439
  %v1590 = vpack.c.b16 %v1442, %v1441
  %v1591 = vpack.c.b16 %v1444, %v1443
  %v1592 = vpack.c.b16 %v1446, %v1445
  %v1593 = vpack.c.b16 %v1448, %v1447
  %v1594 = vpack.c.b16 %v1450, %v1449
  %v1595 = vpack.c.b16 %v1452, %v1451
  %v1596 = vpack.c.b16 %v1454, %v1453
  %v1597 = vpack.c.b16 %v1456, %v1455
  %v1598 = vpack.c.b16 %v1458, %v1457
  %v1599 = vpack.c.b16 %v1460, %v1459
  %v1600 = vpack.c.b16 %v1462, %v1461
  %v1601 = vpack.c.b16 %v1464, %v1463
  %v1602 = vpack.c.b16 %v1466, %v1465
  %v1603 = vpack.c.b16 %v1468, %v1467
  %v1604 = vpack.c.b16 %v1470, %v1469
  %v1605 = vpack.c.b16 %v1472, %v1471
  %v1606 = vpack.c.b16 %v1474, %v1473
  %v1607 = vpack.c.b16 %v1476, %v1475
  %v1608 = vpack.c.b16 %v1478, %v1477
  %v1609 = vpack.c.b16 %v1480, %v1479
  %v1610 = vpack.c.b16 %v1482, %v1481
  %1739 = vmatprep.subr.bf16.mxu0 0
  %1740 = vmatpush1.bf16.msra.mxu0 %v1483
  %1741 = vmatprep.subr.bf16.mxu0 0
  %1742 = vmatpush1.bf16.msra.mxu0 %v1484
  %1743 = vmatprep.subr.bf16.mxu0 0
  %1744 = vmatpush1.bf16.msra.mxu0 %v1485
  %1745 = vmatprep.subr.bf16.mxu0 0
  %1746 = vmatpush1.bf16.msra.mxu0 %v1486
  %1747 = vmatprep.subr.bf16.mxu0 0
  %1748 = vmatpush1.bf16.msra.mxu0 %v1487
  %1749 = vmatprep.subr.bf16.mxu0 0
  %1750 = vmatpush1.bf16.msra.mxu0 %v1488
  %1751 = vmatprep.subr.bf16.mxu0 0
  %1752 = vmatpush1.bf16.msra.mxu0 %v1489
  %1753 = vmatprep.subr.bf16.mxu0 0
  %1754 = vmatpush1.bf16.msra.mxu0 %v1490
  %1755 = vmatprep.subr.bf16.mxu0 0
  %1756 = vmatpush1.bf16.msra.mxu0 %v1491
  %1757 = vmatprep.subr.bf16.mxu0 0
  %1758 = vmatpush1.bf16.msra.mxu0 %v1492
  %1759 = vmatprep.subr.bf16.mxu0 0
  %1760 = vmatpush1.bf16.msra.mxu0 %v1493
  %1761 = vmatprep.subr.bf16.mxu0 0
  %1762 = vmatpush1.bf16.msra.mxu0 %v1494
  %1763 = vmatprep.subr.bf16.mxu0 0
  %1764 = vmatpush1.bf16.msra.mxu0 %v1495
  %1765 = vmatprep.subr.bf16.mxu0 0
  %1766 = vmatpush1.bf16.msra.mxu0 %v1496
  %1767 = vmatprep.subr.bf16.mxu0 0
  %1768 = vmatpush1.bf16.msra.mxu0 %v1497
  %1769 = vmatprep.subr.bf16.mxu0 0
  %1770 = vmatpush1.bf16.msra.mxu0 %v1498
  %1771 = vmatprep.mubr.bf16.mxu0 %v700
  %1772 = vmatmul.mubr.bf16.gmra.mrb[0].mxu0 %v699
  %v1773 = vpop.f32.mrb[0].mxu0
  %v1774 = vadd.f32 0.0, %v1773
  %v1775 = vpop.f32.mrb[0].mxu0
  %v1776 = vpop.f32.mrb[0].mxu0
  %v1777 = vadd.f32 0.0, %v1776
  %v1778 = vpop.f32.mrb[0].mxu0
  %1779 = vdwg.mxu0
  %1780 = vmatprep.subr.bf16.mxu0 0
  %1781 = vmatpush1.bf16.msra.mxu0 %v1499
  %1782 = vmatprep.subr.bf16.mxu0 0
  %1783 = vmatpush1.bf16.msra.mxu0 %v1500
  %1784 = vmatprep.subr.bf16.mxu0 0
  %1785 = vmatpush1.bf16.msra.mxu0 %v1501
  %1786 = vmatprep.subr.bf16.mxu0 0
  %1787 = vmatpush1.bf16.msra.mxu0 %v1502
  %1788 = vmatprep.subr.bf16.mxu0 0
  %1789 = vmatpush1.bf16.msra.mxu0 %v1503
  %1790 = vmatprep.subr.bf16.mxu0 0
  %1791 = vmatpush1.bf16.msra.mxu0 %v1504
  %1792 = vmatprep.subr.bf16.mxu0 0
  %1793 = vmatpush1.bf16.msra.mxu0 %v1505
  %1794 = vmatprep.subr.bf16.mxu0 0
  %1795 = vmatpush1.bf16.msra.mxu0 %v1506
  %1796 = vmatprep.subr.bf16.mxu0 0
  %1797 = vmatpush1.bf16.msra.mxu0 %v1507
  %1798 = vmatprep.subr.bf16.mxu0 0
  %1799 = vmatpush1.bf16.msra.mxu0 %v1508
  %1800 = vmatprep.subr.bf16.mxu0 0
  %1801 = vmatpush1.bf16.msra.mxu0 %v1509
  %1802 = vmatprep.subr.bf16.mxu0 0
  %1803 = vmatpush1.bf16.msra.mxu0 %v1510
  %1804 = vmatprep.subr.bf16.mxu0 0
  %1805 = vmatpush1.bf16.msra.mxu0 %v1511
  %1806 = vmatprep.subr.bf16.mxu0 0
  %1807 = vmatpush1.bf16.msra.mxu0 %v1512
  %1808 = vmatprep.subr.bf16.mxu0 0
  %1809 = vmatpush1.bf16.msra.mxu0 %v1513
  %1810 = vmatprep.subr.bf16.mxu0 0
  %1811 = vmatpush1.bf16.msra.mxu0 %v1514
  %1812 = vmatprep.mubr.bf16.mxu0 %v702
  %1813 = vmatmul.mubr.bf16.gmra.mrb[0].mxu0 %v701
  %v1814 = vpop.f32.mrb[0].mxu0
  %v1815 = vadd.f32 %v1774, %v1814
  %v1816 = vpop.f32.mrb[0].mxu0
  %v1817 = vpop.f32.mrb[0].mxu0
  %v1818 = vadd.f32 %v1777, %v1817
  %v1819 = vpop.f32.mrb[0].mxu0
  %1820 = vdwg.mxu0
  %1821 = vmatprep.subr.bf16.mxu0 0
  %1822 = vmatpush1.bf16.msra.mxu0 %v1515
  %1823 = vmatprep.subr.bf16.mxu0 0
  %1824 = vmatpush1.bf16.msra.mxu0 %v1516
  %1825 = vmatprep.subr.bf16.mxu0 0
  %1826 = vmatpush1.bf16.msra.mxu0 %v1517
  %1827 = vmatprep.subr.bf16.mxu0 0
  %1828 = vmatpush1.bf16.msra.mxu0 %v1518
  %1829 = vmatprep.subr.bf16.mxu0 0
  %1830 = vmatpush1.bf16.msra.mxu0 %v1519
  %1831 = vmatprep.subr.bf16.mxu0 0
  %1832 = vmatpush1.bf16.msra.mxu0 %v1520
  %1833 = vmatprep.subr.bf16.mxu0 0
  %1834 = vmatpush1.bf16.msra.mxu0 %v1521
  %1835 = vmatprep.subr.bf16.mxu0 0
  %1836 = vmatpush1.bf16.msra.mxu0 %v1522
  %1837 = vmatprep.subr.bf16.mxu0 0
  %1838 = vmatpush1.bf16.msra.mxu0 %v1523
  %1839 = vmatprep.subr.bf16.mxu0 0
  %1840 = vmatpush1.bf16.msra.mxu0 %v1524
  %1841 = vmatprep.subr.bf16.mxu0 0
  %1842 = vmatpush1.bf16.msra.mxu0 %v1525
  %1843 = vmatprep.subr.bf16.mxu0 0
  %1844 = vmatpush1.bf16.msra.mxu0 %v1526
  %1845 = vmatprep.subr.bf16.mxu0 0
  %1846 = vmatpush1.bf16.msra.mxu0 %v1527
  %1847 = vmatprep.subr.bf16.mxu0 0
  %1848 = vmatpush1.bf16.msra.mxu0 %v1528
  %1849 = vmatprep.subr.bf16.mxu0 0
  %1850 = vmatpush1.bf16.msra.mxu0 %v1529
  %1851 = vmatprep.subr.bf16.mxu0 0
  %1852 = vmatpush1.bf16.msra.mxu0 %v1530
  %1853 = vmatprep.mubr.bf16.mxu0 %v704
  %1854 = vmatmul.mubr.bf16.gmra.mrb[0].mxu0 %v703
  %v1855 = vpop.f32.mrb[0].mxu0
  %v1856 = vadd.f32 %v1815, %v1855
  %v1857 = vpop.f32.mrb[0].mxu0
  %v1858 = vpop.f32.mrb[0].mxu0
  %v1859 = vadd.f32 %v1818, %v1858
  %v1860 = vpop.f32.mrb[0].mxu0
  %1861 = vdwg.mxu0
  %1862 = vmatprep.subr.bf16.mxu0 0
  %1863 = vmatpush1.bf16.msra.mxu0 %v1531
  %1864 = vmatprep.subr.bf16.mxu0 0
  %1865 = vmatpush1.bf16.msra.mxu0 %v1532
  %1866 = vmatprep.subr.bf16.mxu0 0
  %1867 = vmatpush1.bf16.msra.mxu0 %v1533
  %1868 = vmatprep.subr.bf16.mxu0 0
  %1869 = vmatpush1.bf16.msra.mxu0 %v1534
  %1870 = vmatprep.subr.bf16.mxu0 0
  %1871 = vmatpush1.bf16.msra.mxu0 %v1535
  %1872 = vmatprep.subr.bf16.mxu0 0
  %1873 = vmatpush1.bf16.msra.mxu0 %v1536
  %1874 = vmatprep.subr.bf16.mxu0 0
  %1875 = vmatpush1.bf16.msra.mxu0 %v1537
  %1876 = vmatprep.subr.bf16.mxu0 0
  %1877 = vmatpush1.bf16.msra.mxu0 %v1538
  %1878 = vmatprep.subr.bf16.mxu0 0
  %1879 = vmatpush1.bf16.msra.mxu0 %v1539
  %1880 = vmatprep.subr.bf16.mxu0 0
  %1881 = vmatpush1.bf16.msra.mxu0 %v1540
  %1882 = vmatprep.subr.bf16.mxu0 0
  %1883 = vmatpush1.bf16.msra.mxu0 %v1541
  %1884 = vmatprep.subr.bf16.mxu0 0
  %1885 = vmatpush1.bf16.msra.mxu0 %v1542
  %1886 = vmatprep.subr.bf16.mxu0 0
  %1887 = vmatpush1.bf16.msra.mxu0 %v1543
  %1888 = vmatprep.subr.bf16.mxu0 0
  %1889 = vmatpush1.bf16.msra.mxu0 %v1544
  %1890 = vmatprep.subr.bf16.mxu0 0
  %1891 = vmatpush1.bf16.msra.mxu0 %v1545
  %1892 = vmatprep.subr.bf16.mxu0 0
  %1893 = vmatpush1.bf16.msra.mxu0 %v1546
  %1894 = vmatprep.mubr.bf16.mxu0 %v706
  %1895 = vmatmul.mubr.bf16.gmra.mrb[0].mxu0 %v705
  %v1896 = vpop.f32.mrb[0].mxu0
  %v1897 = vadd.f32 %v1856, %v1896
  %v1898 = vpop.f32.mrb[0].mxu0
  %v1899 = vpop.f32.mrb[0].mxu0
  %v1900 = vadd.f32 %v1859, %v1899
  %v1901 = vpop.f32.mrb[0].mxu0
  %1902 = vdwg.mxu0
  %1903 = vmatprep.subr.bf16.mxu0 0
  %1904 = vmatpush1.bf16.msra.mxu0 %v1547
  %1905 = vmatprep.subr.bf16.mxu0 0
  %1906 = vmatpush1.bf16.msra.mxu0 %v1548
  %1907 = vmatprep.subr.bf16.mxu0 0
  %1908 = vmatpush1.bf16.msra.mxu0 %v1549
  %1909 = vmatprep.subr.bf16.mxu0 0
  %1910 = vmatpush1.bf16.msra.mxu0 %v1550
  %1911 = vmatprep.subr.bf16.mxu0 0
  %1912 = vmatpush1.bf16.msra.mxu0 %v1551
  %1913 = vmatprep.subr.bf16.mxu0 0
  %1914 = vmatpush1.bf16.msra.mxu0 %v1552
  %1915 = vmatprep.subr.bf16.mxu0 0
  %1916 = vmatpush1.bf16.msra.mxu0 %v1553
  %1917 = vmatprep.subr.bf16.mxu0 0
  %1918 = vmatpush1.bf16.msra.mxu0 %v1554
  %1919 = vmatprep.subr.bf16.mxu0 0
  %1920 = vmatpush1.bf16.msra.mxu0 %v1555
  %1921 = vmatprep.subr.bf16.mxu0 0
  %1922 = vmatpush1.bf16.msra.mxu0 %v1556
  %1923 = vmatprep.subr.bf16.mxu0 0
  %1924 = vmatpush1.bf16.msra.mxu0 %v1557
  %1925 = vmatprep.subr.bf16.mxu0 0
  %1926 = vmatpush1.bf16.msra.mxu0 %v1558
  %1927 = vmatprep.subr.bf16.mxu0 0
  %1928 = vmatpush1.bf16.msra.mxu0 %v1559
  %1929 = vmatprep.subr.bf16.mxu0 0
  %1930 = vmatpush1.bf16.msra.mxu0 %v1560
  %1931 = vmatprep.subr.bf16.mxu0 0
  %1932 = vmatpush1.bf16.msra.mxu0 %v1561
  %1933 = vmatprep.subr.bf16.mxu0 0
  %1934 = vmatpush1.bf16.msra.mxu0 %v1562
  %1935 = vmatprep.mubr.bf16.mxu0 %v708
  %1936 = vmatmul.mubr.bf16.gmra.mrb[0].mxu0 %v707
  %v1937 = vpop.f32.mrb[0].mxu0
  %v1938 = vadd.f32 %v1897, %v1937
  %v1939 = vpop.f32.mrb[0].mxu0
  %v1940 = vpop.f32.mrb[0].mxu0
  %v1941 = vadd.f32 %v1900, %v1940
  %v1942 = vpop.f32.mrb[0].mxu0
  %1943 = vdwg.mxu0
  %1944 = vmatprep.subr.bf16.mxu0 0
  %1945 = vmatpush1.bf16.msra.mxu0 %v1563
  %1946 = vmatprep.subr.bf16.mxu0 0
  %1947 = vmatpush1.bf16.msra.mxu0 %v1564
  %1948 = vmatprep.subr.bf16.mxu0 0
  %1949 = vmatpush1.bf16.msra.mxu0 %v1565
  %1950 = vmatprep.subr.bf16.mxu0 0
  %1951 = vmatpush1.bf16.msra.mxu0 %v1566
  %1952 = vmatprep.subr.bf16.mxu0 0
  %1953 = vmatpush1.bf16.msra.mxu0 %v1567
  %1954 = vmatprep.subr.bf16.mxu0 0
  %1955 = vmatpush1.bf16.msra.mxu0 %v1568
  %1956 = vmatprep.subr.bf16.mxu0 0
  %1957 = vmatpush1.bf16.msra.mxu0 %v1569
  %1958 = vmatprep.subr.bf16.mxu0 0
  %1959 = vmatpush1.bf16.msra.mxu0 %v1570
  %1960 = vmatprep.subr.bf16.mxu0 0
  %1961 = vmatpush1.bf16.msra.mxu0 %v1571
  %1962 = vmatprep.subr.bf16.mxu0 0
  %1963 = vmatpush1.bf16.msra.mxu0 %v1572
  %1964 = vmatprep.subr.bf16.mxu0 0
  %1965 = vmatpush1.bf16.msra.mxu0 %v1573
  %1966 = vmatprep.subr.bf16.mxu0 0
  %1967 = vmatpush1.bf16.msra.mxu0 %v1574
  %1968 = vmatprep.subr.bf16.mxu0 0
  %1969 = vmatpush1.bf16.msra.mxu0 %v1575
  %1970 = vmatprep.subr.bf16.mxu0 0
  %1971 = vmatpush1.bf16.msra.mxu0 %v1576
  %1972 = vmatprep.subr.bf16.mxu0 0
  %1973 = vmatpush1.bf16.msra.mxu0 %v1577
  %1974 = vmatprep.subr.bf16.mxu0 0
  %1975 = vmatpush1.bf16.msra.mxu0 %v1578
  %1976 = vmatprep.mubr.bf16.mxu0 %v710
  %1977 = vmatmul.mubr.bf16.gmra.mrb[0].mxu0 %v709
  %v1978 = vpop.f32.mrb[0].mxu0
  %v1979 = vadd.f32 %v1938, %v1978
  %v1980 = vpop.f32.mrb[0].mxu0
  %v1981 = vpop.f32.mrb[0].mxu0
  %v1982 = vadd.f32 %v1941, %v1981
  %v1983 = vpop.f32.mrb[0].mxu0
  %1984 = vdwg.mxu0
  %1985 = vmatprep.subr.bf16.mxu0 0
  %1986 = vmatpush1.bf16.msra.mxu0 %v1579
  %1987 = vmatprep.subr.bf16.mxu0 0
  %1988 = vmatpush1.bf16.msra.mxu0 %v1580
  %1989 = vmatprep.subr.bf16.mxu0 0
  %1990 = vmatpush1.bf16.msra.mxu0 %v1581
  %1991 = vmatprep.subr.bf16.mxu0 0
  %1992 = vmatpush1.bf16.msra.mxu0 %v1582
  %1993 = vmatprep.subr.bf16.mxu0 0
  %1994 = vmatpush1.bf16.msra.mxu0 %v1583
  %1995 = vmatprep.subr.bf16.mxu0 0
  %1996 = vmatpush1.bf16.msra.mxu0 %v1584
  %1997 = vmatprep.subr.bf16.mxu0 0
  %1998 = vmatpush1.bf16.msra.mxu0 %v1585
  %1999 = vmatprep.subr.bf16.mxu0 0
  %2000 = vmatpush1.bf16.msra.mxu0 %v1586
  %2001 = vmatprep.subr.bf16.mxu0 0
  %2002 = vmatpush1.bf16.msra.mxu0 %v1587
  %2003 = vmatprep.subr.bf16.mxu0 0
  %2004 = vmatpush1.bf16.msra.mxu0 %v1588
  %2005 = vmatprep.subr.bf16.mxu0 0
  %2006 = vmatpush1.bf16.msra.mxu0 %v1589
  %2007 = vmatprep.subr.bf16.mxu0 0
  %2008 = vmatpush1.bf16.msra.mxu0 %v1590
  %2009 = vmatprep.subr.bf16.mxu0 0
  %2010 = vmatpush1.bf16.msra.mxu0 %v1591
  %2011 = vmatprep.subr.bf16.mxu0 0
  %2012 = vmatpush1.bf16.msra.mxu0 %v1592
  %2013 = vmatprep.subr.bf16.mxu0 0
  %2014 = vmatpush1.bf16.msra.mxu0 %v1593
  %2015 = vmatprep.subr.bf16.mxu0 0
  %2016 = vmatpush1.bf16.msra.mxu0 %v1594
  %2017 = vmatprep.mubr.bf16.mxu0 %v712
  %2018 = vmatmul.mubr.bf16.gmra.mrb[0].mxu0 %v711
  %v2019 = vpop.f32.mrb[0].mxu0
  %v2020 = vadd.f32 %v1979, %v2019
  %v2021 = vpop.f32.mrb[0].mxu0
  %v2022 = vpop.f32.mrb[0].mxu0
  %v2023 = vadd.f32 %v1982, %v2022
  %v2024 = vpop.f32.mrb[0].mxu0
  %2025 = vdwg.mxu0
  %2026 = vmatprep.subr.bf16.mxu0 0
  %2027 = vmatpush1.bf16.msra.mxu0 %v1595
  %2028 = vmatprep.subr.bf16.mxu0 0
  %2029 = vmatpush1.bf16.msra.mxu0 %v1596
  %2030 = vmatprep.subr.bf16.mxu0 0
  %2031 = vmatpush1.bf16.msra.mxu0 %v1597
  %2032 = vmatprep.subr.bf16.mxu0 0
  %2033 = vmatpush1.bf16.msra.mxu0 %v1598
  %2034 = vmatprep.subr.bf16.mxu0 0
  %2035 = vmatpush1.bf16.msra.mxu0 %v1599
  %2036 = vmatprep.subr.bf16.mxu0 0
  %2037 = vmatpush1.bf16.msra.mxu0 %v1600
  %2038 = vmatprep.subr.bf16.mxu0 0
  %2039 = vmatpush1.bf16.msra.mxu0 %v1601
  %2040 = vmatprep.subr.bf16.mxu0 0
  %2041 = vmatpush1.bf16.msra.mxu0 %v1602
  %2042 = vmatprep.subr.bf16.mxu0 0
  %2043 = vmatpush1.bf16.msra.mxu0 %v1603
  %2044 = vmatprep.subr.bf16.mxu0 0
  %2045 = vmatpush1.bf16.msra.mxu0 %v1604
  %2046 = vmatprep.subr.bf16.mxu0 0
  %2047 = vmatpush1.bf16.msra.mxu0 %v1605
  %2048 = vmatprep.subr.bf16.mxu0 0
  %2049 = vmatpush1.bf16.msra.mxu0 %v1606
  %2050 = vmatprep.subr.bf16.mxu0 0
  %2051 = vmatpush1.bf16.msra.mxu0 %v1607
  %2052 = vmatprep.subr.bf16.mxu0 0
  %2053 = vmatpush1.bf16.msra.mxu0 %v1608
  %2054 = vmatprep.subr.bf16.mxu0 0
  %2055 = vmatpush1.bf16.msra.mxu0 %v1609
  %2056 = vmatprep.subr.bf16.mxu0 0
  %2057 = vmatpush1.bf16.msra.mxu0 %v1610
  %2058 = vmatprep.mubr.bf16.mxu0 %v714
  %2059 = vmatmul.mubr.bf16.gmra.mrb[0].mxu0 %v713
  %v2060 = vpop.f32.mrb[0].mxu0
  %v2061 = vadd.f32 %v2020, %v2060
  %v2062 = vpop.f32.mrb[0].mxu0
  %v2063 = vpop.f32.mrb[0].mxu0
  %v2064 = vadd.f32 %v2023, %v2063
  %v2065 = vpop.f32.mrb[0].mxu0
  %2066 = vdwg.mxu0
  %v2067 = vadd.f32 %v697, %v2061
  %v2068 = vadd.f32 %v698, %v2064
  %2069 = vst.msk [vmem:[#allocation2] sm:$0xff] %vm317, %v2067
  %2070 = vst.msk [vmem:[#allocation2 + $0x8] sm:$0xff] %vm317, %v2068
  // Predicated region
  $region34: #{transformer_decoder_forward.9} parent=0 // pred_check
    %p2071 = pneg %p27
  $region35: #{transformer_decoder_forward.9} parent=0 // pred_check_branch
    %2073 = sbr.rel (%p2071) target = $region37
  $region36: #{transformer_decoder_forward.9} parent=0 // pred_region
    %v2074 = vld [vmem:[%s0] sm:$0xf]
    %v2075 = vld [vmem:[%s0 + $0x4] sm:$0xf]
    %v2076 = vunpack.c.l.bf16 %v2074
    %v2077 = vunpack.c.l.bf16 %v2075
    %v2078 = vld [vmem:[#allocation2] sm:$0xff]
    %v2079 = vld [vmem:[#allocation2 + $0x8] sm:$0xff]
    %v2080 = vadd.f32 %v2076, %v2078
    %v2081 = vadd.f32 %v2077, %v2079
    %v2082 = vld [vmem:[%s4] sm:$0x1]
    %v2084 = vlaneseq
    %v2085 = vshrl.u32 %v2084, 7
    %v2086 = vsub.s32 0, %v2085
    %v2087 = vrot.slane %v2082, %v2086
    %v2089 = vadd.f32 %v2080, %v2087
    %v2090 = vadd.f32 %v2081, %v2087
    %v2091 = vsel %vm317, %v2089, 0.0
    %2092 = vadd.xlane.f32.xlu0 %v2091
    %v2093 = vpop.xlane.xlu0 %2092
    %v2094 = vsel %vm317, %v2090, 0.0
    %2095 = vadd.xlane.f32.xlu0 %v2094
    %v2096 = vpop.xlane.xlu0 %2095
    %v2097 = vrcp.pop 32.0
    %v2098 = vmul.f32 %v2093, %v2097
    %v2099 = vmul.f32 %v2096, %v2097
    %v2100 = vsub.f32 %v2089, %v2098
    %v2101 = vsub.f32 %v2090, %v2099
    %v2102 = vmul.f32 %v2100, %v2100
    %v2103 = vmul.f32 %v2101, %v2101
    %v2104 = vsel %vm317, %v2102, 0.0
    %2105 = vadd.xlane.f32.xlu0 %v2104
    %v2106 = vpop.xlane.xlu0 %2105
    %v2107 = vsel %vm317, %v2103, 0.0
    %2108 = vadd.xlane.f32.xlu0 %v2107
    %v2109 = vpop.xlane.xlu0 %2108
    %v2110 = vmul.f32 %v2106, %v2097
    %v2111 = vmul.f32 %v2109, %v2097
    %v2112 = vadd.f32 %v2110, 1e-05
    %v2113 = vadd.f32 %v2111, 1e-05
    %v2114 = vrsqrt.pop %v2112
    %v2115 = vrsqrt.pop %v2113
    %v2116 = vmul.f32 %v2100, %v2114
    %v2117 = vmul.f32 %v2101, %v2115
    %v2118 = vld [vmem:[%s5] sm:$0x1]
    %v2120 = vlaneseq
    %v2121 = vshrl.u32 %v2120, 7
    %v2122 = vsub.s32 0, %v2121
    %v2123 = vrot.slane %v2118, %v2122
    %v2125 = vmul.f32 %v2116, %v2123
    %v2126 = vmul.f32 %v2117, %v2123
    %v2127 = vld [vmem:[%s6] sm:$0x1]
    %v2129 = vlaneseq
    %v2130 = vshrl.u32 %v2129, 7
    %v2131 = vsub.s32 0, %v2130
    %v2132 = vrot.slane %v2127, %v2131
    %v2134 = vadd.f32 %v2125, %v2132
    %v2135 = vadd.f32 %v2126, %v2132
    %v2136 = vpack.c.bf16 %v2135, %v2134
    %v2138 = vunpack.c.l.b16 %v2136
    %v2139 = vunpack.c.h.b16 %v2136
    %v2140 = vpack.c.b16 %v2138, %v2138
    %v2141 = vpack.c.b16 %v2139, %v2139
    %vm2144 = vcmask 257024
    %2145 = vst.msk [vmem:[%s7] sm:$0xf] %vm2144, %v2140
    %2146 = vst.msk [vmem:[%s7 + $0x4] sm:$0xf] %vm2144, %v2141
  $region37: #{transformer_decoder_forward.9} parent=0 // pred_fallthru
    _
  // Predicated region
  $region38: #{transformer_decoder_forward.9} parent=0 // pred_check
    _
  $region39: #{transformer_decoder_forward.9} parent=0 // pred_check_branch
    %2148 = sbr.rel (0) target = $region41
  $region40: #{transformer_decoder_forward.9} parent=0 // pred_region
    _
  $region41: #{transformer_decoder_forward.9} parent=0 // pred_fallthru
    _
  // Predicated region
  $region42: #{transformer_decoder_forward.9} parent=0 // pred_check
    _
  $region43: #{transformer_decoder_forward.9} parent=0 // pred_check_branch
    %2150 = sbr.rel (0) target = $region45
  $region44: #{transformer_decoder_forward.9} parent=0 // pred_region
    _
  $region45: #{transformer_decoder_forward.9} parent=0 // pred_fallthru
    _

</llo_original>
